<compile_context>
chip_gen: v5e
topology: v5e:2x2
jax: 0.10.0
libtpu: 0.0.40
codegen_flags: <defaults>
</compile_context>

<pallas_src>
import math

import jax
import jax.numpy as jnp
from jax.experimental import pallas as pl
from jax.experimental.pallas import tpu as pltpu

# ---------------- mini-BERT config (small, deterministic) ----------------
VOCAB = 100
MAX_POS = 16
BATCH = 2
SEQ = 8
HIDDEN = 32
NUM_HEADS = 2
HEAD_DIM = HIDDEN // NUM_HEADS
INTER = 64
NUM_LAYERS = 2
LN_EPS = 1e-12


def _gelu(v):
    # TODO(synk): BERT uses exact erf-GELU; tanh approximation used here for
    # guaranteed Mosaic lowering of the transcendental.
    return 0.5 * v * (1.0 + jnp.tanh(0.7978845608028654 * (v + 0.044715 * v * v * v)))


def _layernorm(v, g, b):
    mu = jnp.mean(v, axis=-1, keepdims=True)
    var = jnp.mean((v - mu) * (v - mu), axis=-1, keepdims=True)
    return (v - mu) * jax.lax.rsqrt(var + LN_EPS) * g + b


def bert_encoder_kernel(
    ids_ref,        # (B*S,)          int32, SMEM (scalar prefetch)
    word_emb_ref,   # (VOCAB, 1, H)   word embedding table (VMEM)
    pos_type_ref,   # (B*S, H)        position + segment embeddings, pre-tiled
    mask_ref,       # (B, 1, S)       additive attention bias ((1-mask)*-1e4)
    emb_g_ref,      # (1, H)          embedding LayerNorm gamma
    emb_b_ref,      # (1, H)          embedding LayerNorm beta
    wq_ref, bq_ref, wk_ref, bk_ref, wv_ref, bv_ref,   # (L,NH,H,HD) / (L,NH,1,HD)
    wo_ref, bo_ref,                                   # (L,NH,HD,H) / (L,1,H)
    ln1g_ref, ln1b_ref,                               # (L,1,H)
    w1_ref, b1_ref, w2_ref, b2_ref,                   # (L,H,I)/(L,1,I)/(L,I,H)/(L,1,H)
    ln2g_ref, ln2b_ref,                               # (L,1,H)
    out_ref,        # (B, H)          CLS embeddings (lane-dense 2-D output)
    x_scr,          # (B*S, H)        VMEM scratch for the gathered embeddings
):
    inv_sqrt_d = 1.0 / math.sqrt(HEAD_DIM)

    # ---- fused embedding gather (token ids in SMEM, table in VMEM) ----
    for t in range(BATCH * SEQ):
        tok = ids_ref[t]                               # scalar from SMEM
        x_scr[pl.ds(t, 1), :] = word_emb_ref[tok]      # dynamic leading-dim row

    x = x_scr[...] + pos_type_ref[...]                 # (B*S, H)
    x = _layernorm(x, emb_g_ref[...], emb_b_ref[...])

    # hoist per-batch mask rows (tiny VMEM reads, reused every layer/head)
    mask_rows = [mask_ref[b] for b in range(BATCH)]    # each (1, S)

    for l in range(NUM_LAYERS):
        # ---- multi-head self-attention (heads via pre-split weights) ----
        acc = None
        for h in range(NUM_HEADS):
            qh = jnp.dot(x, wq_ref[l, h], preferred_element_type=jnp.float32) + bq_ref[l, h]
            kh = jnp.dot(x, wk_ref[l, h], preferred_element_type=jnp.float32) + bk_ref[l, h]
            vh = jnp.dot(x, wv_ref[l, h], preferred_element_type=jnp.float32) + bv_ref[l, h]

            ctx_rows = []
            for b in range(BATCH):                     # 8-row-aligned sublane slices
                lo = b * SEQ
                q_b = qh[lo:lo + SEQ, :]
                k_b = kh[lo:lo + SEQ, :]
                v_b = vh[lo:lo + SEQ, :]
                # Q.K^T by contracting last dims of both (no explicit transpose)
                s = jax.lax.dot_general(
                    q_b, k_b, (((1,), (1,)), ((), ())),
                    preferred_element_type=jnp.float32) * inv_sqrt_d
                s = s + mask_rows[b]                   # (S,S) + (1,S)
                s = s - jnp.max(s, axis=-1, keepdims=True)
                p = jnp.exp(s)
                p = p * pl.reciprocal(jnp.sum(p, axis=-1, keepdims=True), approx=True)
                ctx_rows.append(jnp.dot(p, v_b, preferred_element_type=jnp.float32))
            ctx = jnp.concatenate(ctx_rows, axis=0)    # (B*S, HD), tile-aligned

            part = jnp.dot(ctx, wo_ref[l, h], preferred_element_type=jnp.float32)
            acc = part if acc is None else acc + part

        attn_out = acc + bo_ref[l]                     # (B*S, H) + (1, H)
        x = _layernorm(x + attn_out, ln1g_ref[l], ln1b_ref[l])

        # ---- feed-forward ----
        h1 = jnp.dot(x, w1_ref[l], preferred_element_type=jnp.float32) + b1_ref[l]
        h1 = _gelu(h1)
        ffn = jnp.dot(h1, w2_ref[l], preferred_element_type=jnp.float32) + b2_ref[l]
        x = _layernorm(x + ffn, ln2g_ref[l], ln2b_ref[l])

    # ---- CLS token (row 0 of each batch element), single lane-dense store ----
    out_ref[...] = jnp.concatenate(
        [x[b * SEQ:b * SEQ + 1, :] for b in range(BATCH)], axis=0)


def make_params(key):
    def nrm(k, shape, scale=0.02):
        return (scale * jax.random.normal(k, shape)).astype(jnp.float32)

    keys = jax.random.split(key, 32)
    return {
        "word_emb": nrm(keys[0], (VOCAB, HIDDEN)),
        "pos_emb": nrm(keys[1], (MAX_POS, HIDDEN)),
        "type_emb": nrm(keys[2], (2, HIDDEN)),
        "emb_g": jnp.ones((1, HIDDEN), jnp.float32),
        "emb_b": jnp.zeros((1, HIDDEN), jnp.float32),
        "wq": nrm(keys[3], (NUM_LAYERS, HIDDEN, HIDDEN)),
        "bq": jnp.zeros((NUM_LAYERS, HIDDEN), jnp.float32),
        "wk": nrm(keys[4], (NUM_LAYERS, HIDDEN, HIDDEN)),
        "bk": jnp.zeros((NUM_LAYERS, HIDDEN), jnp.float32),
        "wv": nrm(keys[5], (NUM_LAYERS, HIDDEN, HIDDEN)),
        "bv": jnp.zeros((NUM_LAYERS, HIDDEN), jnp.float32),
        "wo": nrm(keys[6], (NUM_LAYERS, HIDDEN, HIDDEN)),
        "bo": jnp.zeros((NUM_LAYERS, HIDDEN), jnp.float32),
        "ln1g": jnp.ones((NUM_LAYERS, HIDDEN), jnp.float32),
        "ln1b": jnp.zeros((NUM_LAYERS, HIDDEN), jnp.float32),
        "w1": nrm(keys[7], (NUM_LAYERS, HIDDEN, INTER)),
        "b1": jnp.zeros((NUM_LAYERS, INTER), jnp.float32),
        "w2": nrm(keys[8], (NUM_LAYERS, INTER, HIDDEN)),
        "b2": jnp.zeros((NUM_LAYERS, HIDDEN), jnp.float32),
        "ln2g": jnp.ones((NUM_LAYERS, HIDDEN), jnp.float32),
        "ln2b": jnp.zeros((NUM_LAYERS, HIDDEN), jnp.float32),
    }


@jax.jit
def text_encoder_forward(params, input_ids, attention_mask):
    B, S = input_ids.shape
    L, H, NH, HD, I = NUM_LAYERS, HIDDEN, NUM_HEADS, HEAD_DIM, INTER

    # --- glue (layout only; the gather itself happens inside the kernel) ---
    ids_flat = input_ids.reshape(B * S).astype(jnp.int32)
    word_emb3 = params["word_emb"][:, None, :]                        # (V,1,H)
    pos_type = jnp.tile(params["pos_emb"][:S] + params["type_emb"][0][None, :],
                        (B, 1))                                       # (B*S,H)
    mask_bias = ((1.0 - attention_mask.astype(jnp.float32)) * -10000.0
                 ).reshape(B, 1, S)                                   # (B,1,S)

    # split Q/K/V columns and O rows per head so the kernel never lane-slices
    wq = params["wq"].reshape(L, H, NH, HD).transpose(0, 2, 1, 3)     # (L,NH,H,HD)
    wk = params["wk"].reshape(L, H, NH, HD).transpose(0, 2, 1, 3)
    wv = params["wv"].reshape(L, H, NH, HD).transpose(0, 2, 1, 3)
    bq = params["bq"].reshape(L, NH, 1, HD)
    bk = params["bk"].reshape(L, NH, 1, HD)
    bv = params["bv"].reshape(L, NH, 1, HD)
    wo = params["wo"].reshape(L, NH, HD, H)                           # (L,NH,HD,H)
    bo = params["bo"].reshape(L, 1, H)
    ln1g = params["ln1g"].reshape(L, 1, H)
    ln1b = params["ln1b"].reshape(L, 1, H)
    w1 = params["w1"]
    b1 = params["b1"].reshape(L, 1, I)
    w2 = params["w2"]
    b2 = params["b2"].reshape(L, 1, H)
    ln2g = params["ln2g"].reshape(L, 1, H)
    ln2b = params["ln2b"].reshape(L, 1, H)

    tensor_args = [word_emb3, pos_type, mask_bias,
                   params["emb_g"], params["emb_b"],
                   wq, bq, wk, bk, wv, bv, wo, bo,
                   ln1g, ln1b, w1, b1, w2, b2, ln2g, ln2b]

    def full_spec(a):
        zeros = (0,) * a.ndim
        return pl.BlockSpec(a.shape, lambda i, ids, z=zeros: z)

    grid_spec = pltpu.PrefetchScalarGridSpec(
        num_scalar_prefetch=1,               # ids_flat -> SMEM
        grid=(1,),                           # single fused invocation
        in_specs=[full_spec(a) for a in tensor_args],
        out_specs=pl.BlockSpec((B, H), lambda i, ids: (0, 0)),
        scratch_shapes=[pltpu.VMEM((B * S, H), jnp.float32)],
    )

    out = pl.pallas_call(
        bert_encoder_kernel,
        out_shape=jax.ShapeDtypeStruct((B, H), jnp.float32),
        grid_spec=grid_spec,
        compiler_params=pltpu.CompilerParams(dimension_semantics=("arbitrary",)),
    )(ids_flat, *tensor_args)

    return out                                # == last_hidden_state[:, 0, :]


def reference_forward(params, input_ids, attention_mask):
    """Pure-JAX reference of the same mini-BERT (sanity check)."""
    B, S = input_ids.shape
    word = jnp.take(params["word_emb"], input_ids, axis=0)
    x = word + params["pos_emb"][:S][None] + params["type_emb"][0][None, None]
    x = _layernorm(x, params["emb_g"][0], params["emb_b"][0])
    mask_bias = ((1.0 - attention_mask.astype(jnp.float32)) * -10000.0)[:, None, :]
    for l in range(NUM_LAYERS):
        q = x @ params["wq"][l] + params["bq"][l]
        k = x @ params["wk"][l] + params["bk"][l]
        v = x @ params["wv"][l] + params["bv"][l]
        ctx = []
        for h in range(NUM_HEADS):
            lo, hi = h * HEAD_DIM, (h + 1) * HEAD_DIM
            s = jnp.einsum("bqd,bkd->bqk", q[..., lo:hi], k[..., lo:hi]) / math.sqrt(HEAD_DIM)
            s = s + mask_bias
            p = jax.nn.softmax(s, axis=-1)
            ctx.append(jnp.einsum("bqk,bkd->bqd", p, v[..., lo:hi]))
        ctx = jnp.concatenate(ctx, axis=-1)
        x = _layernorm(x + ctx @ params["wo"][l] + params["bo"][l],
                       params["ln1g"][l], params["ln1b"][l])
        h1 = _gelu(x @ params["w1"][l] + params["b1"][l])
        x = _layernorm(x + h1 @ params["w2"][l] + params["b2"][l],
                       params["ln2g"][l], params["ln2b"][l])
    return x[:, 0, :]


if __name__ == "__main__":
    key = jax.random.PRNGKey(0)
    pkey, ikey = jax.random.split(key)
    params = make_params(pkey)

    input_ids = jax.random.randint(ikey, (BATCH, SEQ), 0, VOCAB, dtype=jnp.int32)
    attention_mask = jnp.array(
        [[1] * SEQ, [1] * (SEQ // 2) + [0] * (SEQ - SEQ // 2)], dtype=jnp.int32
    )

    cls_out = text_encoder_forward(params, input_ids, attention_mask)
    cls_out = jax.block_until_ready(cls_out)

    ref = reference_forward(params, input_ids, attention_mask)
    assert cls_out.shape == (BATCH, HIDDEN)
    assert bool(jnp.all(jnp.isfinite(cls_out)))
    assert bool(jnp.allclose(cls_out, ref, atol=1e-2, rtol=1e-2))
    print("KERNEL_OK")
</pallas_src>

<mosaic_0001>
module attributes {stable_mosaic.version = 11 : i64} {
  func.func @bert_encoder_kernel(%arg0: i32, %arg1: memref<16xi32, #tpu.memory_space<smem>>, %arg2: memref<100x1x32xf32, #tpu.memory_space<vmem>>, %arg3: memref<16x32xf32, #tpu.memory_space<vmem>>, %arg4: memref<2x1x8xf32, #tpu.memory_space<vmem>>, %arg5: memref<1x32xf32, #tpu.memory_space<vmem>>, %arg6: memref<1x32xf32, #tpu.memory_space<vmem>>, %arg7: memref<2x2x32x16xf32, #tpu.memory_space<vmem>>, %arg8: memref<2x2x1x16xf32, #tpu.memory_space<vmem>>, %arg9: memref<2x2x32x16xf32, #tpu.memory_space<vmem>>, %arg10: memref<2x2x1x16xf32, #tpu.memory_space<vmem>>, %arg11: memref<2x2x32x16xf32, #tpu.memory_space<vmem>>, %arg12: memref<2x2x1x16xf32, #tpu.memory_space<vmem>>, %arg13: memref<2x2x16x32xf32, #tpu.memory_space<vmem>>, %arg14: memref<2x1x32xf32, #tpu.memory_space<vmem>>, %arg15: memref<2x1x32xf32, #tpu.memory_space<vmem>>, %arg16: memref<2x1x32xf32, #tpu.memory_space<vmem>>, %arg17: memref<2x32x64xf32, #tpu.memory_space<vmem>>, %arg18: memref<2x1x64xf32, #tpu.memory_space<vmem>>, %arg19: memref<2x64x32xf32, #tpu.memory_space<vmem>>, %arg20: memref<2x1x32xf32, #tpu.memory_space<vmem>>, %arg21: memref<2x1x32xf32, #tpu.memory_space<vmem>>, %arg22: memref<2x1x32xf32, #tpu.memory_space<vmem>>, %arg23: memref<2x32xf32, #tpu.memory_space<vmem>>, %arg24: memref<16x32xf32, #tpu.memory_space<vmem>>) attributes {dimension_semantics = [#tpu.dimension_semantics<arbitrary>], iteration_bounds = array<i64: 1>, scalar_prefetch = 1 : i64, scratch_operands = 1 : i64, tpu.core_type = #tpu.core_type<tc>, window_params = [{pipeline_mode = #tpu.pipeline_mode<synchronous>, transform_indices = @transform_0, window_bounds = array<i64: 100, 1, 32>}, {pipeline_mode = #tpu.pipeline_mode<synchronous>, transform_indices = @transform_1, window_bounds = array<i64: 16, 32>}, {pipeline_mode = #tpu.pipeline_mode<synchronous>, transform_indices = @transform_2, window_bounds = array<i64: 2, 1, 8>}, {pipeline_mode = #tpu.pipeline_mode<synchronous>, transform_indices = @transform_3, window_bounds = array<i64: 1, 32>}, {pipeline_mode = #tpu.pipeline_mode<synchronous>, transform_indices = @transform_4, window_bounds = array<i64: 1, 32>}, {pipeline_mode = #tpu.pipeline_mode<synchronous>, transform_indices = @transform_5, window_bounds = array<i64: 2, 2, 32, 16>}, {pipeline_mode = #tpu.pipeline_mode<synchronous>, transform_indices = @transform_6, window_bounds = array<i64: 2, 2, 1, 16>}, {pipeline_mode = #tpu.pipeline_mode<synchronous>, transform_indices = @transform_7, window_bounds = array<i64: 2, 2, 32, 16>}, {pipeline_mode = #tpu.pipeline_mode<synchronous>, transform_indices = @transform_8, window_bounds = array<i64: 2, 2, 1, 16>}, {pipeline_mode = #tpu.pipeline_mode<synchronous>, transform_indices = @transform_9, window_bounds = array<i64: 2, 2, 32, 16>}, {pipeline_mode = #tpu.pipeline_mode<synchronous>, transform_indices = @transform_10, window_bounds = array<i64: 2, 2, 1, 16>}, {pipeline_mode = #tpu.pipeline_mode<synchronous>, transform_indices = @transform_11, window_bounds = array<i64: 2, 2, 16, 32>}, {pipeline_mode = #tpu.pipeline_mode<synchronous>, transform_indices = @transform_12, window_bounds = array<i64: 2, 1, 32>}, {pipeline_mode = #tpu.pipeline_mode<synchronous>, transform_indices = @transform_13, window_bounds = array<i64: 2, 1, 32>}, {pipeline_mode = #tpu.pipeline_mode<synchronous>, transform_indices = @transform_14, window_bounds = array<i64: 2, 1, 32>}, {pipeline_mode = #tpu.pipeline_mode<synchronous>, transform_indices = @transform_15, window_bounds = array<i64: 2, 32, 64>}, {pipeline_mode = #tpu.pipeline_mode<synchronous>, transform_indices = @transform_16, window_bounds = array<i64: 2, 1, 64>}, {pipeline_mode = #tpu.pipeline_mode<synchronous>, transform_indices = @transform_17, window_bounds = array<i64: 2, 64, 32>}, {pipeline_mode = #tpu.pipeline_mode<synchronous>, transform_indices = @transform_18, window_bounds = array<i64: 2, 1, 32>}, {pipeline_mode = #tpu.pipeline_mode<synchronous>, transform_indices = @transform_19, window_bounds = array<i64: 2, 1, 32>}, {pipeline_mode = #tpu.pipeline_mode<synchronous>, transform_indices = @transform_20, window_bounds = array<i64: 2, 1, 32>}, {pipeline_mode = #tpu.pipeline_mode<synchronous>, transform_indices = @transform_21, window_bounds = array<i64: 2, 32>}]} {
    %c0 = arith.constant 0 : index
    %0 = memref.load %arg1[%c0] : memref<16xi32, #tpu.memory_space<smem>>
    %1 = arith.index_cast %0 : i32 to index
    %c0_0 = arith.constant 0 : index
    %c0_1 = arith.constant 0 : index
    %2 = vector.load %arg2[%1, %c0_0, %c0_1] : memref<100x1x32xf32, #tpu.memory_space<vmem>>, vector<1x1x32xf32>
    %3 = vector.shape_cast %2 : vector<1x1x32xf32> to vector<1x32xf32>
    %c0_2 = arith.constant 0 : index
    %c0_3 = arith.constant 0 : index
    %4 = vector.load %arg24[%c0_2, %c0_3] : memref<16x32xf32, #tpu.memory_space<vmem>>, vector<1x32xf32>
    tpu.vector_store %arg24[%c0_2, %c0_3], %3 {strides = array<i32>} : memref<16x32xf32, #tpu.memory_space<vmem>>, vector<1x32xf32>,
    %c1 = arith.constant 1 : index
    %5 = memref.load %arg1[%c1] : memref<16xi32, #tpu.memory_space<smem>>
    %6 = arith.index_cast %5 : i32 to index
    %c0_4 = arith.constant 0 : index
    %c0_5 = arith.constant 0 : index
    %7 = vector.load %arg2[%6, %c0_4, %c0_5] : memref<100x1x32xf32, #tpu.memory_space<vmem>>, vector<1x1x32xf32>
    %8 = vector.shape_cast %7 : vector<1x1x32xf32> to vector<1x32xf32>
    %c1_6 = arith.constant 1 : index
    %c0_7 = arith.constant 0 : index
    %9 = vector.load %arg24[%c1_6, %c0_7] : memref<16x32xf32, #tpu.memory_space<vmem>>, vector<1x32xf32>
    tpu.vector_store %arg24[%c1_6, %c0_7], %8 {strides = array<i32>} : memref<16x32xf32, #tpu.memory_space<vmem>>, vector<1x32xf32>,
    %c2 = arith.constant 2 : index
    %10 = memref.load %arg1[%c2] : memref<16xi32, #tpu.memory_space<smem>>
    %11 = arith.index_cast %10 : i32 to index
    %c0_8 = arith.constant 0 : index
    %c0_9 = arith.constant 0 : index
    %12 = vector.load %arg2[%11, %c0_8, %c0_9] : memref<100x1x32xf32, #tpu.memory_space<vmem>>, vector<1x1x32xf32>
    %13 = vector.shape_cast %12 : vector<1x1x32xf32> to vector<1x32xf32>
    %c2_10 = arith.constant 2 : index
    %c0_11 = arith.constant 0 : index
    %14 = vector.load %arg24[%c2_10, %c0_11] : memref<16x32xf32, #tpu.memory_space<vmem>>, vector<1x32xf32>
    tpu.vector_store %arg24[%c2_10, %c0_11], %13 {strides = array<i32>} : memref<16x32xf32, #tpu.memory_space<vmem>>, vector<1x32xf32>,
    %c3 = arith.constant 3 : index
    %15 = memref.load %arg1[%c3] : memref<16xi32, #tpu.memory_space<smem>>
    %16 = arith.index_cast %15 : i32 to index
    %c0_12 = arith.constant 0 : index
    %c0_13 = arith.constant 0 : index
    %17 = vector.load %arg2[%16, %c0_12, %c0_13] : memref<100x1x32xf32, #tpu.memory_space<vmem>>, vector<1x1x32xf32>
    %18 = vector.shape_cast %17 : vector<1x1x32xf32> to vector<1x32xf32>
    %c3_14 = arith.constant 3 : index
    %c0_15 = arith.constant 0 : index
    %19 = vector.load %arg24[%c3_14, %c0_15] : memref<16x32xf32, #tpu.memory_space<vmem>>, vector<1x32xf32>
    tpu.vector_store %arg24[%c3_14, %c0_15], %18 {strides = array<i32>} : memref<16x32xf32, #tpu.memory_space<vmem>>, vector<1x32xf32>,
    %c4 = arith.constant 4 : index
    %20 = memref.load %arg1[%c4] : memref<16xi32, #tpu.memory_space<smem>>
    %21 = arith.index_cast %20 : i32 to index
    %c0_16 = arith.constant 0 : index
    %c0_17 = arith.constant 0 : index
    %22 = vector.load %arg2[%21, %c0_16, %c0_17] : memref<100x1x32xf32, #tpu.memory_space<vmem>>, vector<1x1x32xf32>
    %23 = vector.shape_cast %22 : vector<1x1x32xf32> to vector<1x32xf32>
    %c4_18 = arith.constant 4 : index
    %c0_19 = arith.constant 0 : index
    %24 = vector.load %arg24[%c4_18, %c0_19] : memref<16x32xf32, #tpu.memory_space<vmem>>, vector<1x32xf32>
    tpu.vector_store %arg24[%c4_18, %c0_19], %23 {strides = array<i32>} : memref<16x32xf32, #tpu.memory_space<vmem>>, vector<1x32xf32>,
    %c5 = arith.constant 5 : index
    %25 = memref.load %arg1[%c5] : memref<16xi32, #tpu.memory_space<smem>>
    %26 = arith.index_cast %25 : i32 to index
    %c0_20 = arith.constant 0 : index
    %c0_21 = arith.constant 0 : index
    %27 = vector.load %arg2[%26, %c0_20, %c0_21] : memref<100x1x32xf32, #tpu.memory_space<vmem>>, vector<1x1x32xf32>
    %28 = vector.shape_cast %27 : vector<1x1x32xf32> to vector<1x32xf32>
    %c5_22 = arith.constant 5 : index
    %c0_23 = arith.constant 0 : index
    %29 = vector.load %arg24[%c5_22, %c0_23] : memref<16x32xf32, #tpu.memory_space<vmem>>, vector<1x32xf32>
    tpu.vector_store %arg24[%c5_22, %c0_23], %28 {strides = array<i32>} : memref<16x32xf32, #tpu.memory_space<vmem>>, vector<1x32xf32>,
    %c6 = arith.constant 6 : index
    %30 = memref.load %arg1[%c6] : memref<16xi32, #tpu.memory_space<smem>>
    %31 = arith.index_cast %30 : i32 to index
    %c0_24 = arith.constant 0 : index
    %c0_25 = arith.constant 0 : index
    %32 = vector.load %arg2[%31, %c0_24, %c0_25] : memref<100x1x32xf32, #tpu.memory_space<vmem>>, vector<1x1x32xf32>
    %33 = vector.shape_cast %32 : vector<1x1x32xf32> to vector<1x32xf32>
    %c6_26 = arith.constant 6 : index
    %c0_27 = arith.constant 0 : index
    %34 = vector.load %arg24[%c6_26, %c0_27] : memref<16x32xf32, #tpu.memory_space<vmem>>, vector<1x32xf32>
    tpu.vector_store %arg24[%c6_26, %c0_27], %33 {strides = array<i32>} : memref<16x32xf32, #tpu.memory_space<vmem>>, vector<1x32xf32>,
    %c7 = arith.constant 7 : index
    %35 = memref.load %arg1[%c7] : memref<16xi32, #tpu.memory_space<smem>>
    %36 = arith.index_cast %35 : i32 to index
    %c0_28 = arith.constant 0 : index
    %c0_29 = arith.constant 0 : index
    %37 = vector.load %arg2[%36, %c0_28, %c0_29] : memref<100x1x32xf32, #tpu.memory_space<vmem>>, vector<1x1x32xf32>
    %38 = vector.shape_cast %37 : vector<1x1x32xf32> to vector<1x32xf32>
    %c7_30 = arith.constant 7 : index
    %c0_31 = arith.constant 0 : index
    %39 = vector.load %arg24[%c7_30, %c0_31] : memref<16x32xf32, #tpu.memory_space<vmem>>, vector<1x32xf32>
    tpu.vector_store %arg24[%c7_30, %c0_31], %38 {strides = array<i32>} : memref<16x32xf32, #tpu.memory_space<vmem>>, vector<1x32xf32>,
    %c8 = arith.constant 8 : index
    %40 = memref.load %arg1[%c8] : memref<16xi32, #tpu.memory_space<smem>>
    %41 = arith.index_cast %40 : i32 to index
    %c0_32 = arith.constant 0 : index
    %c0_33 = arith.constant 0 : index
    %42 = vector.load %arg2[%41, %c0_32, %c0_33] : memref<100x1x32xf32, #tpu.memory_space<vmem>>, vector<1x1x32xf32>
    %43 = vector.shape_cast %42 : vector<1x1x32xf32> to vector<1x32xf32>
    %c8_34 = arith.constant 8 : index
    %c0_35 = arith.constant 0 : index
    %44 = vector.load %arg24[%c8_34, %c0_35] : memref<16x32xf32, #tpu.memory_space<vmem>>, vector<1x32xf32>
    tpu.vector_store %arg24[%c8_34, %c0_35], %43 {strides = array<i32>} : memref<16x32xf32, #tpu.memory_space<vmem>>, vector<1x32xf32>,
    %c9 = arith.constant 9 : index
    %45 = memref.load %arg1[%c9] : memref<16xi32, #tpu.memory_space<smem>>
    %46 = arith.index_cast %45 : i32 to index
    %c0_36 = arith.constant 0 : index
    %c0_37 = arith.constant 0 : index
    %47 = vector.load %arg2[%46, %c0_36, %c0_37] : memref<100x1x32xf32, #tpu.memory_space<vmem>>, vector<1x1x32xf32>
    %48 = vector.shape_cast %47 : vector<1x1x32xf32> to vector<1x32xf32>
    %c9_38 = arith.constant 9 : index
    %c0_39 = arith.constant 0 : index
    %49 = vector.load %arg24[%c9_38, %c0_39] : memref<16x32xf32, #tpu.memory_space<vmem>>, vector<1x32xf32>
    tpu.vector_store %arg24[%c9_38, %c0_39], %48 {strides = array<i32>} : memref<16x32xf32, #tpu.memory_space<vmem>>, vector<1x32xf32>,
    %c10 = arith.constant 10 : index
    %50 = memref.load %arg1[%c10] : memref<16xi32, #tpu.memory_space<smem>>
    %51 = arith.index_cast %50 : i32 to index
    %c0_40 = arith.constant 0 : index
    %c0_41 = arith.constant 0 : index
    %52 = vector.load %arg2[%51, %c0_40, %c0_41] : memref<100x1x32xf32, #tpu.memory_space<vmem>>, vector<1x1x32xf32>
    %53 = vector.shape_cast %52 : vector<1x1x32xf32> to vector<1x32xf32>
    %c10_42 = arith.constant 10 : index
    %c0_43 = arith.constant 0 : index
    %54 = vector.load %arg24[%c10_42, %c0_43] : memref<16x32xf32, #tpu.memory_space<vmem>>, vector<1x32xf32>
    tpu.vector_store %arg24[%c10_42, %c0_43], %53 {strides = array<i32>} : memref<16x32xf32, #tpu.memory_space<vmem>>, vector<1x32xf32>,
    %c11 = arith.constant 11 : index
    %55 = memref.load %arg1[%c11] : memref<16xi32, #tpu.memory_space<smem>>
    %56 = arith.index_cast %55 : i32 to index
    %c0_44 = arith.constant 0 : index
    %c0_45 = arith.constant 0 : index
    %57 = vector.load %arg2[%56, %c0_44, %c0_45] : memref<100x1x32xf32, #tpu.memory_space<vmem>>, vector<1x1x32xf32>
    %58 = vector.shape_cast %57 : vector<1x1x32xf32> to vector<1x32xf32>
    %c11_46 = arith.constant 11 : index
    %c0_47 = arith.constant 0 : index
    %59 = vector.load %arg24[%c11_46, %c0_47] : memref<16x32xf32, #tpu.memory_space<vmem>>, vector<1x32xf32>
    tpu.vector_store %arg24[%c11_46, %c0_47], %58 {strides = array<i32>} : memref<16x32xf32, #tpu.memory_space<vmem>>, vector<1x32xf32>,
    %c12 = arith.constant 12 : index
    %60 = memref.load %arg1[%c12] : memref<16xi32, #tpu.memory_space<smem>>
    %61 = arith.index_cast %60 : i32 to index
    %c0_48 = arith.constant 0 : index
    %c0_49 = arith.constant 0 : index
    %62 = vector.load %arg2[%61, %c0_48, %c0_49] : memref<100x1x32xf32, #tpu.memory_space<vmem>>, vector<1x1x32xf32>
    %63 = vector.shape_cast %62 : vector<1x1x32xf32> to vector<1x32xf32>
    %c12_50 = arith.constant 12 : index
    %c0_51 = arith.constant 0 : index
    %64 = vector.load %arg24[%c12_50, %c0_51] : memref<16x32xf32, #tpu.memory_space<vmem>>, vector<1x32xf32>
    tpu.vector_store %arg24[%c12_50, %c0_51], %63 {strides = array<i32>} : memref<16x32xf32, #tpu.memory_space<vmem>>, vector<1x32xf32>,
    %c13 = arith.constant 13 : index
    %65 = memref.load %arg1[%c13] : memref<16xi32, #tpu.memory_space<smem>>
    %66 = arith.index_cast %65 : i32 to index
    %c0_52 = arith.constant 0 : index
    %c0_53 = arith.constant 0 : index
    %67 = vector.load %arg2[%66, %c0_52, %c0_53] : memref<100x1x32xf32, #tpu.memory_space<vmem>>, vector<1x1x32xf32>
    %68 = vector.shape_cast %67 : vector<1x1x32xf32> to vector<1x32xf32>
    %c13_54 = arith.constant 13 : index
    %c0_55 = arith.constant 0 : index
    %69 = vector.load %arg24[%c13_54, %c0_55] : memref<16x32xf32, #tpu.memory_space<vmem>>, vector<1x32xf32>
    tpu.vector_store %arg24[%c13_54, %c0_55], %68 {strides = array<i32>} : memref<16x32xf32, #tpu.memory_space<vmem>>, vector<1x32xf32>,
    %c14 = arith.constant 14 : index
    %70 = memref.load %arg1[%c14] : memref<16xi32, #tpu.memory_space<smem>>
    %71 = arith.index_cast %70 : i32 to index
    %c0_56 = arith.constant 0 : index
    %c0_57 = arith.constant 0 : index
    %72 = vector.load %arg2[%71, %c0_56, %c0_57] : memref<100x1x32xf32, #tpu.memory_space<vmem>>, vector<1x1x32xf32>
    %73 = vector.shape_cast %72 : vector<1x1x32xf32> to vector<1x32xf32>
    %c14_58 = arith.constant 14 : index
    %c0_59 = arith.constant 0 : index
    %74 = vector.load %arg24[%c14_58, %c0_59] : memref<16x32xf32, #tpu.memory_space<vmem>>, vector<1x32xf32>
    tpu.vector_store %arg24[%c14_58, %c0_59], %73 {strides = array<i32>} : memref<16x32xf32, #tpu.memory_space<vmem>>, vector<1x32xf32>,
    %c15 = arith.constant 15 : index
    %75 = memref.load %arg1[%c15] : memref<16xi32, #tpu.memory_space<smem>>
    %76 = arith.index_cast %75 : i32 to index
    %c0_60 = arith.constant 0 : index
    %c0_61 = arith.constant 0 : index
    %77 = vector.load %arg2[%76, %c0_60, %c0_61] : memref<100x1x32xf32, #tpu.memory_space<vmem>>, vector<1x1x32xf32>
    %78 = vector.shape_cast %77 : vector<1x1x32xf32> to vector<1x32xf32>
    %c15_62 = arith.constant 15 : index
    %c0_63 = arith.constant 0 : index
    %79 = vector.load %arg24[%c15_62, %c0_63] : memref<16x32xf32, #tpu.memory_space<vmem>>, vector<1x32xf32>
    tpu.vector_store %arg24[%c15_62, %c0_63], %78 {strides = array<i32>} : memref<16x32xf32, #tpu.memory_space<vmem>>, vector<1x32xf32>,
    %c0_64 = arith.constant 0 : index
    %c0_65 = arith.constant 0 : index
    %80 = vector.load %arg24[%c0_64, %c0_65] : memref<16x32xf32, #tpu.memory_space<vmem>>, vector<16x32xf32>
    %c0_66 = arith.constant 0 : index
    %c0_67 = arith.constant 0 : index
    %81 = vector.load %arg3[%c0_66, %c0_67] : memref<16x32xf32, #tpu.memory_space<vmem>>, vector<16x32xf32>
    %82 = arith.addf %80, %81 : vector<16x32xf32>
    %c0_68 = arith.constant 0 : index
    %c0_69 = arith.constant 0 : index
    %83 = vector.load %arg5[%c0_68, %c0_69] : memref<1x32xf32, #tpu.memory_space<vmem>>, vector<1x32xf32>
    %c0_70 = arith.constant 0 : index
    %c0_71 = arith.constant 0 : index
    %84 = vector.load %arg6[%c0_70, %c0_71] : memref<1x32xf32, #tpu.memory_space<vmem>>, vector<1x32xf32>
    %cst = arith.constant dense<0.000000e+00> : vector<16xf32>
    %85 = vector.multi_reduction <add>, %82, %cst [1] : vector<16x32xf32> to vector<16xf32>
    %86 = vector.shape_cast %85 : vector<16xf32> to vector<16x1xf32>
    %cst_72 = arith.constant 3.200000e+01 : f32
    %87 = vector.broadcast %cst_72 : f32 to vector<16x1xf32>
    %88 = arith.divf %86, %87 : vector<16x1xf32>
    %89 = vector.broadcast %88 : vector<16x1xf32> to vector<16x32xf32>
    %90 = arith.subf %82, %89 : vector<16x32xf32>
    %91 = vector.broadcast %88 : vector<16x1xf32> to vector<16x32xf32>
    %92 = arith.subf %82, %91 : vector<16x32xf32>
    %93 = arith.mulf %90, %92 : vector<16x32xf32>
    %cst_73 = arith.constant dense<0.000000e+00> : vector<16xf32>
    %94 = vector.multi_reduction <add>, %93, %cst_73 [1] : vector<16x32xf32> to vector<16xf32>
    %95 = vector.shape_cast %94 : vector<16xf32> to vector<16x1xf32>
    %cst_74 = arith.constant 3.200000e+01 : f32
    %96 = vector.broadcast %cst_74 : f32 to vector<16x1xf32>
    %97 = arith.divf %95, %96 : vector<16x1xf32>
    %98 = vector.broadcast %88 : vector<16x1xf32> to vector<16x32xf32>
    %99 = arith.subf %82, %98 : vector<16x32xf32>
    %cst_75 = arith.constant 9.99999996E-13 : f32
    %100 = vector.broadcast %cst_75 : f32 to vector<16x1xf32>
    %101 = arith.addf %97, %100 : vector<16x1xf32>
    %102 = math.rsqrt %101 : vector<16x1xf32>
    %103 = vector.broadcast %102 : vector<16x1xf32> to vector<16x32xf32>
    %104 = arith.mulf %99, %103 : vector<16x32xf32>
    %105 = vector.broadcast %83 : vector<1x32xf32> to vector<16x32xf32>
    %106 = arith.mulf %104, %105 : vector<16x32xf32>
    %107 = vector.broadcast %84 : vector<1x32xf32> to vector<16x32xf32>
    %108 = arith.addf %106, %107 : vector<16x32xf32>
    %c0_76 = arith.constant 0 : index
    %c0_77 = arith.constant 0 : index
    %c0_78 = arith.constant 0 : index
    %109 = vector.load %arg4[%c0_76, %c0_77, %c0_78] : memref<2x1x8xf32, #tpu.memory_space<vmem>>, vector<1x1x8xf32>
    %110 = vector.shape_cast %109 : vector<1x1x8xf32> to vector<1x8xf32>
    %c1_79 = arith.constant 1 : index
    %c0_80 = arith.constant 0 : index
    %c0_81 = arith.constant 0 : index
    %111 = vector.load %arg4[%c1_79, %c0_80, %c0_81] : memref<2x1x8xf32, #tpu.memory_space<vmem>>, vector<1x1x8xf32>
    %112 = vector.shape_cast %111 : vector<1x1x8xf32> to vector<1x8xf32>
    %c0_82 = arith.constant 0 : index
    %c0_83 = arith.constant 0 : index
    %c0_84 = arith.constant 0 : index
    %c0_85 = arith.constant 0 : index
    %113 = vector.load %arg7[%c0_82, %c0_83, %c0_84, %c0_85] : memref<2x2x32x16xf32, #tpu.memory_space<vmem>>, vector<1x1x32x16xf32>
    %114 = vector.shape_cast %113 : vector<1x1x32x16xf32> to vector<32x16xf32>
    %cst_86 = arith.constant dense<0.000000e+00> : vector<16x16xf32>
    %115 = tpu.matmul %108, %114, %cst_86 {dimension_numbers = #tpu.dot_dimension_numbers<[1], [0], [0], [1], [0, 0, 1, 1], [], []>} : vector<16x32xf32>, vector<32x16xf32>, vector<16x16xf32> -> vector<16x16xf32>
    %c0_87 = arith.constant 0 : index
    %c0_88 = arith.constant 0 : index
    %c0_89 = arith.constant 0 : index
    %c0_90 = arith.constant 0 : index
    %116 = vector.load %arg8[%c0_87, %c0_88, %c0_89, %c0_90] : memref<2x2x1x16xf32, #tpu.memory_space<vmem>>, vector<1x1x1x16xf32>
    %117 = vector.shape_cast %116 : vector<1x1x1x16xf32> to vector<1x16xf32>
    %118 = vector.broadcast %117 : vector<1x16xf32> to vector<16x16xf32>
    %119 = arith.addf %115, %118 : vector<16x16xf32>
    %c0_91 = arith.constant 0 : index
    %c0_92 = arith.constant 0 : index
    %c0_93 = arith.constant 0 : index
    %c0_94 = arith.constant 0 : index
    %120 = vector.load %arg9[%c0_91, %c0_92, %c0_93, %c0_94] : memref<2x2x32x16xf32, #tpu.memory_space<vmem>>, vector<1x1x32x16xf32>
    %121 = vector.shape_cast %120 : vector<1x1x32x16xf32> to vector<32x16xf32>
    %cst_95 = arith.constant dense<0.000000e+00> : vector<16x16xf32>
    %122 = tpu.matmul %108, %121, %cst_95 {dimension_numbers = #tpu.dot_dimension_numbers<[1], [0], [0], [1], [0, 0, 1, 1], [], []>} : vector<16x32xf32>, vector<32x16xf32>, vector<16x16xf32> -> vector<16x16xf32>
    %c0_96 = arith.constant 0 : index
    %c0_97 = arith.constant 0 : index
    %c0_98 = arith.constant 0 : index
    %c0_99 = arith.constant 0 : index
    %123 = vector.load %arg10[%c0_96, %c0_97, %c0_98, %c0_99] : memref<2x2x1x16xf32, #tpu.memory_space<vmem>>, vector<1x1x1x16xf32>
    %124 = vector.shape_cast %123 : vector<1x1x1x16xf32> to vector<1x16xf32>
    %125 = vector.broadcast %124 : vector<1x16xf32> to vector<16x16xf32>
    %126 = arith.addf %122, %125 : vector<16x16xf32>
    %c0_100 = arith.constant 0 : index
    %c0_101 = arith.constant 0 : index
    %c0_102 = arith.constant 0 : index
    %c0_103 = arith.constant 0 : index
    %127 = vector.load %arg11[%c0_100, %c0_101, %c0_102, %c0_103] : memref<2x2x32x16xf32, #tpu.memory_space<vmem>>, vector<1x1x32x16xf32>
    %128 = vector.shape_cast %127 : vector<1x1x32x16xf32> to vector<32x16xf32>
    %cst_104 = arith.constant dense<0.000000e+00> : vector<16x16xf32>
    %129 = tpu.matmul %108, %128, %cst_104 {dimension_numbers = #tpu.dot_dimension_numbers<[1], [0], [0], [1], [0, 0, 1, 1], [], []>} : vector<16x32xf32>, vector<32x16xf32>, vector<16x16xf32> -> vector<16x16xf32>
    %c0_105 = arith.constant 0 : index
    %c0_106 = arith.constant 0 : index
    %c0_107 = arith.constant 0 : index
    %c0_108 = arith.constant 0 : index
    %130 = vector.load %arg12[%c0_105, %c0_106, %c0_107, %c0_108] : memref<2x2x1x16xf32, #tpu.memory_space<vmem>>, vector<1x1x1x16xf32>
    %131 = vector.shape_cast %130 : vector<1x1x1x16xf32> to vector<1x16xf32>
    %132 = vector.broadcast %131 : vector<1x16xf32> to vector<16x16xf32>
    %133 = arith.addf %129, %132 : vector<16x16xf32>
    %134 = vector.extract_strided_slice %119 {offsets = [0, 0], sizes = [8, 16], strides = [1, 1]} : vector<16x16xf32> to vector<8x16xf32>
    %135 = vector.extract_strided_slice %126 {offsets = [0, 0], sizes = [8, 16], strides = [1, 1]} : vector<16x16xf32> to vector<8x16xf32>
    %136 = vector.extract_strided_slice %133 {offsets = [0, 0], sizes = [8, 16], strides = [1, 1]} : vector<16x16xf32> to vector<8x16xf32>
    %cst_109 = arith.constant dense<0.000000e+00> : vector<8x8xf32>
    %137 = tpu.matmul %134, %135, %cst_109 {dimension_numbers = #tpu.dot_dimension_numbers<[1], [1], [0], [0], [0, 0, 1, 0], [], []>} : vector<8x16xf32>, vector<8x16xf32>, vector<8x8xf32> -> vector<8x8xf32>
    %cst_110 = arith.constant 2.500000e-01 : f32
    %138 = vector.broadcast %cst_110 : f32 to vector<8x8xf32>
    %139 = arith.mulf %137, %138 : vector<8x8xf32>
    %140 = vector.broadcast %110 : vector<1x8xf32> to vector<8x8xf32>
    %141 = arith.addf %139, %140 : vector<8x8xf32>
    %cst_111 = arith.constant dense<0xFF800000> : vector<8xf32>
    %142 = vector.multi_reduction <maximumf>, %141, %cst_111 [1] : vector<8x8xf32> to vector<8xf32>
    %143 = vector.shape_cast %142 : vector<8xf32> to vector<8x1xf32>
    %144 = vector.broadcast %143 : vector<8x1xf32> to vector<8x8xf32>
    %145 = arith.subf %141, %144 : vector<8x8xf32>
    %146 = math.exp %145 : vector<8x8xf32>
    %cst_112 = arith.constant dense<0.000000e+00> : vector<8xf32>
    %147 = vector.multi_reduction <add>, %146, %cst_112 [1] : vector<8x8xf32> to vector<8xf32>
    %148 = vector.shape_cast %147 : vector<8xf32> to vector<8x1xf32>
    %149 = tpu.reciprocal %148 {approx = true} : vector<8x1xf32> -> vector<8x1xf32>
    %150 = vector.broadcast %149 : vector<8x1xf32> to vector<8x8xf32>
    %151 = arith.mulf %146, %150 : vector<8x8xf32>
    %cst_113 = arith.constant dense<0.000000e+00> : vector<8x16xf32>
    %152 = tpu.matmul %151, %136, %cst_113 {dimension_numbers = #tpu.dot_dimension_numbers<[1], [0], [0], [1], [0, 0, 1, 1], [], []>} : vector<8x8xf32>, vector<8x16xf32>, vector<8x16xf32> -> vector<8x16xf32>
    %153 = vector.extract_strided_slice %119 {offsets = [8, 0], sizes = [8, 16], strides = [1, 1]} : vector<16x16xf32> to vector<8x16xf32>
    %154 = vector.extract_strided_slice %126 {offsets = [8, 0], sizes = [8, 16], strides = [1, 1]} : vector<16x16xf32> to vector<8x16xf32>
    %155 = vector.extract_strided_slice %133 {offsets = [8, 0], sizes = [8, 16], strides = [1, 1]} : vector<16x16xf32> to vector<8x16xf32>
    %cst_114 = arith.constant dense<0.000000e+00> : vector<8x8xf32>
    %156 = tpu.matmul %153, %154, %cst_114 {dimension_numbers = #tpu.dot_dimension_numbers<[1], [1], [0], [0], [0, 0, 1, 0], [], []>} : vector<8x16xf32>, vector<8x16xf32>, vector<8x8xf32> -> vector<8x8xf32>
    %cst_115 = arith.constant 2.500000e-01 : f32
    %157 = vector.broadcast %cst_115 : f32 to vector<8x8xf32>
    %158 = arith.mulf %156, %157 : vector<8x8xf32>
    %159 = vector.broadcast %112 : vector<1x8xf32> to vector<8x8xf32>
    %160 = arith.addf %158, %159 : vector<8x8xf32>
    %cst_116 = arith.constant dense<0xFF800000> : vector<8xf32>
    %161 = vector.multi_reduction <maximumf>, %160, %cst_116 [1] : vector<8x8xf32> to vector<8xf32>
    %162 = vector.shape_cast %161 : vector<8xf32> to vector<8x1xf32>
    %163 = vector.broadcast %162 : vector<8x1xf32> to vector<8x8xf32>
    %164 = arith.subf %160, %163 : vector<8x8xf32>
    %165 = math.exp %164 : vector<8x8xf32>
    %cst_117 = arith.constant dense<0.000000e+00> : vector<8xf32>
    %166 = vector.multi_reduction <add>, %165, %cst_117 [1] : vector<8x8xf32> to vector<8xf32>
    %167 = vector.shape_cast %166 : vector<8xf32> to vector<8x1xf32>
    %168 = tpu.reciprocal %167 {approx = true} : vector<8x1xf32> -> vector<8x1xf32>
    %169 = vector.broadcast %168 : vector<8x1xf32> to vector<8x8xf32>
    %170 = arith.mulf %165, %169 : vector<8x8xf32>
    %cst_118 = arith.constant dense<0.000000e+00> : vector<8x16xf32>
    %171 = tpu.matmul %170, %155, %cst_118 {dimension_numbers = #tpu.dot_dimension_numbers<[1], [0], [0], [1], [0, 0, 1, 1], [], []>} : vector<8x8xf32>, vector<8x16xf32>, vector<8x16xf32> -> vector<8x16xf32>
    %172 = tpu.concatenate %152, %171 in 0 : vector<8x16xf32>, vector<8x16xf32> -> vector<16x16xf32>
    %c0_119 = arith.constant 0 : index
    %c0_120 = arith.constant 0 : index
    %c0_121 = arith.constant 0 : index
    %c0_122 = arith.constant 0 : index
    %173 = vector.load %arg13[%c0_119, %c0_120, %c0_121, %c0_122] : memref<2x2x16x32xf32, #tpu.memory_space<vmem>>, vector<1x1x16x32xf32>
    %174 = vector.shape_cast %173 : vector<1x1x16x32xf32> to vector<16x32xf32>
    %cst_123 = arith.constant dense<0.000000e+00> : vector<16x32xf32>
    %175 = tpu.matmul %172, %174, %cst_123 {dimension_numbers = #tpu.dot_dimension_numbers<[1], [0], [0], [1], [0, 0, 1, 1], [], []>} : vector<16x16xf32>, vector<16x32xf32>, vector<16x32xf32> -> vector<16x32xf32>
    %c0_124 = arith.constant 0 : index
    %c1_125 = arith.constant 1 : index
    %c0_126 = arith.constant 0 : index
    %c0_127 = arith.constant 0 : index
    %176 = vector.load %arg7[%c0_124, %c1_125, %c0_126, %c0_127] : memref<2x2x32x16xf32, #tpu.memory_space<vmem>>, vector<1x1x32x16xf32>
    %177 = vector.shape_cast %176 : vector<1x1x32x16xf32> to vector<32x16xf32>
    %cst_128 = arith.constant dense<0.000000e+00> : vector<16x16xf32>
    %178 = tpu.matmul %108, %177, %cst_128 {dimension_numbers = #tpu.dot_dimension_numbers<[1], [0], [0], [1], [0, 0, 1, 1], [], []>} : vector<16x32xf32>, vector<32x16xf32>, vector<16x16xf32> -> vector<16x16xf32>
    %c0_129 = arith.constant 0 : index
    %c1_130 = arith.constant 1 : index
    %c0_131 = arith.constant 0 : index
    %c0_132 = arith.constant 0 : index
    %179 = vector.load %arg8[%c0_129, %c1_130, %c0_131, %c0_132] : memref<2x2x1x16xf32, #tpu.memory_space<vmem>>, vector<1x1x1x16xf32>
    %180 = vector.shape_cast %179 : vector<1x1x1x16xf32> to vector<1x16xf32>
    %181 = vector.broadcast %180 : vector<1x16xf32> to vector<16x16xf32>
    %182 = arith.addf %178, %181 : vector<16x16xf32>
    %c0_133 = arith.constant 0 : index
    %c1_134 = arith.constant 1 : index
    %c0_135 = arith.constant 0 : index
    %c0_136 = arith.constant 0 : index
    %183 = vector.load %arg9[%c0_133, %c1_134, %c0_135, %c0_136] : memref<2x2x32x16xf32, #tpu.memory_space<vmem>>, vector<1x1x32x16xf32>
    %184 = vector.shape_cast %183 : vector<1x1x32x16xf32> to vector<32x16xf32>
    %cst_137 = arith.constant dense<0.000000e+00> : vector<16x16xf32>
    %185 = tpu.matmul %108, %184, %cst_137 {dimension_numbers = #tpu.dot_dimension_numbers<[1], [0], [0], [1], [0, 0, 1, 1], [], []>} : vector<16x32xf32>, vector<32x16xf32>, vector<16x16xf32> -> vector<16x16xf32>
    %c0_138 = arith.constant 0 : index
    %c1_139 = arith.constant 1 : index
    %c0_140 = arith.constant 0 : index
    %c0_141 = arith.constant 0 : index
    %186 = vector.load %arg10[%c0_138, %c1_139, %c0_140, %c0_141] : memref<2x2x1x16xf32, #tpu.memory_space<vmem>>, vector<1x1x1x16xf32>
    %187 = vector.shape_cast %186 : vector<1x1x1x16xf32> to vector<1x16xf32>
    %188 = vector.broadcast %187 : vector<1x16xf32> to vector<16x16xf32>
    %189 = arith.addf %185, %188 : vector<16x16xf32>
    %c0_142 = arith.constant 0 : index
    %c1_143 = arith.constant 1 : index
    %c0_144 = arith.constant 0 : index
    %c0_145 = arith.constant 0 : index
    %190 = vector.load %arg11[%c0_142, %c1_143, %c0_144, %c0_145] : memref<2x2x32x16xf32, #tpu.memory_space<vmem>>, vector<1x1x32x16xf32>
    %191 = vector.shape_cast %190 : vector<1x1x32x16xf32> to vector<32x16xf32>
    %cst_146 = arith.constant dense<0.000000e+00> : vector<16x16xf32>
    %192 = tpu.matmul %108, %191, %cst_146 {dimension_numbers = #tpu.dot_dimension_numbers<[1], [0], [0], [1], [0, 0, 1, 1], [], []>} : vector<16x32xf32>, vector<32x16xf32>, vector<16x16xf32> -> vector<16x16xf32>
    %c0_147 = arith.constant 0 : index
    %c1_148 = arith.constant 1 : index
    %c0_149 = arith.constant 0 : index
    %c0_150 = arith.constant 0 : index
    %193 = vector.load %arg12[%c0_147, %c1_148, %c0_149, %c0_150] : memref<2x2x1x16xf32, #tpu.memory_space<vmem>>, vector<1x1x1x16xf32>
    %194 = vector.shape_cast %193 : vector<1x1x1x16xf32> to vector<1x16xf32>
    %195 = vector.broadcast %194 : vector<1x16xf32> to vector<16x16xf32>
    %196 = arith.addf %192, %195 : vector<16x16xf32>
    %197 = vector.extract_strided_slice %182 {offsets = [0, 0], sizes = [8, 16], strides = [1, 1]} : vector<16x16xf32> to vector<8x16xf32>
    %198 = vector.extract_strided_slice %189 {offsets = [0, 0], sizes = [8, 16], strides = [1, 1]} : vector<16x16xf32> to vector<8x16xf32>
    %199 = vector.extract_strided_slice %196 {offsets = [0, 0], sizes = [8, 16], strides = [1, 1]} : vector<16x16xf32> to vector<8x16xf32>
    %cst_151 = arith.constant dense<0.000000e+00> : vector<8x8xf32>
    %200 = tpu.matmul %197, %198, %cst_151 {dimension_numbers = #tpu.dot_dimension_numbers<[1], [1], [0], [0], [0, 0, 1, 0], [], []>} : vector<8x16xf32>, vector<8x16xf32>, vector<8x8xf32> -> vector<8x8xf32>
    %cst_152 = arith.constant 2.500000e-01 : f32
    %201 = vector.broadcast %cst_152 : f32 to vector<8x8xf32>
    %202 = arith.mulf %200, %201 : vector<8x8xf32>
    %203 = vector.broadcast %110 : vector<1x8xf32> to vector<8x8xf32>
    %204 = arith.addf %202, %203 : vector<8x8xf32>
    %cst_153 = arith.constant dense<0xFF800000> : vector<8xf32>
    %205 = vector.multi_reduction <maximumf>, %204, %cst_153 [1] : vector<8x8xf32> to vector<8xf32>
    %206 = vector.shape_cast %205 : vector<8xf32> to vector<8x1xf32>
    %207 = vector.broadcast %206 : vector<8x1xf32> to vector<8x8xf32>
    %208 = arith.subf %204, %207 : vector<8x8xf32>
    %209 = math.exp %208 : vector<8x8xf32>
    %cst_154 = arith.constant dense<0.000000e+00> : vector<8xf32>
    %210 = vector.multi_reduction <add>, %209, %cst_154 [1] : vector<8x8xf32> to vector<8xf32>
    %211 = vector.shape_cast %210 : vector<8xf32> to vector<8x1xf32>
    %212 = tpu.reciprocal %211 {approx = true} : vector<8x1xf32> -> vector<8x1xf32>
    %213 = vector.broadcast %212 : vector<8x1xf32> to vector<8x8xf32>
    %214 = arith.mulf %209, %213 : vector<8x8xf32>
    %cst_155 = arith.constant dense<0.000000e+00> : vector<8x16xf32>
    %215 = tpu.matmul %214, %199, %cst_155 {dimension_numbers = #tpu.dot_dimension_numbers<[1], [0], [0], [1], [0, 0, 1, 1], [], []>} : vector<8x8xf32>, vector<8x16xf32>, vector<8x16xf32> -> vector<8x16xf32>
    %216 = vector.extract_strided_slice %182 {offsets = [8, 0], sizes = [8, 16], strides = [1, 1]} : vector<16x16xf32> to vector<8x16xf32>
    %217 = vector.extract_strided_slice %189 {offsets = [8, 0], sizes = [8, 16], strides = [1, 1]} : vector<16x16xf32> to vector<8x16xf32>
    %218 = vector.extract_strided_slice %196 {offsets = [8, 0], sizes = [8, 16], strides = [1, 1]} : vector<16x16xf32> to vector<8x16xf32>
    %cst_156 = arith.constant dense<0.000000e+00> : vector<8x8xf32>
    %219 = tpu.matmul %216, %217, %cst_156 {dimension_numbers = #tpu.dot_dimension_numbers<[1], [1], [0], [0], [0, 0, 1, 0], [], []>} : vector<8x16xf32>, vector<8x16xf32>, vector<8x8xf32> -> vector<8x8xf32>
    %cst_157 = arith.constant 2.500000e-01 : f32
    %220 = vector.broadcast %cst_157 : f32 to vector<8x8xf32>
    %221 = arith.mulf %219, %220 : vector<8x8xf32>
    %222 = vector.broadcast %112 : vector<1x8xf32> to vector<8x8xf32>
    %223 = arith.addf %221, %222 : vector<8x8xf32>
    %cst_158 = arith.constant dense<0xFF800000> : vector<8xf32>
    %224 = vector.multi_reduction <maximumf>, %223, %cst_158 [1] : vector<8x8xf32> to vector<8xf32>
    %225 = vector.shape_cast %224 : vector<8xf32> to vector<8x1xf32>
    %226 = vector.broadcast %225 : vector<8x1xf32> to vector<8x8xf32>
    %227 = arith.subf %223, %226 : vector<8x8xf32>
    %228 = math.exp %227 : vector<8x8xf32>
    %cst_159 = arith.constant dense<0.000000e+00> : vector<8xf32>
    %229 = vector.multi_reduction <add>, %228, %cst_159 [1] : vector<8x8xf32> to vector<8xf32>
    %230 = vector.shape_cast %229 : vector<8xf32> to vector<8x1xf32>
    %231 = tpu.reciprocal %230 {approx = true} : vector<8x1xf32> -> vector<8x1xf32>
    %232 = vector.broadcast %231 : vector<8x1xf32> to vector<8x8xf32>
    %233 = arith.mulf %228, %232 : vector<8x8xf32>
    %cst_160 = arith.constant dense<0.000000e+00> : vector<8x16xf32>
    %234 = tpu.matmul %233, %218, %cst_160 {dimension_numbers = #tpu.dot_dimension_numbers<[1], [0], [0], [1], [0, 0, 1, 1], [], []>} : vector<8x8xf32>, vector<8x16xf32>, vector<8x16xf32> -> vector<8x16xf32>
    %235 = tpu.concatenate %215, %234 in 0 : vector<8x16xf32>, vector<8x16xf32> -> vector<16x16xf32>
    %c0_161 = arith.constant 0 : index
    %c1_162 = arith.constant 1 : index
    %c0_163 = arith.constant 0 : index
    %c0_164 = arith.constant 0 : index
    %236 = vector.load %arg13[%c0_161, %c1_162, %c0_163, %c0_164] : memref<2x2x16x32xf32, #tpu.memory_space<vmem>>, vector<1x1x16x32xf32>
    %237 = vector.shape_cast %236 : vector<1x1x16x32xf32> to vector<16x32xf32>
    %cst_165 = arith.constant dense<0.000000e+00> : vector<16x32xf32>
    %238 = tpu.matmul %235, %237, %cst_165 {dimension_numbers = #tpu.dot_dimension_numbers<[1], [0], [0], [1], [0, 0, 1, 1], [], []>} : vector<16x16xf32>, vector<16x32xf32>, vector<16x32xf32> -> vector<16x32xf32>
    %239 = arith.addf %175, %238 : vector<16x32xf32>
    %c0_166 = arith.constant 0 : index
    %c0_167 = arith.constant 0 : index
    %c0_168 = arith.constant 0 : index
    %240 = vector.load %arg14[%c0_166, %c0_167, %c0_168] : memref<2x1x32xf32, #tpu.memory_space<vmem>>, vector<1x1x32xf32>
    %241 = vector.shape_cast %240 : vector<1x1x32xf32> to vector<1x32xf32>
    %242 = vector.broadcast %241 : vector<1x32xf32> to vector<16x32xf32>
    %243 = arith.addf %239, %242 : vector<16x32xf32>
    %244 = arith.addf %108, %243 : vector<16x32xf32>
    %c0_169 = arith.constant 0 : index
    %c0_170 = arith.constant 0 : index
    %c0_171 = arith.constant 0 : index
    %245 = vector.load %arg15[%c0_169, %c0_170, %c0_171] : memref<2x1x32xf32, #tpu.memory_space<vmem>>, vector<1x1x32xf32>
    %246 = vector.shape_cast %245 : vector<1x1x32xf32> to vector<1x32xf32>
    %c0_172 = arith.constant 0 : index
    %c0_173 = arith.constant 0 : index
    %c0_174 = arith.constant 0 : index
    %247 = vector.load %arg16[%c0_172, %c0_173, %c0_174] : memref<2x1x32xf32, #tpu.memory_space<vmem>>, vector<1x1x32xf32>
    %248 = vector.shape_cast %247 : vector<1x1x32xf32> to vector<1x32xf32>
    %cst_175 = arith.constant dense<0.000000e+00> : vector<16xf32>
    %249 = vector.multi_reduction <add>, %244, %cst_175 [1] : vector<16x32xf32> to vector<16xf32>
    %250 = vector.shape_cast %249 : vector<16xf32> to vector<16x1xf32>
    %cst_176 = arith.constant 3.200000e+01 : f32
    %251 = vector.broadcast %cst_176 : f32 to vector<16x1xf32>
    %252 = arith.divf %250, %251 : vector<16x1xf32>
    %253 = vector.broadcast %252 : vector<16x1xf32> to vector<16x32xf32>
    %254 = arith.subf %244, %253 : vector<16x32xf32>
    %255 = vector.broadcast %252 : vector<16x1xf32> to vector<16x32xf32>
    %256 = arith.subf %244, %255 : vector<16x32xf32>
    %257 = arith.mulf %254, %256 : vector<16x32xf32>
    %cst_177 = arith.constant dense<0.000000e+00> : vector<16xf32>
    %258 = vector.multi_reduction <add>, %257, %cst_177 [1] : vector<16x32xf32> to vector<16xf32>
    %259 = vector.shape_cast %258 : vector<16xf32> to vector<16x1xf32>
    %cst_178 = arith.constant 3.200000e+01 : f32
    %260 = vector.broadcast %cst_178 : f32 to vector<16x1xf32>
    %261 = arith.divf %259, %260 : vector<16x1xf32>
    %262 = vector.broadcast %252 : vector<16x1xf32> to vector<16x32xf32>
    %263 = arith.subf %244, %262 : vector<16x32xf32>
    %cst_179 = arith.constant 9.99999996E-13 : f32
    %264 = vector.broadcast %cst_179 : f32 to vector<16x1xf32>
    %265 = arith.addf %261, %264 : vector<16x1xf32>
    %266 = math.rsqrt %265 : vector<16x1xf32>
    %267 = vector.broadcast %266 : vector<16x1xf32> to vector<16x32xf32>
    %268 = arith.mulf %263, %267 : vector<16x32xf32>
    %269 = vector.broadcast %246 : vector<1x32xf32> to vector<16x32xf32>
    %270 = arith.mulf %268, %269 : vector<16x32xf32>
    %271 = vector.broadcast %248 : vector<1x32xf32> to vector<16x32xf32>
    %272 = arith.addf %270, %271 : vector<16x32xf32>
    %c0_180 = arith.constant 0 : index
    %c0_181 = arith.constant 0 : index
    %c0_182 = arith.constant 0 : index
    %273 = vector.load %arg17[%c0_180, %c0_181, %c0_182] : memref<2x32x64xf32, #tpu.memory_space<vmem>>, vector<1x32x64xf32>
    %274 = vector.shape_cast %273 : vector<1x32x64xf32> to vector<32x64xf32>
    %cst_183 = arith.constant dense<0.000000e+00> : vector<16x64xf32>
    %275 = tpu.matmul %272, %274, %cst_183 {dimension_numbers = #tpu.dot_dimension_numbers<[1], [0], [0], [1], [0, 0, 1, 1], [], []>} : vector<16x32xf32>, vector<32x64xf32>, vector<16x64xf32> -> vector<16x64xf32>
    %c0_184 = arith.constant 0 : index
    %c0_185 = arith.constant 0 : index
    %c0_186 = arith.constant 0 : index
    %276 = vector.load %arg18[%c0_184, %c0_185, %c0_186] : memref<2x1x64xf32, #tpu.memory_space<vmem>>, vector<1x1x64xf32>
    %277 = vector.shape_cast %276 : vector<1x1x64xf32> to vector<1x64xf32>
    %278 = vector.broadcast %277 : vector<1x64xf32> to vector<16x64xf32>
    %279 = arith.addf %275, %278 : vector<16x64xf32>
    %cst_187 = arith.constant 5.000000e-01 : f32
    %280 = vector.broadcast %cst_187 : f32 to vector<16x64xf32>
    %281 = arith.mulf %280, %279 : vector<16x64xf32>
    %cst_188 = arith.constant 4.471500e-02 : f32
    %282 = vector.broadcast %cst_188 : f32 to vector<16x64xf32>
    %283 = arith.mulf %282, %279 : vector<16x64xf32>
    %284 = arith.mulf %283, %279 : vector<16x64xf32>
    %285 = arith.mulf %284, %279 : vector<16x64xf32>
    %286 = arith.addf %279, %285 : vector<16x64xf32>
    %cst_189 = arith.constant 0.797884583 : f32
    %287 = vector.broadcast %cst_189 : f32 to vector<16x64xf32>
    %288 = arith.mulf %287, %286 : vector<16x64xf32>
    %289 = math.tanh %288 : vector<16x64xf32>
    %cst_190 = arith.constant 1.000000e+00 : f32
    %290 = vector.broadcast %cst_190 : f32 to vector<16x64xf32>
    %291 = arith.addf %290, %289 : vector<16x64xf32>
    %292 = arith.mulf %281, %291 : vector<16x64xf32>
    %c0_191 = arith.constant 0 : index
    %c0_192 = arith.constant 0 : index
    %c0_193 = arith.constant 0 : index
    %293 = vector.load %arg19[%c0_191, %c0_192, %c0_193] : memref<2x64x32xf32, #tpu.memory_space<vmem>>, vector<1x64x32xf32>
    %294 = vector.shape_cast %293 : vector<1x64x32xf32> to vector<64x32xf32>
    %cst_194 = arith.constant dense<0.000000e+00> : vector<16x32xf32>
    %295 = tpu.matmul %292, %294, %cst_194 {dimension_numbers = #tpu.dot_dimension_numbers<[1], [0], [0], [1], [0, 0, 1, 1], [], []>} : vector<16x64xf32>, vector<64x32xf32>, vector<16x32xf32> -> vector<16x32xf32>
    %c0_195 = arith.constant 0 : index
    %c0_196 = arith.constant 0 : index
    %c0_197 = arith.constant 0 : index
    %296 = vector.load %arg20[%c0_195, %c0_196, %c0_197] : memref<2x1x32xf32, #tpu.memory_space<vmem>>, vector<1x1x32xf32>
    %297 = vector.shape_cast %296 : vector<1x1x32xf32> to vector<1x32xf32>
    %298 = vector.broadcast %297 : vector<1x32xf32> to vector<16x32xf32>
    %299 = arith.addf %295, %298 : vector<16x32xf32>
    %300 = arith.addf %272, %299 : vector<16x32xf32>
    %c0_198 = arith.constant 0 : index
    %c0_199 = arith.constant 0 : index
    %c0_200 = arith.constant 0 : index
    %301 = vector.load %arg21[%c0_198, %c0_199, %c0_200] : memref<2x1x32xf32, #tpu.memory_space<vmem>>, vector<1x1x32xf32>
    %302 = vector.shape_cast %301 : vector<1x1x32xf32> to vector<1x32xf32>
    %c0_201 = arith.constant 0 : index
    %c0_202 = arith.constant 0 : index
    %c0_203 = arith.constant 0 : index
    %303 = vector.load %arg22[%c0_201, %c0_202, %c0_203] : memref<2x1x32xf32, #tpu.memory_space<vmem>>, vector<1x1x32xf32>
    %304 = vector.shape_cast %303 : vector<1x1x32xf32> to vector<1x32xf32>
    %cst_204 = arith.constant dense<0.000000e+00> : vector<16xf32>
    %305 = vector.multi_reduction <add>, %300, %cst_204 [1] : vector<16x32xf32> to vector<16xf32>
    %306 = vector.shape_cast %305 : vector<16xf32> to vector<16x1xf32>
    %cst_205 = arith.constant 3.200000e+01 : f32
    %307 = vector.broadcast %cst_205 : f32 to vector<16x1xf32>
    %308 = arith.divf %306, %307 : vector<16x1xf32>
    %309 = vector.broadcast %308 : vector<16x1xf32> to vector<16x32xf32>
    %310 = arith.subf %300, %309 : vector<16x32xf32>
    %311 = vector.broadcast %308 : vector<16x1xf32> to vector<16x32xf32>
    %312 = arith.subf %300, %311 : vector<16x32xf32>
    %313 = arith.mulf %310, %312 : vector<16x32xf32>
    %cst_206 = arith.constant dense<0.000000e+00> : vector<16xf32>
    %314 = vector.multi_reduction <add>, %313, %cst_206 [1] : vector<16x32xf32> to vector<16xf32>
    %315 = vector.shape_cast %314 : vector<16xf32> to vector<16x1xf32>
    %cst_207 = arith.constant 3.200000e+01 : f32
    %316 = vector.broadcast %cst_207 : f32 to vector<16x1xf32>
    %317 = arith.divf %315, %316 : vector<16x1xf32>
    %318 = vector.broadcast %308 : vector<16x1xf32> to vector<16x32xf32>
    %319 = arith.subf %300, %318 : vector<16x32xf32>
    %cst_208 = arith.constant 9.99999996E-13 : f32
    %320 = vector.broadcast %cst_208 : f32 to vector<16x1xf32>
    %321 = arith.addf %317, %320 : vector<16x1xf32>
    %322 = math.rsqrt %321 : vector<16x1xf32>
    %323 = vector.broadcast %322 : vector<16x1xf32> to vector<16x32xf32>
    %324 = arith.mulf %319, %323 : vector<16x32xf32>
    %325 = vector.broadcast %302 : vector<1x32xf32> to vector<16x32xf32>
    %326 = arith.mulf %324, %325 : vector<16x32xf32>
    %327 = vector.broadcast %304 : vector<1x32xf32> to vector<16x32xf32>
    %328 = arith.addf %326, %327 : vector<16x32xf32>
    %c1_209 = arith.constant 1 : index
    %c0_210 = arith.constant 0 : index
    %c0_211 = arith.constant 0 : index
    %c0_212 = arith.constant 0 : index
    %329 = vector.load %arg7[%c1_209, %c0_210, %c0_211, %c0_212] : memref<2x2x32x16xf32, #tpu.memory_space<vmem>>, vector<1x1x32x16xf32>
    %330 = vector.shape_cast %329 : vector<1x1x32x16xf32> to vector<32x16xf32>
    %cst_213 = arith.constant dense<0.000000e+00> : vector<16x16xf32>
    %331 = tpu.matmul %328, %330, %cst_213 {dimension_numbers = #tpu.dot_dimension_numbers<[1], [0], [0], [1], [0, 0, 1, 1], [], []>} : vector<16x32xf32>, vector<32x16xf32>, vector<16x16xf32> -> vector<16x16xf32>
    %c1_214 = arith.constant 1 : index
    %c0_215 = arith.constant 0 : index
    %c0_216 = arith.constant 0 : index
    %c0_217 = arith.constant 0 : index
    %332 = vector.load %arg8[%c1_214, %c0_215, %c0_216, %c0_217] : memref<2x2x1x16xf32, #tpu.memory_space<vmem>>, vector<1x1x1x16xf32>
    %333 = vector.shape_cast %332 : vector<1x1x1x16xf32> to vector<1x16xf32>
    %334 = vector.broadcast %333 : vector<1x16xf32> to vector<16x16xf32>
    %335 = arith.addf %331, %334 : vector<16x16xf32>
    %c1_218 = arith.constant 1 : index
    %c0_219 = arith.constant 0 : index
    %c0_220 = arith.constant 0 : index
    %c0_221 = arith.constant 0 : index
    %336 = vector.load %arg9[%c1_218, %c0_219, %c0_220, %c0_221] : memref<2x2x32x16xf32, #tpu.memory_space<vmem>>, vector<1x1x32x16xf32>
    %337 = vector.shape_cast %336 : vector<1x1x32x16xf32> to vector<32x16xf32>
    %cst_222 = arith.constant dense<0.000000e+00> : vector<16x16xf32>
    %338 = tpu.matmul %328, %337, %cst_222 {dimension_numbers = #tpu.dot_dimension_numbers<[1], [0], [0], [1], [0, 0, 1, 1], [], []>} : vector<16x32xf32>, vector<32x16xf32>, vector<16x16xf32> -> vector<16x16xf32>
    %c1_223 = arith.constant 1 : index
    %c0_224 = arith.constant 0 : index
    %c0_225 = arith.constant 0 : index
    %c0_226 = arith.constant 0 : index
    %339 = vector.load %arg10[%c1_223, %c0_224, %c0_225, %c0_226] : memref<2x2x1x16xf32, #tpu.memory_space<vmem>>, vector<1x1x1x16xf32>
    %340 = vector.shape_cast %339 : vector<1x1x1x16xf32> to vector<1x16xf32>
    %341 = vector.broadcast %340 : vector<1x16xf32> to vector<16x16xf32>
    %342 = arith.addf %338, %341 : vector<16x16xf32>
    %c1_227 = arith.constant 1 : index
    %c0_228 = arith.constant 0 : index
    %c0_229 = arith.constant 0 : index
    %c0_230 = arith.constant 0 : index
    %343 = vector.load %arg11[%c1_227, %c0_228, %c0_229, %c0_230] : memref<2x2x32x16xf32, #tpu.memory_space<vmem>>, vector<1x1x32x16xf32>
    %344 = vector.shape_cast %343 : vector<1x1x32x16xf32> to vector<32x16xf32>
    %cst_231 = arith.constant dense<0.000000e+00> : vector<16x16xf32>
    %345 = tpu.matmul %328, %344, %cst_231 {dimension_numbers = #tpu.dot_dimension_numbers<[1], [0], [0], [1], [0, 0, 1, 1], [], []>} : vector<16x32xf32>, vector<32x16xf32>, vector<16x16xf32> -> vector<16x16xf32>
    %c1_232 = arith.constant 1 : index
    %c0_233 = arith.constant 0 : index
    %c0_234 = arith.constant 0 : index
    %c0_235 = arith.constant 0 : index
    %346 = vector.load %arg12[%c1_232, %c0_233, %c0_234, %c0_235] : memref<2x2x1x16xf32, #tpu.memory_space<vmem>>, vector<1x1x1x16xf32>
    %347 = vector.shape_cast %346 : vector<1x1x1x16xf32> to vector<1x16xf32>
    %348 = vector.broadcast %347 : vector<1x16xf32> to vector<16x16xf32>
    %349 = arith.addf %345, %348 : vector<16x16xf32>
    %350 = vector.extract_strided_slice %335 {offsets = [0, 0], sizes = [8, 16], strides = [1, 1]} : vector<16x16xf32> to vector<8x16xf32>
    %351 = vector.extract_strided_slice %342 {offsets = [0, 0], sizes = [8, 16], strides = [1, 1]} : vector<16x16xf32> to vector<8x16xf32>
    %352 = vector.extract_strided_slice %349 {offsets = [0, 0], sizes = [8, 16], strides = [1, 1]} : vector<16x16xf32> to vector<8x16xf32>
    %cst_236 = arith.constant dense<0.000000e+00> : vector<8x8xf32>
    %353 = tpu.matmul %350, %351, %cst_236 {dimension_numbers = #tpu.dot_dimension_numbers<[1], [1], [0], [0], [0, 0, 1, 0], [], []>} : vector<8x16xf32>, vector<8x16xf32>, vector<8x8xf32> -> vector<8x8xf32>
    %cst_237 = arith.constant 2.500000e-01 : f32
    %354 = vector.broadcast %cst_237 : f32 to vector<8x8xf32>
    %355 = arith.mulf %353, %354 : vector<8x8xf32>
    %356 = vector.broadcast %110 : vector<1x8xf32> to vector<8x8xf32>
    %357 = arith.addf %355, %356 : vector<8x8xf32>
    %cst_238 = arith.constant dense<0xFF800000> : vector<8xf32>
    %358 = vector.multi_reduction <maximumf>, %357, %cst_238 [1] : vector<8x8xf32> to vector<8xf32>
    %359 = vector.shape_cast %358 : vector<8xf32> to vector<8x1xf32>
    %360 = vector.broadcast %359 : vector<8x1xf32> to vector<8x8xf32>
    %361 = arith.subf %357, %360 : vector<8x8xf32>
    %362 = math.exp %361 : vector<8x8xf32>
    %cst_239 = arith.constant dense<0.000000e+00> : vector<8xf32>
    %363 = vector.multi_reduction <add>, %362, %cst_239 [1] : vector<8x8xf32> to vector<8xf32>
    %364 = vector.shape_cast %363 : vector<8xf32> to vector<8x1xf32>
    %365 = tpu.reciprocal %364 {approx = true} : vector<8x1xf32> -> vector<8x1xf32>
    %366 = vector.broadcast %365 : vector<8x1xf32> to vector<8x8xf32>
    %367 = arith.mulf %362, %366 : vector<8x8xf32>
    %cst_240 = arith.constant dense<0.000000e+00> : vector<8x16xf32>
    %368 = tpu.matmul %367, %352, %cst_240 {dimension_numbers = #tpu.dot_dimension_numbers<[1], [0], [0], [1], [0, 0, 1, 1], [], []>} : vector<8x8xf32>, vector<8x16xf32>, vector<8x16xf32> -> vector<8x16xf32>
    %369 = vector.extract_strided_slice %335 {offsets = [8, 0], sizes = [8, 16], strides = [1, 1]} : vector<16x16xf32> to vector<8x16xf32>
    %370 = vector.extract_strided_slice %342 {offsets = [8, 0], sizes = [8, 16], strides = [1, 1]} : vector<16x16xf32> to vector<8x16xf32>
    %371 = vector.extract_strided_slice %349 {offsets = [8, 0], sizes = [8, 16], strides = [1, 1]} : vector<16x16xf32> to vector<8x16xf32>
    %cst_241 = arith.constant dense<0.000000e+00> : vector<8x8xf32>
    %372 = tpu.matmul %369, %370, %cst_241 {dimension_numbers = #tpu.dot_dimension_numbers<[1], [1], [0], [0], [0, 0, 1, 0], [], []>} : vector<8x16xf32>, vector<8x16xf32>, vector<8x8xf32> -> vector<8x8xf32>
    %cst_242 = arith.constant 2.500000e-01 : f32
    %373 = vector.broadcast %cst_242 : f32 to vector<8x8xf32>
    %374 = arith.mulf %372, %373 : vector<8x8xf32>
    %375 = vector.broadcast %112 : vector<1x8xf32> to vector<8x8xf32>
    %376 = arith.addf %374, %375 : vector<8x8xf32>
    %cst_243 = arith.constant dense<0xFF800000> : vector<8xf32>
    %377 = vector.multi_reduction <maximumf>, %376, %cst_243 [1] : vector<8x8xf32> to vector<8xf32>
    %378 = vector.shape_cast %377 : vector<8xf32> to vector<8x1xf32>
    %379 = vector.broadcast %378 : vector<8x1xf32> to vector<8x8xf32>
    %380 = arith.subf %376, %379 : vector<8x8xf32>
    %381 = math.exp %380 : vector<8x8xf32>
    %cst_244 = arith.constant dense<0.000000e+00> : vector<8xf32>
    %382 = vector.multi_reduction <add>, %381, %cst_244 [1] : vector<8x8xf32> to vector<8xf32>
    %383 = vector.shape_cast %382 : vector<8xf32> to vector<8x1xf32>
    %384 = tpu.reciprocal %383 {approx = true} : vector<8x1xf32> -> vector<8x1xf32>
    %385 = vector.broadcast %384 : vector<8x1xf32> to vector<8x8xf32>
    %386 = arith.mulf %381, %385 : vector<8x8xf32>
    %cst_245 = arith.constant dense<0.000000e+00> : vector<8x16xf32>
    %387 = tpu.matmul %386, %371, %cst_245 {dimension_numbers = #tpu.dot_dimension_numbers<[1], [0], [0], [1], [0, 0, 1, 1], [], []>} : vector<8x8xf32>, vector<8x16xf32>, vector<8x16xf32> -> vector<8x16xf32>
    %388 = tpu.concatenate %368, %387 in 0 : vector<8x16xf32>, vector<8x16xf32> -> vector<16x16xf32>
    %c1_246 = arith.constant 1 : index
    %c0_247 = arith.constant 0 : index
    %c0_248 = arith.constant 0 : index
    %c0_249 = arith.constant 0 : index
    %389 = vector.load %arg13[%c1_246, %c0_247, %c0_248, %c0_249] : memref<2x2x16x32xf32, #tpu.memory_space<vmem>>, vector<1x1x16x32xf32>
    %390 = vector.shape_cast %389 : vector<1x1x16x32xf32> to vector<16x32xf32>
    %cst_250 = arith.constant dense<0.000000e+00> : vector<16x32xf32>
    %391 = tpu.matmul %388, %390, %cst_250 {dimension_numbers = #tpu.dot_dimension_numbers<[1], [0], [0], [1], [0, 0, 1, 1], [], []>} : vector<16x16xf32>, vector<16x32xf32>, vector<16x32xf32> -> vector<16x32xf32>
    %c1_251 = arith.constant 1 : index
    %c1_252 = arith.constant 1 : index
    %c0_253 = arith.constant 0 : index
    %c0_254 = arith.constant 0 : index
    %392 = vector.load %arg7[%c1_251, %c1_252, %c0_253, %c0_254] : memref<2x2x32x16xf32, #tpu.memory_space<vmem>>, vector<1x1x32x16xf32>
    %393 = vector.shape_cast %392 : vector<1x1x32x16xf32> to vector<32x16xf32>
    %cst_255 = arith.constant dense<0.000000e+00> : vector<16x16xf32>
    %394 = tpu.matmul %328, %393, %cst_255 {dimension_numbers = #tpu.dot_dimension_numbers<[1], [0], [0], [1], [0, 0, 1, 1], [], []>} : vector<16x32xf32>, vector<32x16xf32>, vector<16x16xf32> -> vector<16x16xf32>
    %c1_256 = arith.constant 1 : index
    %c1_257 = arith.constant 1 : index
    %c0_258 = arith.constant 0 : index
    %c0_259 = arith.constant 0 : index
    %395 = vector.load %arg8[%c1_256, %c1_257, %c0_258, %c0_259] : memref<2x2x1x16xf32, #tpu.memory_space<vmem>>, vector<1x1x1x16xf32>
    %396 = vector.shape_cast %395 : vector<1x1x1x16xf32> to vector<1x16xf32>
    %397 = vector.broadcast %396 : vector<1x16xf32> to vector<16x16xf32>
    %398 = arith.addf %394, %397 : vector<16x16xf32>
    %c1_260 = arith.constant 1 : index
    %c1_261 = arith.constant 1 : index
    %c0_262 = arith.constant 0 : index
    %c0_263 = arith.constant 0 : index
    %399 = vector.load %arg9[%c1_260, %c1_261, %c0_262, %c0_263] : memref<2x2x32x16xf32, #tpu.memory_space<vmem>>, vector<1x1x32x16xf32>
    %400 = vector.shape_cast %399 : vector<1x1x32x16xf32> to vector<32x16xf32>
    %cst_264 = arith.constant dense<0.000000e+00> : vector<16x16xf32>
    %401 = tpu.matmul %328, %400, %cst_264 {dimension_numbers = #tpu.dot_dimension_numbers<[1], [0], [0], [1], [0, 0, 1, 1], [], []>} : vector<16x32xf32>, vector<32x16xf32>, vector<16x16xf32> -> vector<16x16xf32>
    %c1_265 = arith.constant 1 : index
    %c1_266 = arith.constant 1 : index
    %c0_267 = arith.constant 0 : index
    %c0_268 = arith.constant 0 : index
    %402 = vector.load %arg10[%c1_265, %c1_266, %c0_267, %c0_268] : memref<2x2x1x16xf32, #tpu.memory_space<vmem>>, vector<1x1x1x16xf32>
    %403 = vector.shape_cast %402 : vector<1x1x1x16xf32> to vector<1x16xf32>
    %404 = vector.broadcast %403 : vector<1x16xf32> to vector<16x16xf32>
    %405 = arith.addf %401, %404 : vector<16x16xf32>
    %c1_269 = arith.constant 1 : index
    %c1_270 = arith.constant 1 : index
    %c0_271 = arith.constant 0 : index
    %c0_272 = arith.constant 0 : index
    %406 = vector.load %arg11[%c1_269, %c1_270, %c0_271, %c0_272] : memref<2x2x32x16xf32, #tpu.memory_space<vmem>>, vector<1x1x32x16xf32>
    %407 = vector.shape_cast %406 : vector<1x1x32x16xf32> to vector<32x16xf32>
    %cst_273 = arith.constant dense<0.000000e+00> : vector<16x16xf32>
    %408 = tpu.matmul %328, %407, %cst_273 {dimension_numbers = #tpu.dot_dimension_numbers<[1], [0], [0], [1], [0, 0, 1, 1], [], []>} : vector<16x32xf32>, vector<32x16xf32>, vector<16x16xf32> -> vector<16x16xf32>
    %c1_274 = arith.constant 1 : index
    %c1_275 = arith.constant 1 : index
    %c0_276 = arith.constant 0 : index
    %c0_277 = arith.constant 0 : index
    %409 = vector.load %arg12[%c1_274, %c1_275, %c0_276, %c0_277] : memref<2x2x1x16xf32, #tpu.memory_space<vmem>>, vector<1x1x1x16xf32>
    %410 = vector.shape_cast %409 : vector<1x1x1x16xf32> to vector<1x16xf32>
    %411 = vector.broadcast %410 : vector<1x16xf32> to vector<16x16xf32>
    %412 = arith.addf %408, %411 : vector<16x16xf32>
    %413 = vector.extract_strided_slice %398 {offsets = [0, 0], sizes = [8, 16], strides = [1, 1]} : vector<16x16xf32> to vector<8x16xf32>
    %414 = vector.extract_strided_slice %405 {offsets = [0, 0], sizes = [8, 16], strides = [1, 1]} : vector<16x16xf32> to vector<8x16xf32>
    %415 = vector.extract_strided_slice %412 {offsets = [0, 0], sizes = [8, 16], strides = [1, 1]} : vector<16x16xf32> to vector<8x16xf32>
    %cst_278 = arith.constant dense<0.000000e+00> : vector<8x8xf32>
    %416 = tpu.matmul %413, %414, %cst_278 {dimension_numbers = #tpu.dot_dimension_numbers<[1], [1], [0], [0], [0, 0, 1, 0], [], []>} : vector<8x16xf32>, vector<8x16xf32>, vector<8x8xf32> -> vector<8x8xf32>
    %cst_279 = arith.constant 2.500000e-01 : f32
    %417 = vector.broadcast %cst_279 : f32 to vector<8x8xf32>
    %418 = arith.mulf %416, %417 : vector<8x8xf32>
    %419 = vector.broadcast %110 : vector<1x8xf32> to vector<8x8xf32>
    %420 = arith.addf %418, %419 : vector<8x8xf32>
    %cst_280 = arith.constant dense<0xFF800000> : vector<8xf32>
    %421 = vector.multi_reduction <maximumf>, %420, %cst_280 [1] : vector<8x8xf32> to vector<8xf32>
    %422 = vector.shape_cast %421 : vector<8xf32> to vector<8x1xf32>
    %423 = vector.broadcast %422 : vector<8x1xf32> to vector<8x8xf32>
    %424 = arith.subf %420, %423 : vector<8x8xf32>
    %425 = math.exp %424 : vector<8x8xf32>
    %cst_281 = arith.constant dense<0.000000e+00> : vector<8xf32>
    %426 = vector.multi_reduction <add>, %425, %cst_281 [1] : vector<8x8xf32> to vector<8xf32>
    %427 = vector.shape_cast %426 : vector<8xf32> to vector<8x1xf32>
    %428 = tpu.reciprocal %427 {approx = true} : vector<8x1xf32> -> vector<8x1xf32>
    %429 = vector.broadcast %428 : vector<8x1xf32> to vector<8x8xf32>
    %430 = arith.mulf %425, %429 : vector<8x8xf32>
    %cst_282 = arith.constant dense<0.000000e+00> : vector<8x16xf32>
    %431 = tpu.matmul %430, %415, %cst_282 {dimension_numbers = #tpu.dot_dimension_numbers<[1], [0], [0], [1], [0, 0, 1, 1], [], []>} : vector<8x8xf32>, vector<8x16xf32>, vector<8x16xf32> -> vector<8x16xf32>
    %432 = vector.extract_strided_slice %398 {offsets = [8, 0], sizes = [8, 16], strides = [1, 1]} : vector<16x16xf32> to vector<8x16xf32>
    %433 = vector.extract_strided_slice %405 {offsets = [8, 0], sizes = [8, 16], strides = [1, 1]} : vector<16x16xf32> to vector<8x16xf32>
    %434 = vector.extract_strided_slice %412 {offsets = [8, 0], sizes = [8, 16], strides = [1, 1]} : vector<16x16xf32> to vector<8x16xf32>
    %cst_283 = arith.constant dense<0.000000e+00> : vector<8x8xf32>
    %435 = tpu.matmul %432, %433, %cst_283 {dimension_numbers = #tpu.dot_dimension_numbers<[1], [1], [0], [0], [0, 0, 1, 0], [], []>} : vector<8x16xf32>, vector<8x16xf32>, vector<8x8xf32> -> vector<8x8xf32>
    %cst_284 = arith.constant 2.500000e-01 : f32
    %436 = vector.broadcast %cst_284 : f32 to vector<8x8xf32>
    %437 = arith.mulf %435, %436 : vector<8x8xf32>
    %438 = vector.broadcast %112 : vector<1x8xf32> to vector<8x8xf32>
    %439 = arith.addf %437, %438 : vector<8x8xf32>
    %cst_285 = arith.constant dense<0xFF800000> : vector<8xf32>
    %440 = vector.multi_reduction <maximumf>, %439, %cst_285 [1] : vector<8x8xf32> to vector<8xf32>
    %441 = vector.shape_cast %440 : vector<8xf32> to vector<8x1xf32>
    %442 = vector.broadcast %441 : vector<8x1xf32> to vector<8x8xf32>
    %443 = arith.subf %439, %442 : vector<8x8xf32>
    %444 = math.exp %443 : vector<8x8xf32>
    %cst_286 = arith.constant dense<0.000000e+00> : vector<8xf32>
    %445 = vector.multi_reduction <add>, %444, %cst_286 [1] : vector<8x8xf32> to vector<8xf32>
    %446 = vector.shape_cast %445 : vector<8xf32> to vector<8x1xf32>
    %447 = tpu.reciprocal %446 {approx = true} : vector<8x1xf32> -> vector<8x1xf32>
    %448 = vector.broadcast %447 : vector<8x1xf32> to vector<8x8xf32>
    %449 = arith.mulf %444, %448 : vector<8x8xf32>
    %cst_287 = arith.constant dense<0.000000e+00> : vector<8x16xf32>
    %450 = tpu.matmul %449, %434, %cst_287 {dimension_numbers = #tpu.dot_dimension_numbers<[1], [0], [0], [1], [0, 0, 1, 1], [], []>} : vector<8x8xf32>, vector<8x16xf32>, vector<8x16xf32> -> vector<8x16xf32>
    %451 = tpu.concatenate %431, %450 in 0 : vector<8x16xf32>, vector<8x16xf32> -> vector<16x16xf32>
    %c1_288 = arith.constant 1 : index
    %c1_289 = arith.constant 1 : index
    %c0_290 = arith.constant 0 : index
    %c0_291 = arith.constant 0 : index
    %452 = vector.load %arg13[%c1_288, %c1_289, %c0_290, %c0_291] : memref<2x2x16x32xf32, #tpu.memory_space<vmem>>, vector<1x1x16x32xf32>
    %453 = vector.shape_cast %452 : vector<1x1x16x32xf32> to vector<16x32xf32>
    %cst_292 = arith.constant dense<0.000000e+00> : vector<16x32xf32>
    %454 = tpu.matmul %451, %453, %cst_292 {dimension_numbers = #tpu.dot_dimension_numbers<[1], [0], [0], [1], [0, 0, 1, 1], [], []>} : vector<16x16xf32>, vector<16x32xf32>, vector<16x32xf32> -> vector<16x32xf32>
    %455 = arith.addf %391, %454 : vector<16x32xf32>
    %c1_293 = arith.constant 1 : index
    %c0_294 = arith.constant 0 : index
    %c0_295 = arith.constant 0 : index
    %456 = vector.load %arg14[%c1_293, %c0_294, %c0_295] : memref<2x1x32xf32, #tpu.memory_space<vmem>>, vector<1x1x32xf32>
    %457 = vector.shape_cast %456 : vector<1x1x32xf32> to vector<1x32xf32>
    %458 = vector.broadcast %457 : vector<1x32xf32> to vector<16x32xf32>
    %459 = arith.addf %455, %458 : vector<16x32xf32>
    %460 = arith.addf %328, %459 : vector<16x32xf32>
    %c1_296 = arith.constant 1 : index
    %c0_297 = arith.constant 0 : index
    %c0_298 = arith.constant 0 : index
    %461 = vector.load %arg15[%c1_296, %c0_297, %c0_298] : memref<2x1x32xf32, #tpu.memory_space<vmem>>, vector<1x1x32xf32>
    %462 = vector.shape_cast %461 : vector<1x1x32xf32> to vector<1x32xf32>
    %c1_299 = arith.constant 1 : index
    %c0_300 = arith.constant 0 : index
    %c0_301 = arith.constant 0 : index
    %463 = vector.load %arg16[%c1_299, %c0_300, %c0_301] : memref<2x1x32xf32, #tpu.memory_space<vmem>>, vector<1x1x32xf32>
    %464 = vector.shape_cast %463 : vector<1x1x32xf32> to vector<1x32xf32>
    %cst_302 = arith.constant dense<0.000000e+00> : vector<16xf32>
    %465 = vector.multi_reduction <add>, %460, %cst_302 [1] : vector<16x32xf32> to vector<16xf32>
    %466 = vector.shape_cast %465 : vector<16xf32> to vector<16x1xf32>
    %cst_303 = arith.constant 3.200000e+01 : f32
    %467 = vector.broadcast %cst_303 : f32 to vector<16x1xf32>
    %468 = arith.divf %466, %467 : vector<16x1xf32>
    %469 = vector.broadcast %468 : vector<16x1xf32> to vector<16x32xf32>
    %470 = arith.subf %460, %469 : vector<16x32xf32>
    %471 = vector.broadcast %468 : vector<16x1xf32> to vector<16x32xf32>
    %472 = arith.subf %460, %471 : vector<16x32xf32>
    %473 = arith.mulf %470, %472 : vector<16x32xf32>
    %cst_304 = arith.constant dense<0.000000e+00> : vector<16xf32>
    %474 = vector.multi_reduction <add>, %473, %cst_304 [1] : vector<16x32xf32> to vector<16xf32>
    %475 = vector.shape_cast %474 : vector<16xf32> to vector<16x1xf32>
    %cst_305 = arith.constant 3.200000e+01 : f32
    %476 = vector.broadcast %cst_305 : f32 to vector<16x1xf32>
    %477 = arith.divf %475, %476 : vector<16x1xf32>
    %478 = vector.broadcast %468 : vector<16x1xf32> to vector<16x32xf32>
    %479 = arith.subf %460, %478 : vector<16x32xf32>
    %cst_306 = arith.constant 9.99999996E-13 : f32
    %480 = vector.broadcast %cst_306 : f32 to vector<16x1xf32>
    %481 = arith.addf %477, %480 : vector<16x1xf32>
    %482 = math.rsqrt %481 : vector<16x1xf32>
    %483 = vector.broadcast %482 : vector<16x1xf32> to vector<16x32xf32>
    %484 = arith.mulf %479, %483 : vector<16x32xf32>
    %485 = vector.broadcast %462 : vector<1x32xf32> to vector<16x32xf32>
    %486 = arith.mulf %484, %485 : vector<16x32xf32>
    %487 = vector.broadcast %464 : vector<1x32xf32> to vector<16x32xf32>
    %488 = arith.addf %486, %487 : vector<16x32xf32>
    %c1_307 = arith.constant 1 : index
    %c0_308 = arith.constant 0 : index
    %c0_309 = arith.constant 0 : index
    %489 = vector.load %arg17[%c1_307, %c0_308, %c0_309] : memref<2x32x64xf32, #tpu.memory_space<vmem>>, vector<1x32x64xf32>
    %490 = vector.shape_cast %489 : vector<1x32x64xf32> to vector<32x64xf32>
    %cst_310 = arith.constant dense<0.000000e+00> : vector<16x64xf32>
    %491 = tpu.matmul %488, %490, %cst_310 {dimension_numbers = #tpu.dot_dimension_numbers<[1], [0], [0], [1], [0, 0, 1, 1], [], []>} : vector<16x32xf32>, vector<32x64xf32>, vector<16x64xf32> -> vector<16x64xf32>
    %c1_311 = arith.constant 1 : index
    %c0_312 = arith.constant 0 : index
    %c0_313 = arith.constant 0 : index
    %492 = vector.load %arg18[%c1_311, %c0_312, %c0_313] : memref<2x1x64xf32, #tpu.memory_space<vmem>>, vector<1x1x64xf32>
    %493 = vector.shape_cast %492 : vector<1x1x64xf32> to vector<1x64xf32>
    %494 = vector.broadcast %493 : vector<1x64xf32> to vector<16x64xf32>
    %495 = arith.addf %491, %494 : vector<16x64xf32>
    %cst_314 = arith.constant 5.000000e-01 : f32
    %496 = vector.broadcast %cst_314 : f32 to vector<16x64xf32>
    %497 = arith.mulf %496, %495 : vector<16x64xf32>
    %cst_315 = arith.constant 4.471500e-02 : f32
    %498 = vector.broadcast %cst_315 : f32 to vector<16x64xf32>
    %499 = arith.mulf %498, %495 : vector<16x64xf32>
    %500 = arith.mulf %499, %495 : vector<16x64xf32>
    %501 = arith.mulf %500, %495 : vector<16x64xf32>
    %502 = arith.addf %495, %501 : vector<16x64xf32>
    %cst_316 = arith.constant 0.797884583 : f32
    %503 = vector.broadcast %cst_316 : f32 to vector<16x64xf32>
    %504 = arith.mulf %503, %502 : vector<16x64xf32>
    %505 = math.tanh %504 : vector<16x64xf32>
    %cst_317 = arith.constant 1.000000e+00 : f32
    %506 = vector.broadcast %cst_317 : f32 to vector<16x64xf32>
    %507 = arith.addf %506, %505 : vector<16x64xf32>
    %508 = arith.mulf %497, %507 : vector<16x64xf32>
    %c1_318 = arith.constant 1 : index
    %c0_319 = arith.constant 0 : index
    %c0_320 = arith.constant 0 : index
    %509 = vector.load %arg19[%c1_318, %c0_319, %c0_320] : memref<2x64x32xf32, #tpu.memory_space<vmem>>, vector<1x64x32xf32>
    %510 = vector.shape_cast %509 : vector<1x64x32xf32> to vector<64x32xf32>
    %cst_321 = arith.constant dense<0.000000e+00> : vector<16x32xf32>
    %511 = tpu.matmul %508, %510, %cst_321 {dimension_numbers = #tpu.dot_dimension_numbers<[1], [0], [0], [1], [0, 0, 1, 1], [], []>} : vector<16x64xf32>, vector<64x32xf32>, vector<16x32xf32> -> vector<16x32xf32>
    %c1_322 = arith.constant 1 : index
    %c0_323 = arith.constant 0 : index
    %c0_324 = arith.constant 0 : index
    %512 = vector.load %arg20[%c1_322, %c0_323, %c0_324] : memref<2x1x32xf32, #tpu.memory_space<vmem>>, vector<1x1x32xf32>
    %513 = vector.shape_cast %512 : vector<1x1x32xf32> to vector<1x32xf32>
    %514 = vector.broadcast %513 : vector<1x32xf32> to vector<16x32xf32>
    %515 = arith.addf %511, %514 : vector<16x32xf32>
    %516 = arith.addf %488, %515 : vector<16x32xf32>
    %c1_325 = arith.constant 1 : index
    %c0_326 = arith.constant 0 : index
    %c0_327 = arith.constant 0 : index
    %517 = vector.load %arg21[%c1_325, %c0_326, %c0_327] : memref<2x1x32xf32, #tpu.memory_space<vmem>>, vector<1x1x32xf32>
    %518 = vector.shape_cast %517 : vector<1x1x32xf32> to vector<1x32xf32>
    %c1_328 = arith.constant 1 : index
    %c0_329 = arith.constant 0 : index
    %c0_330 = arith.constant 0 : index
    %519 = vector.load %arg22[%c1_328, %c0_329, %c0_330] : memref<2x1x32xf32, #tpu.memory_space<vmem>>, vector<1x1x32xf32>
    %520 = vector.shape_cast %519 : vector<1x1x32xf32> to vector<1x32xf32>
    %cst_331 = arith.constant dense<0.000000e+00> : vector<16xf32>
    %521 = vector.multi_reduction <add>, %516, %cst_331 [1] : vector<16x32xf32> to vector<16xf32>
    %522 = vector.shape_cast %521 : vector<16xf32> to vector<16x1xf32>
    %cst_332 = arith.constant 3.200000e+01 : f32
    %523 = vector.broadcast %cst_332 : f32 to vector<16x1xf32>
    %524 = arith.divf %522, %523 : vector<16x1xf32>
    %525 = vector.broadcast %524 : vector<16x1xf32> to vector<16x32xf32>
    %526 = arith.subf %516, %525 : vector<16x32xf32>
    %527 = vector.broadcast %524 : vector<16x1xf32> to vector<16x32xf32>
    %528 = arith.subf %516, %527 : vector<16x32xf32>
    %529 = arith.mulf %526, %528 : vector<16x32xf32>
    %cst_333 = arith.constant dense<0.000000e+00> : vector<16xf32>
    %530 = vector.multi_reduction <add>, %529, %cst_333 [1] : vector<16x32xf32> to vector<16xf32>
    %531 = vector.shape_cast %530 : vector<16xf32> to vector<16x1xf32>
    %cst_334 = arith.constant 3.200000e+01 : f32
    %532 = vector.broadcast %cst_334 : f32 to vector<16x1xf32>
    %533 = arith.divf %531, %532 : vector<16x1xf32>
    %534 = vector.broadcast %524 : vector<16x1xf32> to vector<16x32xf32>
    %535 = arith.subf %516, %534 : vector<16x32xf32>
    %cst_335 = arith.constant 9.99999996E-13 : f32
    %536 = vector.broadcast %cst_335 : f32 to vector<16x1xf32>
    %537 = arith.addf %533, %536 : vector<16x1xf32>
    %538 = math.rsqrt %537 : vector<16x1xf32>
    %539 = vector.broadcast %538 : vector<16x1xf32> to vector<16x32xf32>
    %540 = arith.mulf %535, %539 : vector<16x32xf32>
    %541 = vector.broadcast %518 : vector<1x32xf32> to vector<16x32xf32>
    %542 = arith.mulf %540, %541 : vector<16x32xf32>
    %543 = vector.broadcast %520 : vector<1x32xf32> to vector<16x32xf32>
    %544 = arith.addf %542, %543 : vector<16x32xf32>
    %545 = vector.extract_strided_slice %544 {offsets = [0, 0], sizes = [1, 32], strides = [1, 1]} : vector<16x32xf32> to vector<1x32xf32>
    %546 = vector.extract_strided_slice %544 {offsets = [8, 0], sizes = [1, 32], strides = [1, 1]} : vector<16x32xf32> to vector<1x32xf32>
    %547 = tpu.concatenate %545, %546 in 0 : vector<1x32xf32>, vector<1x32xf32> -> vector<2x32xf32>
    %c0_336 = arith.constant 0 : index
    %c0_337 = arith.constant 0 : index
    %548 = vector.load %arg23[%c0_336, %c0_337] : memref<2x32xf32, #tpu.memory_space<vmem>>, vector<2x32xf32>
    tpu.vector_store %arg23[%c0_336, %c0_337], %547 {strides = array<i32>} : memref<2x32xf32, #tpu.memory_space<vmem>>, vector<2x32xf32>,
    return
  }
  func.func @transform_0(%arg0: i32, %arg1: memref<16xi32, #tpu.memory_space<smem>>) -> (i32, i32, i32) {
    %c0_i32 = arith.constant 0 : i32
    %c0_i32_0 = arith.constant 0 : i32
    %c0_i32_1 = arith.constant 0 : i32
    %c0_i32_2 = arith.constant 0 : i32
    return %c0_i32, %c0_i32_0, %c0_i32_1 : i32, i32, i32
  }
  func.func @transform_1(%arg0: i32, %arg1: memref<16xi32, #tpu.memory_space<smem>>) -> (i32, i32) {
    %c0_i32 = arith.constant 0 : i32
    %c0_i32_0 = arith.constant 0 : i32
    %c0_i32_1 = arith.constant 0 : i32
    return %c0_i32, %c0_i32_0 : i32, i32
  }
  func.func @transform_2(%arg0: i32, %arg1: memref<16xi32, #tpu.memory_space<smem>>) -> (i32, i32, i32) {
    %c0_i32 = arith.constant 0 : i32
    %c0_i32_0 = arith.constant 0 : i32
    %c0_i32_1 = arith.constant 0 : i32
    %c0_i32_2 = arith.constant 0 : i32
    return %c0_i32, %c0_i32_0, %c0_i32_1 : i32, i32, i32
  }
  func.func @transform_3(%arg0: i32, %arg1: memref<16xi32, #tpu.memory_space<smem>>) -> (i32, i32) {
    %c0_i32 = arith.constant 0 : i32
    %c0_i32_0 = arith.constant 0 : i32
    %c0_i32_1 = arith.constant 0 : i32
    return %c0_i32, %c0_i32_0 : i32, i32
  }
  func.func @transform_4(%arg0: i32, %arg1: memref<16xi32, #tpu.memory_space<smem>>) -> (i32, i32) {
    %c0_i32 = arith.constant 0 : i32
    %c0_i32_0 = arith.constant 0 : i32
    %c0_i32_1 = arith.constant 0 : i32
    return %c0_i32, %c0_i32_0 : i32, i32
  }
  func.func @transform_5(%arg0: i32, %arg1: memref<16xi32, #tpu.memory_space<smem>>) -> (i32, i32, i32, i32) {
    %c0_i32 = arith.constant 0 : i32
    %c0_i32_0 = arith.constant 0 : i32
    %c0_i32_1 = arith.constant 0 : i32
    %c0_i32_2 = arith.constant 0 : i32
    %c0_i32_3 = arith.constant 0 : i32
    return %c0_i32, %c0_i32_0, %c0_i32_1, %c0_i32_2 : i32, i32, i32, i32
  }
  func.func @transform_6(%arg0: i32, %arg1: memref<16xi32, #tpu.memory_space<smem>>) -> (i32, i32, i32, i32) {
    %c0_i32 = arith.constant 0 : i32
    %c0_i32_0 = arith.constant 0 : i32
    %c0_i32_1 = arith.constant 0 : i32
    %c0_i32_2 = arith.constant 0 : i32
    %c0_i32_3 = arith.constant 0 : i32
    return %c0_i32, %c0_i32_0, %c0_i32_1, %c0_i32_2 : i32, i32, i32, i32
  }
  func.func @transform_7(%arg0: i32, %arg1: memref<16xi32, #tpu.memory_space<smem>>) -> (i32, i32, i32, i32) {
    %c0_i32 = arith.constant 0 : i32
    %c0_i32_0 = arith.constant 0 : i32
    %c0_i32_1 = arith.constant 0 : i32
    %c0_i32_2 = arith.constant 0 : i32
    %c0_i32_3 = arith.constant 0 : i32
    return %c0_i32, %c0_i32_0, %c0_i32_1, %c0_i32_2 : i32, i32, i32, i32
  }
  func.func @transform_8(%arg0: i32, %arg1: memref<16xi32, #tpu.memory_space<smem>>) -> (i32, i32, i32, i32) {
    %c0_i32 = arith.constant 0 : i32
    %c0_i32_0 = arith.constant 0 : i32
    %c0_i32_1 = arith.constant 0 : i32
    %c0_i32_2 = arith.constant 0 : i32
    %c0_i32_3 = arith.constant 0 : i32
    return %c0_i32, %c0_i32_0, %c0_i32_1, %c0_i32_2 : i32, i32, i32, i32
  }
  func.func @transform_9(%arg0: i32, %arg1: memref<16xi32, #tpu.memory_space<smem>>) -> (i32, i32, i32, i32) {
    %c0_i32 = arith.constant 0 : i32
    %c0_i32_0 = arith.constant 0 : i32
    %c0_i32_1 = arith.constant 0 : i32
    %c0_i32_2 = arith.constant 0 : i32
    %c0_i32_3 = arith.constant 0 : i32
    return %c0_i32, %c0_i32_0, %c0_i32_1, %c0_i32_2 : i32, i32, i32, i32
  }
  func.func @transform_10(%arg0: i32, %arg1: memref<16xi32, #tpu.memory_space<smem>>) -> (i32, i32, i32, i32) {
    %c0_i32 = arith.constant 0 : i32
    %c0_i32_0 = arith.constant 0 : i32
    %c0_i32_1 = arith.constant 0 : i32
    %c0_i32_2 = arith.constant 0 : i32
    %c0_i32_3 = arith.constant 0 : i32
    return %c0_i32, %c0_i32_0, %c0_i32_1, %c0_i32_2 : i32, i32, i32, i32
  }
  func.func @transform_11(%arg0: i32, %arg1: memref<16xi32, #tpu.memory_space<smem>>) -> (i32, i32, i32, i32) {
    %c0_i32 = arith.constant 0 : i32
    %c0_i32_0 = arith.constant 0 : i32
    %c0_i32_1 = arith.constant 0 : i32
    %c0_i32_2 = arith.constant 0 : i32
    %c0_i32_3 = arith.constant 0 : i32
    return %c0_i32, %c0_i32_0, %c0_i32_1, %c0_i32_2 : i32, i32, i32, i32
  }
  func.func @transform_12(%arg0: i32, %arg1: memref<16xi32, #tpu.memory_space<smem>>) -> (i32, i32, i32) {
    %c0_i32 = arith.constant 0 : i32
    %c0_i32_0 = arith.constant 0 : i32
    %c0_i32_1 = arith.constant 0 : i32
    %c0_i32_2 = arith.constant 0 : i32
    return %c0_i32, %c0_i32_0, %c0_i32_1 : i32, i32, i32
  }
  func.func @transform_13(%arg0: i32, %arg1: memref<16xi32, #tpu.memory_space<smem>>) -> (i32, i32, i32) {
    %c0_i32 = arith.constant 0 : i32
    %c0_i32_0 = arith.constant 0 : i32
    %c0_i32_1 = arith.constant 0 : i32
    %c0_i32_2 = arith.constant 0 : i32
    return %c0_i32, %c0_i32_0, %c0_i32_1 : i32, i32, i32
  }
  func.func @transform_14(%arg0: i32, %arg1: memref<16xi32, #tpu.memory_space<smem>>) -> (i32, i32, i32) {
    %c0_i32 = arith.constant 0 : i32
    %c0_i32_0 = arith.constant 0 : i32
    %c0_i32_1 = arith.constant 0 : i32
    %c0_i32_2 = arith.constant 0 : i32
    return %c0_i32, %c0_i32_0, %c0_i32_1 : i32, i32, i32
  }
  func.func @transform_15(%arg0: i32, %arg1: memref<16xi32, #tpu.memory_space<smem>>) -> (i32, i32, i32) {
    %c0_i32 = arith.constant 0 : i32
    %c0_i32_0 = arith.constant 0 : i32
    %c0_i32_1 = arith.constant 0 : i32
    %c0_i32_2 = arith.constant 0 : i32
    return %c0_i32, %c0_i32_0, %c0_i32_1 : i32, i32, i32
  }
  func.func @transform_16(%arg0: i32, %arg1: memref<16xi32, #tpu.memory_space<smem>>) -> (i32, i32, i32) {
    %c0_i32 = arith.constant 0 : i32
    %c0_i32_0 = arith.constant 0 : i32
    %c0_i32_1 = arith.constant 0 : i32
    %c0_i32_2 = arith.constant 0 : i32
    return %c0_i32, %c0_i32_0, %c0_i32_1 : i32, i32, i32
  }
  func.func @transform_17(%arg0: i32, %arg1: memref<16xi32, #tpu.memory_space<smem>>) -> (i32, i32, i32) {
    %c0_i32 = arith.constant 0 : i32
    %c0_i32_0 = arith.constant 0 : i32
    %c0_i32_1 = arith.constant 0 : i32
    %c0_i32_2 = arith.constant 0 : i32
    return %c0_i32, %c0_i32_0, %c0_i32_1 : i32, i32, i32
  }
  func.func @transform_18(%arg0: i32, %arg1: memref<16xi32, #tpu.memory_space<smem>>) -> (i32, i32, i32) {
    %c0_i32 = arith.constant 0 : i32
    %c0_i32_0 = arith.constant 0 : i32
    %c0_i32_1 = arith.constant 0 : i32
    %c0_i32_2 = arith.constant 0 : i32
    return %c0_i32, %c0_i32_0, %c0_i32_1 : i32, i32, i32
  }
  func.func @transform_19(%arg0: i32, %arg1: memref<16xi32, #tpu.memory_space<smem>>) -> (i32, i32, i32) {
    %c0_i32 = arith.constant 0 : i32
    %c0_i32_0 = arith.constant 0 : i32
    %c0_i32_1 = arith.constant 0 : i32
    %c0_i32_2 = arith.constant 0 : i32
    return %c0_i32, %c0_i32_0, %c0_i32_1 : i32, i32, i32
  }
  func.func @transform_20(%arg0: i32, %arg1: memref<16xi32, #tpu.memory_space<smem>>) -> (i32, i32, i32) {
    %c0_i32 = arith.constant 0 : i32
    %c0_i32_0 = arith.constant 0 : i32
    %c0_i32_1 = arith.constant 0 : i32
    %c0_i32_2 = arith.constant 0 : i32
    return %c0_i32, %c0_i32_0, %c0_i32_1 : i32, i32, i32
  }
  func.func @transform_21(%arg0: i32, %arg1: memref<16xi32, #tpu.memory_space<smem>>) -> (i32, i32) {
    %c0_i32 = arith.constant 0 : i32
    %c0_i32_0 = arith.constant 0 : i32
    %c0_i32_1 = arith.constant 0 : i32
    return %c0_i32, %c0_i32_0 : i32, i32
  }
}

</mosaic_0001>

<llo_original>
// kernel: text_encoder_forward.1
$region0: #{text_encoder_forward.1}
  #allocation0 [shape = 'u32[]', space=smem, size = 0x4, offset = 0x4, fixed_abs, tag = 'smem constant byte address 0x4 - core index']
  #allocation1 [shape = 'u32[72,128]{1,0:T(1,128)}', space=vmem, size = 0x9000, scoped, tag = 'internal scratch']
  #allocation2 [shape = 'f32[16,32]{1,0:T(8,128)}', space=vmem, size = 0x2000, scoped, tag = 'scratch operand']
  #allocation3 [shape = 's32[1]{0}', space=sflag, size = 0x4, scoped, tag = 'scoped memory for text_encoder_forward.1']
  #allocation4 [shape = 'u8[512]{0}', space=smem, size = 0x200, scoped, tag = 'prefetched SMEM operand 0']
  %s0 = inlined_call_operand.vmem [shape: s32[16], index: 0, kind: input, shape index: {}]
  %s1 = inlined_call_operand.vmem [shape: f32[100,1,32], index: 1, kind: input, shape index: {}]
  %s2 = inlined_call_operand.vmem [shape: f32[16,32], index: 2, kind: input, shape index: {}]
  %s3 = inlined_call_operand.vmem [shape: f32[2,1,8], index: 3, kind: input, shape index: {}]
  %s4 = inlined_call_operand.vmem [shape: f32[1,32], index: 4, kind: input, shape index: {}]
  %s5 = inlined_call_operand.vmem [shape: f32[1,32], index: 5, kind: input, shape index: {}]
  %s6 = inlined_call_operand.vmem [shape: f32[2,2,32,16], index: 6, kind: input, shape index: {}]
  %s7 = inlined_call_operand.vmem [shape: f32[2,2,1,16], index: 7, kind: input, shape index: {}]
  %s8 = inlined_call_operand.vmem [shape: f32[2,2,32,16], index: 8, kind: input, shape index: {}]
  %s9 = inlined_call_operand.vmem [shape: f32[2,2,1,16], index: 9, kind: input, shape index: {}]
  %s10 = inlined_call_operand.vmem [shape: f32[2,2,32,16], index: 10, kind: input, shape index: {}]
  %s11 = inlined_call_operand.vmem [shape: f32[2,2,1,16], index: 11, kind: input, shape index: {}]
  %s12 = inlined_call_operand.vmem [shape: f32[2,2,16,32], index: 12, kind: input, shape index: {}]
  %s13 = inlined_call_operand.vmem [shape: f32[2,1,32], index: 13, kind: input, shape index: {}]
  %s14 = inlined_call_operand.vmem [shape: f32[2,1,32], index: 14, kind: input, shape index: {}]
  %s15 = inlined_call_operand.vmem [shape: f32[2,1,32], index: 15, kind: input, shape index: {}]
  %s16 = inlined_call_operand.vmem [shape: f32[2,32,64], index: 16, kind: input, shape index: {}]
  %s17 = inlined_call_operand.vmem [shape: f32[2,1,64], index: 17, kind: input, shape index: {}]
  %s18 = inlined_call_operand.vmem [shape: f32[2,64,32], index: 18, kind: input, shape index: {}]
  %s19 = inlined_call_operand.vmem [shape: f32[2,1,32], index: 19, kind: input, shape index: {}]
  %s20 = inlined_call_operand.vmem [shape: f32[2,1,32], index: 20, kind: input, shape index: {}]
  %s21 = inlined_call_operand.vmem [shape: f32[2,1,32], index: 21, kind: input, shape index: {}]
  %s22 = inlined_call_operand.hbm [shape: f32[2,32], index: 22, kind: output, shape index: {}]
  %s23 = sld [smem:[#allocation0]]
  $region94: #{text_encoder_forward.1} parent=0
    _
  %s25 = ssub.s32 1, %s23
  %s26 = scalar_select 0, %s25, %s23
  %s28 = sshll.u32 %s0, 4
  %s29 = int_to_ptr.vmem [resolvable:$true] %s28
  %31 = dma.vmem_to_smem %s29, 16, [#allocation4], [#allocation3]
  %33 = dma.done [#allocation3], 16
  %34 = sfence
  $region1: #{text_encoder_forward.1} parent=0
    #allocation5 [shape = 'u8[1024]{0}', space=vmem, size = 0x400, scoped, tag = 'output window, operand 0, single buffered']
    #allocation6 [shape = 's32[1]{0}', space=sflag, size = 0x4, scoped, tag = 'scoped memory for text_encoder_forward.1']
    %35 = vsyncpa [#allocation6], 0
    // Predicated region
    $region2: #{text_encoder_forward.1} parent=1 // pred_check
      _
    $region3: #{text_encoder_forward.1} parent=1 // pred_check_branch
      %37 = sbr.rel (0) target = $region5
    $region4: #{text_encoder_forward.1} parent=1 // pred_region
      _
    $region5: #{text_encoder_forward.1} parent=1 // pred_fallthru
      _
    // Predicated region
    $region6: #{text_encoder_forward.1} parent=1 // pred_check
      _
    $region7: #{text_encoder_forward.1} parent=1 // pred_check_branch
      %39 = sbr.rel (0) target = $region9
    $region8: #{text_encoder_forward.1} parent=1 // pred_region
      _
    $region9: #{text_encoder_forward.1} parent=1 // pred_fallthru
      _
    // Predicated region
    $region10: #{text_encoder_forward.1} parent=1 // pred_check
      _
    $region11: #{text_encoder_forward.1} parent=1 // pred_check_branch
      %41 = sbr.rel (0) target = $region13
    $region12: #{text_encoder_forward.1} parent=1 // pred_region
      _
    $region13: #{text_encoder_forward.1} parent=1 // pred_fallthru
      _
    // Predicated region
    $region14: #{text_encoder_forward.1} parent=1 // pred_check
      _
    $region15: #{text_encoder_forward.1} parent=1 // pred_check_branch
      %43 = sbr.rel (0) target = $region17
    $region16: #{text_encoder_forward.1} parent=1 // pred_region
      _
    $region17: #{text_encoder_forward.1} parent=1 // pred_fallthru
      _
    // Predicated region
    $region18: #{text_encoder_forward.1} parent=1 // pred_check
      _
    $region19: #{text_encoder_forward.1} parent=1 // pred_check_branch
      %45 = sbr.rel (0) target = $region21
    $region20: #{text_encoder_forward.1} parent=1 // pred_region
      _
    $region21: #{text_encoder_forward.1} parent=1 // pred_fallthru
      _
    // Predicated region
    $region22: #{text_encoder_forward.1} parent=1 // pred_check
      _
    $region23: #{text_encoder_forward.1} parent=1 // pred_check_branch
      %47 = sbr.rel (0) target = $region25
    $region24: #{text_encoder_forward.1} parent=1 // pred_region
      _
    $region25: #{text_encoder_forward.1} parent=1 // pred_fallthru
      _
    // Predicated region
    $region26: #{text_encoder_forward.1} parent=1 // pred_check
      _
    $region27: #{text_encoder_forward.1} parent=1 // pred_check_branch
      %49 = sbr.rel (0) target = $region29
    $region28: #{text_encoder_forward.1} parent=1 // pred_region
      _
    $region29: #{text_encoder_forward.1} parent=1 // pred_fallthru
      _
    // Predicated region
    $region30: #{text_encoder_forward.1} parent=1 // pred_check
      _
    $region31: #{text_encoder_forward.1} parent=1 // pred_check_branch
      %51 = sbr.rel (0) target = $region33
    $region32: #{text_encoder_forward.1} parent=1 // pred_region
      _
    $region33: #{text_encoder_forward.1} parent=1 // pred_fallthru
      _
    // Predicated region
    $region34: #{text_encoder_forward.1} parent=1 // pred_check
      _
    $region35: #{text_encoder_forward.1} parent=1 // pred_check_branch
      %53 = sbr.rel (0) target = $region37
    $region36: #{text_encoder_forward.1} parent=1 // pred_region
      _
    $region37: #{text_encoder_forward.1} parent=1 // pred_fallthru
      _
    // Predicated region
    $region38: #{text_encoder_forward.1} parent=1 // pred_check
      _
    $region39: #{text_encoder_forward.1} parent=1 // pred_check_branch
      %55 = sbr.rel (0) target = $region41
    $region40: #{text_encoder_forward.1} parent=1 // pred_region
      _
    $region41: #{text_encoder_forward.1} parent=1 // pred_fallthru
      _
    // Predicated region
    $region42: #{text_encoder_forward.1} parent=1 // pred_check
      _
    $region43: #{text_encoder_forward.1} parent=1 // pred_check_branch
      %57 = sbr.rel (0) target = $region45
    $region44: #{text_encoder_forward.1} parent=1 // pred_region
      _
    $region45: #{text_encoder_forward.1} parent=1 // pred_fallthru
      _
    // Predicated region
    $region46: #{text_encoder_forward.1} parent=1 // pred_check
      _
    $region47: #{text_encoder_forward.1} parent=1 // pred_check_branch
      %59 = sbr.rel (0) target = $region49
    $region48: #{text_encoder_forward.1} parent=1 // pred_region
      _
    $region49: #{text_encoder_forward.1} parent=1 // pred_fallthru
      _
    // Predicated region
    $region50: #{text_encoder_forward.1} parent=1 // pred_check
      _
    $region51: #{text_encoder_forward.1} parent=1 // pred_check_branch
      %61 = sbr.rel (0) target = $region53
    $region52: #{text_encoder_forward.1} parent=1 // pred_region
      _
    $region53: #{text_encoder_forward.1} parent=1 // pred_fallthru
      _
    // Predicated region
    $region54: #{text_encoder_forward.1} parent=1 // pred_check
      _
    $region55: #{text_encoder_forward.1} parent=1 // pred_check_branch
      %63 = sbr.rel (0) target = $region57
    $region56: #{text_encoder_forward.1} parent=1 // pred_region
      _
    $region57: #{text_encoder_forward.1} parent=1 // pred_fallthru
      _
    // Predicated region
    $region58: #{text_encoder_forward.1} parent=1 // pred_check
      _
    $region59: #{text_encoder_forward.1} parent=1 // pred_check_branch
      %65 = sbr.rel (0) target = $region61
    $region60: #{text_encoder_forward.1} parent=1 // pred_region
      _
    $region61: #{text_encoder_forward.1} parent=1 // pred_fallthru
      _
    // Predicated region
    $region62: #{text_encoder_forward.1} parent=1 // pred_check
      _
    $region63: #{text_encoder_forward.1} parent=1 // pred_check_branch
      %67 = sbr.rel (0) target = $region65
    $region64: #{text_encoder_forward.1} parent=1 // pred_region
      _
    $region65: #{text_encoder_forward.1} parent=1 // pred_fallthru
      _
    // Predicated region
    $region66: #{text_encoder_forward.1} parent=1 // pred_check
      _
    $region67: #{text_encoder_forward.1} parent=1 // pred_check_branch
      %69 = sbr.rel (0) target = $region69
    $region68: #{text_encoder_forward.1} parent=1 // pred_region
      _
    $region69: #{text_encoder_forward.1} parent=1 // pred_fallthru
      _
    // Predicated region
    $region70: #{text_encoder_forward.1} parent=1 // pred_check
      _
    $region71: #{text_encoder_forward.1} parent=1 // pred_check_branch
      %71 = sbr.rel (0) target = $region73
    $region72: #{text_encoder_forward.1} parent=1 // pred_region
      _
    $region73: #{text_encoder_forward.1} parent=1 // pred_fallthru
      _
    // Predicated region
    $region74: #{text_encoder_forward.1} parent=1 // pred_check
      _
    $region75: #{text_encoder_forward.1} parent=1 // pred_check_branch
      %73 = sbr.rel (0) target = $region77
    $region76: #{text_encoder_forward.1} parent=1 // pred_region
      _
    $region77: #{text_encoder_forward.1} parent=1 // pred_fallthru
      _
    // Predicated region
    $region78: #{text_encoder_forward.1} parent=1 // pred_check
      _
    $region79: #{text_encoder_forward.1} parent=1 // pred_check_branch
      %75 = sbr.rel (0) target = $region81
    $region80: #{text_encoder_forward.1} parent=1 // pred_region
      _
    $region81: #{text_encoder_forward.1} parent=1 // pred_fallthru
      _
    // Predicated region
    $region82: #{text_encoder_forward.1} parent=1 // pred_check
      _
    $region83: #{text_encoder_forward.1} parent=1 // pred_check_branch
      %77 = sbr.rel (0) target = $region85
    $region84: #{text_encoder_forward.1} parent=1 // pred_region
      _
    $region85: #{text_encoder_forward.1} parent=1 // pred_fallthru
      _
    %s78 = sld [smem:[#allocation4]]
    %s79 = scalar_lea.vmem %s1, %s78
    %v80 = vld [vmem:[%s79] sm:$0x1]
    %vm81 = vcmask 253952
    %82 = vst.msk [vmem:[#allocation2] sm:$0x1] %vm81, %v80
    %s83 = sld [smem:[#allocation4 + $0x1]]
    %s84 = scalar_lea.vmem %s1, %s83
    %v85 = vld [vmem:[%s84] sm:$0x1]
    %86 = vst.msk [vmem:[#allocation2 + $0x1] sm:$0x1] %vm81, %v85
    %s87 = sld [smem:[#allocation4 + $0x2]]
    %s88 = scalar_lea.vmem %s1, %s87
    %v89 = vld [vmem:[%s88] sm:$0x1]
    %90 = vst.msk [vmem:[#allocation2 + $0x2] sm:$0x1] %vm81, %v89
    %s91 = sld [smem:[#allocation4 + $0x3]]
    %s92 = scalar_lea.vmem %s1, %s91
    %v93 = vld [vmem:[%s92] sm:$0x1]
    %94 = vst.msk [vmem:[#allocation2 + $0x3] sm:$0x1] %vm81, %v93
    %s95 = sld [smem:[#allocation4 + $0x4]]
    %s96 = scalar_lea.vmem %s1, %s95
    %v97 = vld [vmem:[%s96] sm:$0x1]
    %98 = vst.msk [vmem:[#allocation2 + $0x4] sm:$0x1] %vm81, %v97
    %s99 = sld [smem:[#allocation4 + $0x5]]
    %s100 = scalar_lea.vmem %s1, %s99
    %v101 = vld [vmem:[%s100] sm:$0x1]
    %102 = vst.msk [vmem:[#allocation2 + $0x5] sm:$0x1] %vm81, %v101
    %s103 = sld [smem:[#allocation4 + $0x6]]
    %s104 = scalar_lea.vmem %s1, %s103
    %v105 = vld [vmem:[%s104] sm:$0x1]
    %106 = vst.msk [vmem:[#allocation2 + $0x6] sm:$0x1] %vm81, %v105
    %s107 = sld [smem:[#allocation4 + $0x7]]
    %s108 = scalar_lea.vmem %s1, %s107
    %v109 = vld [vmem:[%s108] sm:$0x1]
    %110 = vst.msk [vmem:[#allocation2 + $0x7] sm:$0x1] %vm81, %v109
    %s111 = sld [smem:[#allocation4 + $0x8]]
    %s112 = scalar_lea.vmem %s1, %s111
    %v113 = vld [vmem:[%s112] sm:$0x1]
    %114 = vst.msk [vmem:[#allocation2 + $0x8] sm:$0x1] %vm81, %v113
    %s115 = sld [smem:[#allocation4 + $0x9]]
    %s116 = scalar_lea.vmem %s1, %s115
    %v117 = vld [vmem:[%s116] sm:$0x1]
    %118 = vst.msk [vmem:[#allocation2 + $0x9] sm:$0x1] %vm81, %v117
    %s119 = sld [smem:[#allocation4 + $0xa]]
    %s120 = scalar_lea.vmem %s1, %s119
    %v121 = vld [vmem:[%s120] sm:$0x1]
    %122 = vst.msk [vmem:[#allocation2 + $0xa] sm:$0x1] %vm81, %v121
    %s123 = sld [smem:[#allocation4 + $0xb]]
    %s124 = scalar_lea.vmem %s1, %s123
    %v125 = vld [vmem:[%s124] sm:$0x1]
    %126 = vst.msk [vmem:[#allocation2 + $0xb] sm:$0x1] %vm81, %v125
    %s127 = sld [smem:[#allocation4 + $0xc]]
    %s128 = scalar_lea.vmem %s1, %s127
    %v129 = vld [vmem:[%s128] sm:$0x1]
    %130 = vst.msk [vmem:[#allocation2 + $0xc] sm:$0x1] %vm81, %v129
    %s131 = sld [smem:[#allocation4 + $0xd]]
    %s132 = scalar_lea.vmem %s1, %s131
    %v133 = vld [vmem:[%s132] sm:$0x1]
    %134 = vst.msk [vmem:[#allocation2 + $0xd] sm:$0x1] %vm81, %v133
    %s135 = sld [smem:[#allocation4 + $0xe]]
    %s136 = scalar_lea.vmem %s1, %s135
    %v137 = vld [vmem:[%s136] sm:$0x1]
    %138 = vst.msk [vmem:[#allocation2 + $0xe] sm:$0x1] %vm81, %v137
    %s139 = sld [smem:[#allocation4 + $0xf]]
    %s140 = scalar_lea.vmem %s1, %s139
    %v141 = vld [vmem:[%s140] sm:$0x1]
    %142 = vst.msk [vmem:[#allocation2 + $0xf] sm:$0x1] %vm81, %v141
    %v143 = vld [vmem:[#allocation2] sm:$0xff]
    %v144 = vld [vmem:[#allocation2 + $0x8] sm:$0xff]
    %v145 = vld [vmem:[%s2] sm:$0xff]
    %v146 = vld [vmem:[%s2 + $0x8] sm:$0xff]
    %v147 = vadd.f32 %v143, %v145
    %v148 = vadd.f32 %v144, %v146
    %v149 = vld [vmem:[%s4] sm:$0x1]
    %v150 = vld [vmem:[%s5] sm:$0x1]
    %vm151 = vcmask 261120
    %v152 = vsel %vm151, %v147, 0.0
    %153 = vadd.xlane.f32.xlu0 %v152
    %v154 = vpop.xlane.xlu0 %153
    %v155 = vsel %vm151, %v148, 0.0
    %156 = vadd.xlane.f32.xlu0 %v155
    %v157 = vpop.xlane.xlu0 %156
    %v158 = vrcp.pop 32.0
    %v159 = vmul.f32 32.0, %v158
    %v160 = vsub.f32 1.0, %v159
    %v161 = vmul.f32 %v158, %v160
    %v162 = vadd.f32 %v158, %v161
    %vm163 = vweird.f32 %v158
    %v164 = vsel %vm163, %v158, %v162
    %v165 = vmul.f32 %v154, %v164
    %v166 = vmul.f32 %v157, %v164
    %v167 = vsub.f32 %v147, %v165
    %v168 = vsub.f32 %v148, %v166
    %v169 = vmul.f32 %v167, %v167
    %v170 = vmul.f32 %v168, %v168
    %v171 = vsel %vm151, %v169, 0.0
    %172 = vadd.xlane.f32.xlu0 %v171
    %v173 = vpop.xlane.xlu0 %172
    %v174 = vsel %vm151, %v170, 0.0
    %175 = vadd.xlane.f32.xlu0 %v174
    %v176 = vpop.xlane.xlu0 %175
    %v177 = vmul.f32 %v173, %v164
    %v178 = vmul.f32 %v176, %v164
    %v179 = vadd.f32 %v177, 1e-12
    %v180 = vadd.f32 %v178, 1e-12
    %v181 = vrsqrt.pop %v179
    %v182 = vmul.f32 %v181, %v179
    %v183 = vmul.f32 %v182, %v181
    %v184 = vmul.f32 0.5, %v183
    %v185 = vsub.f32 1.5, %v184
    %v186 = vmul.f32 %v181, %v185
    %vm187 = vweird.f32 %v179
    %vm188 = vweird.f32 %v181
    %vm189 = vmor %vm187, %vm188
    %v190 = vsel %vm189, %v181, %v186
    %v191 = vrsqrt.pop %v180
    %v192 = vmul.f32 %v191, %v180
    %v193 = vmul.f32 %v192, %v191
    %v194 = vmul.f32 0.5, %v193
    %v195 = vsub.f32 1.5, %v194
    %v196 = vmul.f32 %v191, %v195
    %vm197 = vweird.f32 %v180
    %vm198 = vweird.f32 %v191
    %vm199 = vmor %vm197, %vm198
    %v200 = vsel %vm199, %v191, %v196
    %v201 = vmul.f32 %v167, %v190
    %v202 = vmul.f32 %v168, %v200
    %v204 = vperm.slane %v149, 0
    %v206 = vmul.f32 %v201, %v204
    %v207 = vmul.f32 %v202, %v204
    %v209 = vperm.slane %v150, 0
    %v211 = vadd.f32 %v206, %v209
    %v212 = vadd.f32 %v207, %v209
    %v213 = vld [vmem:[%s3] sm:$0x1]
    %s214 = scalar_lea.vmem %s3, 1
    %v215 = vld [vmem:[%s214] sm:$0x1]
    %v216 = vld [vmem:[%s6] sm:$0xff]
    %v217 = vld [vmem:[%s6 + $0x8] sm:$0xff]
    %v218 = vld [vmem:[%s6 + $0x10] sm:$0xff]
    %v219 = vld [vmem:[%s6 + $0x18] sm:$0xff]
    %v220 = vld [vmem:[%s7] sm:$0x1]
    %v222 = vperm.slane %v220, 0
    %v225 = vsel %vm151, %v211, 0
    %v228 = vsel %vm151, %v212, 0
    %230 = vmatpush.msra.mxu0 0.0
    %231 = vmatpush.msra.mxu0 0.0
    %232 = vmatpush.msra.mxu0 0.0
    %233 = vmatpush.msra.mxu0 0.0
    %234 = vmatpush.msra.mxu0 0.0
    %235 = vmatpush.msra.mxu0 0.0
    %236 = vmatpush.msra.mxu0 0.0
    %237 = vmatpush.msra.mxu0 0.0
    %238 = vmatpush.msra.mxu0 0.0
    %239 = vmatpush.msra.mxu0 0.0
    %240 = vmatpush.msra.mxu0 0.0
    %241 = vmatpush.msra.mxu0 0.0
    %242 = vmatpush.msra.mxu0 %v219
    %243 = vmatpush.msra.mxu0 %v218
    %244 = vmatpush.msra.mxu0 %v217
    %245 = vmatpush.msra.mxu0 %v216
    %246 = vmatmul.f32.gmra.mxu0 %v225
    %v247 = vpop.f32.mrf.mxu0
    %v248 = vadd.f32 %v222, %v247
    %249 = vmatmul.f32.gmra.mxu0 %v228
    %v250 = vpop.f32.mrf.mxu0
    %v251 = vadd.f32 %v222, %v250
    %252 = vdwg.mxu0
    %v253 = vld [vmem:[%s8] sm:$0xff]
    %v254 = vld [vmem:[%s8 + $0x8] sm:$0xff]
    %v255 = vld [vmem:[%s8 + $0x10] sm:$0xff]
    %v256 = vld [vmem:[%s8 + $0x18] sm:$0xff]
    %v257 = vld [vmem:[%s9] sm:$0x1]
    %v259 = vperm.slane %v257, 0
    %261 = vmatpush.msra.mxu0 0.0
    %262 = vmatpush.msra.mxu0 0.0
    %263 = vmatpush.msra.mxu0 0.0
    %264 = vmatpush.msra.mxu0 0.0
    %265 = vmatpush.msra.mxu0 0.0
    %266 = vmatpush.msra.mxu0 0.0
    %267 = vmatpush.msra.mxu0 0.0
    %268 = vmatpush.msra.mxu0 0.0
    %269 = vmatpush.msra.mxu0 0.0
    %270 = vmatpush.msra.mxu0 0.0
    %271 = vmatpush.msra.mxu0 0.0
    %272 = vmatpush.msra.mxu0 0.0
    %273 = vmatpush.msra.mxu0 %v256
    %274 = vmatpush.msra.mxu0 %v255
    %275 = vmatpush.msra.mxu0 %v254
    %276 = vmatpush.msra.mxu0 %v253
    %277 = vmatmul.f32.gmra.mxu0 %v225
    %v278 = vpop.f32.mrf.mxu0
    %v279 = vadd.f32 %v259, %v278
    %280 = vmatmul.f32.gmra.mxu0 %v228
    %v281 = vpop.f32.mrf.mxu0
    %v282 = vadd.f32 %v259, %v281
    %283 = vdwg.mxu0
    %v284 = vld [vmem:[%s10] sm:$0xff]
    %v285 = vld [vmem:[%s10 + $0x8] sm:$0xff]
    %v286 = vld [vmem:[%s10 + $0x10] sm:$0xff]
    %v287 = vld [vmem:[%s10 + $0x18] sm:$0xff]
    %v288 = vld [vmem:[%s11] sm:$0x1]
    %v290 = vperm.slane %v288, 0
    %292 = vmatpush.msra.mxu0 0.0
    %293 = vmatpush.msra.mxu0 0.0
    %294 = vmatpush.msra.mxu0 0.0
    %295 = vmatpush.msra.mxu0 0.0
    %296 = vmatpush.msra.mxu0 0.0
    %297 = vmatpush.msra.mxu0 0.0
    %298 = vmatpush.msra.mxu0 0.0
    %299 = vmatpush.msra.mxu0 0.0
    %300 = vmatpush.msra.mxu0 0.0
    %301 = vmatpush.msra.mxu0 0.0
    %302 = vmatpush.msra.mxu0 0.0
    %303 = vmatpush.msra.mxu0 0.0
    %304 = vmatpush.msra.mxu0 %v287
    %305 = vmatpush.msra.mxu0 %v286
    %306 = vmatpush.msra.mxu0 %v285
    %307 = vmatpush.msra.mxu0 %v284
    %308 = vmatmul.f32.gmra.mxu0 %v225
    %v309 = vpop.f32.mrf.mxu0
    %v310 = vadd.f32 %v290, %v309
    %311 = vmatmul.f32.gmra.mxu0 %v228
    %v312 = vpop.f32.mrf.mxu0
    %v313 = vadd.f32 %v290, %v312
    %314 = vdwg.mxu0
    %vm315 = vcmask 130048
    %v317 = vsel %vm315, %v248, 0
    %v320 = vsel %vm315, %v279, 0
    %322 = vmatpush.xpose.msra.mxu0 0.0
    %323 = vmatpush.xpose.msra.mxu0 0.0
    %324 = vmatpush.xpose.msra.mxu0 0.0
    %325 = vmatpush.xpose.msra.mxu0 0.0
    %326 = vmatpush.xpose.msra.mxu0 0.0
    %327 = vmatpush.xpose.msra.mxu0 0.0
    %328 = vmatpush.xpose.msra.mxu0 0.0
    %329 = vmatpush.xpose.msra.mxu0 0.0
    %330 = vmatpush.xpose.msra.mxu0 0.0
    %331 = vmatpush.xpose.msra.mxu0 0.0
    %332 = vmatpush.xpose.msra.mxu0 0.0
    %333 = vmatpush.xpose.msra.mxu0 0.0
    %334 = vmatpush.xpose.msra.mxu0 0.0
    %335 = vmatpush.xpose.msra.mxu0 0.0
    %336 = vmatpush.xpose.msra.mxu0 0.0
    %337 = vmatpush.xpose.msra.mxu0 %v320
    %338 = vmatmul.f32.gmra.mxu0 %v317
    %v339 = vpop.f32.mrf.mxu0
    %v340 = vadd.f32 0.0, %v339
    %341 = vdwg.mxu0
    %v342 = vmul.f32 %v340, 0.25
    %v344 = vperm.slane %v213, 0
    %v346 = vadd.f32 %v342, %v344
    %vm347 = vcmask 64512
    %v348 = vsel %vm347, %v346, -inf
    %349 = vmax.xlane.f32.xlu0 %v348
    %v350 = vpop.xlane.xlu0 %349
    %v351 = vsub.f32 %v346, %v350
    %v352 = vmul.f32 %v351, 1.442695
    %v353 = vpow.pop %v352
    %v354 = vsel %vm347, %v353, 0.0
    %355 = vadd.xlane.f32.xlu0 %v354
    %v356 = vpop.xlane.xlu0 %355
    %v357 = vrcp.pop %v356
    %v358 = vmul.f32 %v353, %v357
    %v360 = vsel %vm347, %v358, 0
    %362 = vmatpush.msra.mxu0 0.0
    %363 = vmatpush.msra.mxu0 0.0
    %364 = vmatpush.msra.mxu0 0.0
    %365 = vmatpush.msra.mxu0 0.0
    %366 = vmatpush.msra.mxu0 0.0
    %367 = vmatpush.msra.mxu0 0.0
    %368 = vmatpush.msra.mxu0 0.0
    %369 = vmatpush.msra.mxu0 0.0
    %370 = vmatpush.msra.mxu0 0.0
    %371 = vmatpush.msra.mxu0 0.0
    %372 = vmatpush.msra.mxu0 0.0
    %373 = vmatpush.msra.mxu0 0.0
    %374 = vmatpush.msra.mxu0 0.0
    %375 = vmatpush.msra.mxu0 0.0
    %376 = vmatpush.msra.mxu0 0.0
    %377 = vmatpush.msra.mxu0 %v310
    %378 = vmatmul.f32.gmra.mxu0 %v360
    %v379 = vpop.f32.mrf.mxu0
    %v380 = vadd.f32 0.0, %v379
    %381 = vdwg.mxu0
    %v383 = vsel %vm315, %v251, 0
    %v386 = vsel %vm315, %v282, 0
    %388 = vmatpush.xpose.msra.mxu0 0.0
    %389 = vmatpush.xpose.msra.mxu0 0.0
    %390 = vmatpush.xpose.msra.mxu0 0.0
    %391 = vmatpush.xpose.msra.mxu0 0.0
    %392 = vmatpush.xpose.msra.mxu0 0.0
    %393 = vmatpush.xpose.msra.mxu0 0.0
    %394 = vmatpush.xpose.msra.mxu0 0.0
    %395 = vmatpush.xpose.msra.mxu0 0.0
    %396 = vmatpush.xpose.msra.mxu0 0.0
    %397 = vmatpush.xpose.msra.mxu0 0.0
    %398 = vmatpush.xpose.msra.mxu0 0.0
    %399 = vmatpush.xpose.msra.mxu0 0.0
    %400 = vmatpush.xpose.msra.mxu0 0.0
    %401 = vmatpush.xpose.msra.mxu0 0.0
    %402 = vmatpush.xpose.msra.mxu0 0.0
    %403 = vmatpush.xpose.msra.mxu0 %v386
    %404 = vmatmul.f32.gmra.mxu0 %v383
    %v405 = vpop.f32.mrf.mxu0
    %v406 = vadd.f32 0.0, %v405
    %407 = vdwg.mxu0
    %v408 = vmul.f32 %v406, 0.25
    %v410 = vperm.slane %v215, 0
    %v412 = vadd.f32 %v408, %v410
    %v413 = vsel %vm347, %v412, -inf
    %414 = vmax.xlane.f32.xlu0 %v413
    %v415 = vpop.xlane.xlu0 %414
    %v416 = vsub.f32 %v412, %v415
    %v417 = vmul.f32 %v416, 1.442695
    %v418 = vpow.pop %v417
    %v419 = vsel %vm347, %v418, 0.0
    %420 = vadd.xlane.f32.xlu0 %v419
    %v421 = vpop.xlane.xlu0 %420
    %v422 = vrcp.pop %v421
    %v423 = vmul.f32 %v418, %v422
    %v425 = vsel %vm347, %v423, 0
    %427 = vmatpush.msra.mxu0 0.0
    %428 = vmatpush.msra.mxu0 0.0
    %429 = vmatpush.msra.mxu0 0.0
    %430 = vmatpush.msra.mxu0 0.0
    %431 = vmatpush.msra.mxu0 0.0
    %432 = vmatpush.msra.mxu0 0.0
    %433 = vmatpush.msra.mxu0 0.0
    %434 = vmatpush.msra.mxu0 0.0
    %435 = vmatpush.msra.mxu0 0.0
    %436 = vmatpush.msra.mxu0 0.0
    %437 = vmatpush.msra.mxu0 0.0
    %438 = vmatpush.msra.mxu0 0.0
    %439 = vmatpush.msra.mxu0 0.0
    %440 = vmatpush.msra.mxu0 0.0
    %441 = vmatpush.msra.mxu0 0.0
    %442 = vmatpush.msra.mxu0 %v313
    %443 = vmatmul.f32.gmra.mxu0 %v425
    %v444 = vpop.f32.mrf.mxu0
    %v445 = vadd.f32 0.0, %v444
    %446 = vdwg.mxu0
    %v447 = vld [vmem:[%s12] sm:$0xff]
    %v448 = vld [vmem:[%s12 + $0x8] sm:$0xff]
    %s449 = scalar_lea.vmem %s6, 32
    %v450 = vld [vmem:[%s449] sm:$0xff]
    %v451 = vld [vmem:[%s449 + $0x8] sm:$0xff]
    %v452 = vld [vmem:[%s449 + $0x10] sm:$0xff]
    %v453 = vld [vmem:[%s449 + $0x18] sm:$0xff]
    %s454 = scalar_lea.vmem %s7, 1
    %v455 = vld [vmem:[%s454] sm:$0x1]
    %v457 = vperm.slane %v455, 0
    %459 = vmatpush.msra.mxu0 0.0
    %460 = vmatpush.msra.mxu0 0.0
    %461 = vmatpush.msra.mxu0 0.0
    %462 = vmatpush.msra.mxu0 0.0
    %463 = vmatpush.msra.mxu0 0.0
    %464 = vmatpush.msra.mxu0 0.0
    %465 = vmatpush.msra.mxu0 0.0
    %466 = vmatpush.msra.mxu0 0.0
    %467 = vmatpush.msra.mxu0 0.0
    %468 = vmatpush.msra.mxu0 0.0
    %469 = vmatpush.msra.mxu0 0.0
    %470 = vmatpush.msra.mxu0 0.0
    %471 = vmatpush.msra.mxu0 %v453
    %472 = vmatpush.msra.mxu0 %v452
    %473 = vmatpush.msra.mxu0 %v451
    %474 = vmatpush.msra.mxu0 %v450
    %475 = vmatmul.f32.gmra.mxu0 %v225
    %v476 = vpop.f32.mrf.mxu0
    %v477 = vadd.f32 %v457, %v476
    %478 = vmatmul.f32.gmra.mxu0 %v228
    %v479 = vpop.f32.mrf.mxu0
    %v480 = vadd.f32 %v457, %v479
    %481 = vdwg.mxu0
    %s482 = scalar_lea.vmem %s8, 32
    %v483 = vld [vmem:[%s482] sm:$0xff]
    %v484 = vld [vmem:[%s482 + $0x8] sm:$0xff]
    %v485 = vld [vmem:[%s482 + $0x10] sm:$0xff]
    %v486 = vld [vmem:[%s482 + $0x18] sm:$0xff]
    %s487 = scalar_lea.vmem %s9, 1
    %v488 = vld [vmem:[%s487] sm:$0x1]
    %v490 = vperm.slane %v488, 0
    %492 = vmatpush.msra.mxu0 0.0
    %493 = vmatpush.msra.mxu0 0.0
    %494 = vmatpush.msra.mxu0 0.0
    %495 = vmatpush.msra.mxu0 0.0
    %496 = vmatpush.msra.mxu0 0.0
    %497 = vmatpush.msra.mxu0 0.0
    %498 = vmatpush.msra.mxu0 0.0
    %499 = vmatpush.msra.mxu0 0.0
    %500 = vmatpush.msra.mxu0 0.0
    %501 = vmatpush.msra.mxu0 0.0
    %502 = vmatpush.msra.mxu0 0.0
    %503 = vmatpush.msra.mxu0 0.0
    %504 = vmatpush.msra.mxu0 %v486
    %505 = vmatpush.msra.mxu0 %v485
    %506 = vmatpush.msra.mxu0 %v484
    %507 = vmatpush.msra.mxu0 %v483
    %508 = vmatmul.f32.gmra.mxu0 %v225
    %v509 = vpop.f32.mrf.mxu0
    %v510 = vadd.f32 %v490, %v509
    %511 = vmatmul.f32.gmra.mxu0 %v228
    %v512 = vpop.f32.mrf.mxu0
    %v513 = vadd.f32 %v490, %v512
    %514 = vdwg.mxu0
    %s515 = scalar_lea.vmem %s10, 32
    %v516 = vld [vmem:[%s515] sm:$0xff]
    %v517 = vld [vmem:[%s515 + $0x8] sm:$0xff]
    %v518 = vld [vmem:[%s515 + $0x10] sm:$0xff]
    %v519 = vld [vmem:[%s515 + $0x18] sm:$0xff]
    %s520 = scalar_lea.vmem %s11, 1
    %v521 = vld [vmem:[%s520] sm:$0x1]
    %v523 = vperm.slane %v521, 0
    %525 = vmatpush.msra.mxu0 0.0
    %526 = vmatpush.msra.mxu0 0.0
    %527 = vmatpush.msra.mxu0 0.0
    %528 = vmatpush.msra.mxu0 0.0
    %529 = vmatpush.msra.mxu0 0.0
    %530 = vmatpush.msra.mxu0 0.0
    %531 = vmatpush.msra.mxu0 0.0
    %532 = vmatpush.msra.mxu0 0.0
    %533 = vmatpush.msra.mxu0 0.0
    %534 = vmatpush.msra.mxu0 0.0
    %535 = vmatpush.msra.mxu0 0.0
    %536 = vmatpush.msra.mxu0 0.0
    %537 = vmatpush.msra.mxu0 %v519
    %538 = vmatpush.msra.mxu0 %v518
    %539 = vmatpush.msra.mxu0 %v517
    %540 = vmatpush.msra.mxu0 %v516
    %541 = vmatmul.f32.gmra.mxu0 %v225
    %v542 = vpop.f32.mrf.mxu0
    %v543 = vadd.f32 %v523, %v542
    %544 = vmatmul.f32.gmra.mxu0 %v228
    %v545 = vpop.f32.mrf.mxu0
    %v546 = vadd.f32 %v523, %v545
    %547 = vdwg.mxu0
    %v549 = vsel %vm315, %v477, 0
    %v552 = vsel %vm315, %v510, 0
    %554 = vmatpush.xpose.msra.mxu0 0.0
    %555 = vmatpush.xpose.msra.mxu0 0.0
    %556 = vmatpush.xpose.msra.mxu0 0.0
    %557 = vmatpush.xpose.msra.mxu0 0.0
    %558 = vmatpush.xpose.msra.mxu0 0.0
    %559 = vmatpush.xpose.msra.mxu0 0.0
    %560 = vmatpush.xpose.msra.mxu0 0.0
    %561 = vmatpush.xpose.msra.mxu0 0.0
    %562 = vmatpush.xpose.msra.mxu0 0.0
    %563 = vmatpush.xpose.msra.mxu0 0.0
    %564 = vmatpush.xpose.msra.mxu0 0.0
    %565 = vmatpush.xpose.msra.mxu0 0.0
    %566 = vmatpush.xpose.msra.mxu0 0.0
    %567 = vmatpush.xpose.msra.mxu0 0.0
    %568 = vmatpush.xpose.msra.mxu0 0.0
    %569 = vmatpush.xpose.msra.mxu0 %v552
    %570 = vmatmul.f32.gmra.mxu0 %v549
    %v571 = vpop.f32.mrf.mxu0
    %v572 = vadd.f32 0.0, %v571
    %573 = vdwg.mxu0
    %v574 = vmul.f32 %v572, 0.25
    %v575 = vadd.f32 %v574, %v344
    %v576 = vsel %vm347, %v575, -inf
    %577 = vmax.xlane.f32.xlu0 %v576
    %v578 = vpop.xlane.xlu0 %577
    %v579 = vsub.f32 %v575, %v578
    %v580 = vmul.f32 %v579, 1.442695
    %v581 = vpow.pop %v580
    %v582 = vsel %vm347, %v581, 0.0
    %583 = vadd.xlane.f32.xlu0 %v582
    %v584 = vpop.xlane.xlu0 %583
    %v585 = vrcp.pop %v584
    %v586 = vmul.f32 %v581, %v585
    %v588 = vsel %vm347, %v586, 0
    %590 = vmatpush.msra.mxu0 0.0
    %591 = vmatpush.msra.mxu0 0.0
    %592 = vmatpush.msra.mxu0 0.0
    %593 = vmatpush.msra.mxu0 0.0
    %594 = vmatpush.msra.mxu0 0.0
    %595 = vmatpush.msra.mxu0 0.0
    %596 = vmatpush.msra.mxu0 0.0
    %597 = vmatpush.msra.mxu0 0.0
    %598 = vmatpush.msra.mxu0 0.0
    %599 = vmatpush.msra.mxu0 0.0
    %600 = vmatpush.msra.mxu0 0.0
    %601 = vmatpush.msra.mxu0 0.0
    %602 = vmatpush.msra.mxu0 0.0
    %603 = vmatpush.msra.mxu0 0.0
    %604 = vmatpush.msra.mxu0 0.0
    %605 = vmatpush.msra.mxu0 %v543
    %606 = vmatmul.f32.gmra.mxu0 %v588
    %v607 = vpop.f32.mrf.mxu0
    %v608 = vadd.f32 0.0, %v607
    %609 = vdwg.mxu0
    %v611 = vsel %vm315, %v480, 0
    %v614 = vsel %vm315, %v513, 0
    %616 = vmatpush.xpose.msra.mxu0 0.0
    %617 = vmatpush.xpose.msra.mxu0 0.0
    %618 = vmatpush.xpose.msra.mxu0 0.0
    %619 = vmatpush.xpose.msra.mxu0 0.0
    %620 = vmatpush.xpose.msra.mxu0 0.0
    %621 = vmatpush.xpose.msra.mxu0 0.0
    %622 = vmatpush.xpose.msra.mxu0 0.0
    %623 = vmatpush.xpose.msra.mxu0 0.0
    %624 = vmatpush.xpose.msra.mxu0 0.0
    %625 = vmatpush.xpose.msra.mxu0 0.0
    %626 = vmatpush.xpose.msra.mxu0 0.0
    %627 = vmatpush.xpose.msra.mxu0 0.0
    %628 = vmatpush.xpose.msra.mxu0 0.0
    %629 = vmatpush.xpose.msra.mxu0 0.0
    %630 = vmatpush.xpose.msra.mxu0 0.0
    %631 = vmatpush.xpose.msra.mxu0 %v614
    %632 = vmatmul.f32.gmra.mxu0 %v611
    %v633 = vpop.f32.mrf.mxu0
    %v634 = vadd.f32 0.0, %v633
    %635 = vdwg.mxu0
    %v636 = vmul.f32 %v634, 0.25
    %v637 = vadd.f32 %v636, %v410
    %v638 = vsel %vm347, %v637, -inf
    %639 = vmax.xlane.f32.xlu0 %v638
    %v640 = vpop.xlane.xlu0 %639
    %v641 = vsub.f32 %v637, %v640
    %v642 = vmul.f32 %v641, 1.442695
    %v643 = vpow.pop %v642
    %v644 = vsel %vm347, %v643, 0.0
    %645 = vadd.xlane.f32.xlu0 %v644
    %v646 = vpop.xlane.xlu0 %645
    %v647 = vrcp.pop %v646
    %v648 = vmul.f32 %v643, %v647
    %v650 = vsel %vm347, %v648, 0
    %652 = vmatpush.msra.mxu0 0.0
    %653 = vmatpush.msra.mxu0 0.0
    %654 = vmatpush.msra.mxu0 0.0
    %655 = vmatpush.msra.mxu0 0.0
    %656 = vmatpush.msra.mxu0 0.0
    %657 = vmatpush.msra.mxu0 0.0
    %658 = vmatpush.msra.mxu0 0.0
    %659 = vmatpush.msra.mxu0 0.0
    %660 = vmatpush.msra.mxu0 0.0
    %661 = vmatpush.msra.mxu0 0.0
    %662 = vmatpush.msra.mxu0 0.0
    %663 = vmatpush.msra.mxu0 0.0
    %664 = vmatpush.msra.mxu0 0.0
    %665 = vmatpush.msra.mxu0 0.0
    %666 = vmatpush.msra.mxu0 0.0
    %667 = vmatpush.msra.mxu0 %v546
    %668 = vmatmul.f32.gmra.mxu0 %v650
    %v669 = vpop.f32.mrf.mxu0
    %v670 = vadd.f32 0.0, %v669
    %671 = vdwg.mxu0
    %s672 = scalar_lea.vmem %s12, 16
    %v673 = vld [vmem:[%s672] sm:$0xff]
    %v674 = vld [vmem:[%s672 + $0x8] sm:$0xff]
    %v676 = vsel %vm315, %v608, 0
    %v679 = vsel %vm315, %v670, 0
    %681 = vmatpush.msra.mxu0 0.0
    %682 = vmatpush.msra.mxu0 0.0
    %683 = vmatpush.msra.mxu0 0.0
    %684 = vmatpush.msra.mxu0 0.0
    %685 = vmatpush.msra.mxu0 0.0
    %686 = vmatpush.msra.mxu0 0.0
    %687 = vmatpush.msra.mxu0 0.0
    %688 = vmatpush.msra.mxu0 0.0
    %689 = vmatpush.msra.mxu0 0.0
    %690 = vmatpush.msra.mxu0 0.0
    %691 = vmatpush.msra.mxu0 0.0
    %692 = vmatpush.msra.mxu0 0.0
    %693 = vmatpush.msra.mxu0 0.0
    %694 = vmatpush.msra.mxu0 0.0
    %695 = vmatpush.msra.mxu0 %v674
    %696 = vmatpush.msra.mxu0 %v673
    %697 = vmatmul.f32.gmra.mxu0 %v676
    %v698 = vpop.f32.mrf.mxu0
    %v699 = vadd.f32 0.0, %v698
    %700 = vmatmul.f32.gmra.mxu0 %v679
    %v701 = vpop.f32.mrf.mxu0
    %v702 = vadd.f32 0.0, %v701
    %703 = vdwg.mxu0
    %v705 = vsel %vm315, %v380, 0
    %v708 = vsel %vm315, %v445, 0
    %710 = vmatpush.msra.mxu0 0.0
    %711 = vmatpush.msra.mxu0 0.0
    %712 = vmatpush.msra.mxu0 0.0
    %713 = vmatpush.msra.mxu0 0.0
    %714 = vmatpush.msra.mxu0 0.0
    %715 = vmatpush.msra.mxu0 0.0
    %716 = vmatpush.msra.mxu0 0.0
    %717 = vmatpush.msra.mxu0 0.0
    %718 = vmatpush.msra.mxu0 0.0
    %719 = vmatpush.msra.mxu0 0.0
    %720 = vmatpush.msra.mxu0 0.0
    %721 = vmatpush.msra.mxu0 0.0
    %722 = vmatpush.msra.mxu0 0.0
    %723 = vmatpush.msra.mxu0 0.0
    %724 = vmatpush.msra.mxu0 %v448
    %725 = vmatpush.msra.mxu0 %v447
    %726 = vmatmul.f32.gmra.mxu0 %v705
    %v727 = vpop.f32.mrf.mxu0
    %v728 = vadd.f32 %v699, %v727
    %729 = vmatmul.f32.gmra.mxu0 %v708
    %v730 = vpop.f32.mrf.mxu0
    %v731 = vadd.f32 %v702, %v730
    %732 = vdwg.mxu0
    %v733 = vld [vmem:[%s13] sm:$0x1]
    %v735 = vperm.slane %v733, 0
    %v737 = vadd.f32 %v728, %v735
    %v738 = vadd.f32 %v731, %v735
    %v739 = vadd.f32 %v211, %v737
    %v740 = vadd.f32 %v212, %v738
    %v741 = vld [vmem:[%s14] sm:$0x1]
    %v742 = vld [vmem:[%s15] sm:$0x1]
    %v743 = vsel %vm151, %v739, 0.0
    %744 = vadd.xlane.f32.xlu0 %v743
    %v745 = vpop.xlane.xlu0 %744
    %v746 = vsel %vm151, %v740, 0.0
    %747 = vadd.xlane.f32.xlu0 %v746
    %v748 = vpop.xlane.xlu0 %747
    %v749 = vmul.f32 %v745, %v164
    %v750 = vmul.f32 %v748, %v164
    %v751 = vsub.f32 %v739, %v749
    %v752 = vsub.f32 %v740, %v750
    %v753 = vmul.f32 %v751, %v751
    %v754 = vmul.f32 %v752, %v752
    %v755 = vsel %vm151, %v753, 0.0
    %756 = vadd.xlane.f32.xlu0 %v755
    %v757 = vpop.xlane.xlu0 %756
    %v758 = vsel %vm151, %v754, 0.0
    %759 = vadd.xlane.f32.xlu0 %v758
    %v760 = vpop.xlane.xlu0 %759
    %v761 = vmul.f32 %v757, %v164
    %v762 = vmul.f32 %v760, %v164
    %v763 = vadd.f32 %v761, 1e-12
    %v764 = vadd.f32 %v762, 1e-12
    %v765 = vrsqrt.pop %v763
    %v766 = vmul.f32 %v765, %v763
    %v767 = vmul.f32 %v766, %v765
    %v768 = vmul.f32 0.5, %v767
    %v769 = vsub.f32 1.5, %v768
    %v770 = vmul.f32 %v765, %v769
    %vm771 = vweird.f32 %v763
    %vm772 = vweird.f32 %v765
    %vm773 = vmor %vm771, %vm772
    %v774 = vsel %vm773, %v765, %v770
    %v775 = vrsqrt.pop %v764
    %v776 = vmul.f32 %v775, %v764
    %v777 = vmul.f32 %v776, %v775
    %v778 = vmul.f32 0.5, %v777
    %v779 = vsub.f32 1.5, %v778
    %v780 = vmul.f32 %v775, %v779
    %vm781 = vweird.f32 %v764
    %vm782 = vweird.f32 %v775
    %vm783 = vmor %vm781, %vm782
    %v784 = vsel %vm783, %v775, %v780
    %v785 = vmul.f32 %v751, %v774
    %v786 = vmul.f32 %v752, %v784
    %v788 = vperm.slane %v741, 0
    %v790 = vmul.f32 %v785, %v788
    %v791 = vmul.f32 %v786, %v788
    %v793 = vperm.slane %v742, 0
    %v795 = vadd.f32 %v790, %v793
    %v796 = vadd.f32 %v791, %v793
    %v797 = vld [vmem:[%s16] sm:$0xff]
    %v798 = vld [vmem:[%s16 + $0x8] sm:$0xff]
    %v799 = vld [vmem:[%s16 + $0x10] sm:$0xff]
    %v800 = vld [vmem:[%s16 + $0x18] sm:$0xff]
    %v801 = vld [vmem:[%s17] sm:$0x1]
    %v803 = vperm.slane %v801, 0
    %v806 = vsel %vm151, %v795, 0
    %v809 = vsel %vm151, %v796, 0
    %811 = vmatpush.msra.mxu0 0.0
    %812 = vmatpush.msra.mxu0 0.0
    %813 = vmatpush.msra.mxu0 0.0
    %814 = vmatpush.msra.mxu0 0.0
    %815 = vmatpush.msra.mxu0 0.0
    %816 = vmatpush.msra.mxu0 0.0
    %817 = vmatpush.msra.mxu0 0.0
    %818 = vmatpush.msra.mxu0 0.0
    %819 = vmatpush.msra.mxu0 0.0
    %820 = vmatpush.msra.mxu0 0.0
    %821 = vmatpush.msra.mxu0 0.0
    %822 = vmatpush.msra.mxu0 0.0
    %823 = vmatpush.msra.mxu0 %v800
    %824 = vmatpush.msra.mxu0 %v799
    %825 = vmatpush.msra.mxu0 %v798
    %826 = vmatpush.msra.mxu0 %v797
    %827 = vmatmul.f32.gmra.mxu0 %v806
    %v828 = vpop.f32.mrf.mxu0
    %v829 = vadd.f32 %v803, %v828
    %830 = vmatmul.f32.gmra.mxu0 %v809
    %v831 = vpop.f32.mrf.mxu0
    %v832 = vadd.f32 %v803, %v831
    %833 = vdwg.mxu0
    %v834 = vmul.f32 %v829, 0.5
    %v835 = vmul.f32 %v832, 0.5
    %v836 = vmul.f32 %v829, 0.044715
    %v837 = vmul.f32 %v832, 0.044715
    %v838 = vmul.f32 %v836, %v829
    %v839 = vmul.f32 %v837, %v832
    %v840 = vmul.f32 %v838, %v829
    %v841 = vmul.f32 %v839, %v832
    %v842 = vadd.f32 %v829, %v840
    %v843 = vadd.f32 %v832, %v841
    %v844 = vmul.f32 %v842, 0.7978846
    %v845 = vmul.f32 %v843, 0.7978846
    %v846 = vtanh.pop %v844
    %v847 = vtanh.pop %v845
    %v848 = vadd.f32 %v846, 1.0
    %v849 = vadd.f32 %v847, 1.0
    %v850 = vmul.f32 %v834, %v848
    %v851 = vmul.f32 %v835, %v849
    %v852 = vld [vmem:[%s18] sm:$0xff]
    %v853 = vld [vmem:[%s18 + $0x8] sm:$0xff]
    %v854 = vld [vmem:[%s18 + $0x10] sm:$0xff]
    %v855 = vld [vmem:[%s18 + $0x18] sm:$0xff]
    %v856 = vld [vmem:[%s18 + $0x20] sm:$0xff]
    %v857 = vld [vmem:[%s18 + $0x28] sm:$0xff]
    %v858 = vld [vmem:[%s18 + $0x30] sm:$0xff]
    %v859 = vld [vmem:[%s18 + $0x38] sm:$0xff]
    %v860 = vld [vmem:[%s19] sm:$0x1]
    %v862 = vperm.slane %v860, 0
    %vm864 = vcmask 523264
    %v866 = vsel %vm864, %v850, 0
    %v869 = vsel %vm864, %v851, 0
    %871 = vmatpush.msra.mxu0 0.0
    %872 = vmatpush.msra.mxu0 0.0
    %873 = vmatpush.msra.mxu0 0.0
    %874 = vmatpush.msra.mxu0 0.0
    %875 = vmatpush.msra.mxu0 0.0
    %876 = vmatpush.msra.mxu0 0.0
    %877 = vmatpush.msra.mxu0 0.0
    %878 = vmatpush.msra.mxu0 0.0
    %879 = vmatpush.msra.mxu0 %v859
    %880 = vmatpush.msra.mxu0 %v858
    %881 = vmatpush.msra.mxu0 %v857
    %882 = vmatpush.msra.mxu0 %v856
    %883 = vmatpush.msra.mxu0 %v855
    %884 = vmatpush.msra.mxu0 %v854
    %885 = vmatpush.msra.mxu0 %v853
    %886 = vmatpush.msra.mxu0 %v852
    %887 = vmatmul.f32.gmra.mxu0 %v866
    %v888 = vpop.f32.mrf.mxu0
    %v889 = vadd.f32 %v862, %v888
    %890 = vmatmul.f32.gmra.mxu0 %v869
    %v891 = vpop.f32.mrf.mxu0
    %v892 = vadd.f32 %v862, %v891
    %893 = vdwg.mxu0
    %v894 = vadd.f32 %v795, %v889
    %v895 = vadd.f32 %v796, %v892
    %v896 = vld [vmem:[%s20] sm:$0x1]
    %v897 = vld [vmem:[%s21] sm:$0x1]
    %v898 = vsel %vm151, %v894, 0.0
    %899 = vadd.xlane.f32.xlu0 %v898
    %v900 = vpop.xlane.xlu0 %899
    %v901 = vsel %vm151, %v895, 0.0
    %902 = vadd.xlane.f32.xlu0 %v901
    %v903 = vpop.xlane.xlu0 %902
    %v904 = vmul.f32 %v900, %v164
    %v905 = vmul.f32 %v903, %v164
    %v906 = vsub.f32 %v894, %v904
    %v907 = vsub.f32 %v895, %v905
    %v908 = vmul.f32 %v906, %v906
    %v909 = vmul.f32 %v907, %v907
    %v910 = vsel %vm151, %v908, 0.0
    %911 = vadd.xlane.f32.xlu0 %v910
    %v912 = vpop.xlane.xlu0 %911
    %v913 = vsel %vm151, %v909, 0.0
    %914 = vadd.xlane.f32.xlu0 %v913
    %v915 = vpop.xlane.xlu0 %914
    %v916 = vmul.f32 %v912, %v164
    %v917 = vmul.f32 %v915, %v164
    %v918 = vadd.f32 %v916, 1e-12
    %v919 = vadd.f32 %v917, 1e-12
    %v920 = vrsqrt.pop %v918
    %v921 = vmul.f32 %v920, %v918
    %v922 = vmul.f32 %v921, %v920
    %v923 = vmul.f32 0.5, %v922
    %v924 = vsub.f32 1.5, %v923
    %v925 = vmul.f32 %v920, %v924
    %vm926 = vweird.f32 %v918
    %vm927 = vweird.f32 %v920
    %vm928 = vmor %vm926, %vm927
    %v929 = vsel %vm928, %v920, %v925
    %v930 = vrsqrt.pop %v919
    %v931 = vmul.f32 %v930, %v919
    %v932 = vmul.f32 %v931, %v930
    %v933 = vmul.f32 0.5, %v932
    %v934 = vsub.f32 1.5, %v933
    %v935 = vmul.f32 %v930, %v934
    %vm936 = vweird.f32 %v919
    %vm937 = vweird.f32 %v930
    %vm938 = vmor %vm936, %vm937
    %v939 = vsel %vm938, %v930, %v935
    %v940 = vmul.f32 %v906, %v929
    %v941 = vmul.f32 %v907, %v939
    %v943 = vperm.slane %v896, 0
    %v945 = vmul.f32 %v940, %v943
    %v946 = vmul.f32 %v941, %v943
    %v948 = vperm.slane %v897, 0
    %v950 = vadd.f32 %v945, %v948
    %v951 = vadd.f32 %v946, %v948
    %s952 = scalar_lea.vmem %s6, 64
    %v953 = vld [vmem:[%s952] sm:$0xff]
    %v954 = vld [vmem:[%s952 + $0x8] sm:$0xff]
    %v955 = vld [vmem:[%s952 + $0x10] sm:$0xff]
    %v956 = vld [vmem:[%s952 + $0x18] sm:$0xff]
    %s957 = scalar_lea.vmem %s7, 2
    %v958 = vld [vmem:[%s957] sm:$0x1]
    %v960 = vperm.slane %v958, 0
    %v963 = vsel %vm151, %v950, 0
    %v966 = vsel %vm151, %v951, 0
    %968 = vmatpush.msra.mxu0 0.0
    %969 = vmatpush.msra.mxu0 0.0
    %970 = vmatpush.msra.mxu0 0.0
    %971 = vmatpush.msra.mxu0 0.0
    %972 = vmatpush.msra.mxu0 0.0
    %973 = vmatpush.msra.mxu0 0.0
    %974 = vmatpush.msra.mxu0 0.0
    %975 = vmatpush.msra.mxu0 0.0
    %976 = vmatpush.msra.mxu0 0.0
    %977 = vmatpush.msra.mxu0 0.0
    %978 = vmatpush.msra.mxu0 0.0
    %979 = vmatpush.msra.mxu0 0.0
    %980 = vmatpush.msra.mxu0 %v956
    %981 = vmatpush.msra.mxu0 %v955
    %982 = vmatpush.msra.mxu0 %v954
    %983 = vmatpush.msra.mxu0 %v953
    %984 = vmatmul.f32.gmra.mxu0 %v963
    %v985 = vpop.f32.mrf.mxu0
    %v986 = vadd.f32 %v960, %v985
    %987 = vmatmul.f32.gmra.mxu0 %v966
    %v988 = vpop.f32.mrf.mxu0
    %v989 = vadd.f32 %v960, %v988
    %990 = vdwg.mxu0
    %s991 = scalar_lea.vmem %s8, 64
    %v992 = vld [vmem:[%s991] sm:$0xff]
    %v993 = vld [vmem:[%s991 + $0x8] sm:$0xff]
    %v994 = vld [vmem:[%s991 + $0x10] sm:$0xff]
    %v995 = vld [vmem:[%s991 + $0x18] sm:$0xff]
    %s996 = scalar_lea.vmem %s9, 2
    %v997 = vld [vmem:[%s996] sm:$0x1]
    %v999 = vperm.slane %v997, 0
    %1001 = vmatpush.msra.mxu0 0.0
    %1002 = vmatpush.msra.mxu0 0.0
    %1003 = vmatpush.msra.mxu0 0.0
    %1004 = vmatpush.msra.mxu0 0.0
    %1005 = vmatpush.msra.mxu0 0.0
    %1006 = vmatpush.msra.mxu0 0.0
    %1007 = vmatpush.msra.mxu0 0.0
    %1008 = vmatpush.msra.mxu0 0.0
    %1009 = vmatpush.msra.mxu0 0.0
    %1010 = vmatpush.msra.mxu0 0.0
    %1011 = vmatpush.msra.mxu0 0.0
    %1012 = vmatpush.msra.mxu0 0.0
    %1013 = vmatpush.msra.mxu0 %v995
    %1014 = vmatpush.msra.mxu0 %v994
    %1015 = vmatpush.msra.mxu0 %v993
    %1016 = vmatpush.msra.mxu0 %v992
    %1017 = vmatmul.f32.gmra.mxu0 %v963
    %v1018 = vpop.f32.mrf.mxu0
    %v1019 = vadd.f32 %v999, %v1018
    %1020 = vmatmul.f32.gmra.mxu0 %v966
    %v1021 = vpop.f32.mrf.mxu0
    %v1022 = vadd.f32 %v999, %v1021
    %1023 = vdwg.mxu0
    %s1024 = scalar_lea.vmem %s10, 64
    %v1025 = vld [vmem:[%s1024] sm:$0xff]
    %v1026 = vld [vmem:[%s1024 + $0x8] sm:$0xff]
    %v1027 = vld [vmem:[%s1024 + $0x10] sm:$0xff]
    %v1028 = vld [vmem:[%s1024 + $0x18] sm:$0xff]
    %s1029 = scalar_lea.vmem %s11, 2
    %v1030 = vld [vmem:[%s1029] sm:$0x1]
    %v1032 = vperm.slane %v1030, 0
    %1034 = vmatpush.msra.mxu0 0.0
    %1035 = vmatpush.msra.mxu0 0.0
    %1036 = vmatpush.msra.mxu0 0.0
    %1037 = vmatpush.msra.mxu0 0.0
    %1038 = vmatpush.msra.mxu0 0.0
    %1039 = vmatpush.msra.mxu0 0.0
    %1040 = vmatpush.msra.mxu0 0.0
    %1041 = vmatpush.msra.mxu0 0.0
    %1042 = vmatpush.msra.mxu0 0.0
    %1043 = vmatpush.msra.mxu0 0.0
    %1044 = vmatpush.msra.mxu0 0.0
    %1045 = vmatpush.msra.mxu0 0.0
    %1046 = vmatpush.msra.mxu0 %v1028
    %1047 = vmatpush.msra.mxu0 %v1027
    %1048 = vmatpush.msra.mxu0 %v1026
    %1049 = vmatpush.msra.mxu0 %v1025
    %1050 = vmatmul.f32.gmra.mxu0 %v963
    %v1051 = vpop.f32.mrf.mxu0
    %v1052 = vadd.f32 %v1032, %v1051
    %1053 = vmatmul.f32.gmra.mxu0 %v966
    %v1054 = vpop.f32.mrf.mxu0
    %v1055 = vadd.f32 %v1032, %v1054
    %1056 = vdwg.mxu0
    %v1058 = vsel %vm315, %v986, 0
    %v1061 = vsel %vm315, %v1019, 0
    %1063 = vmatpush.xpose.msra.mxu0 0.0
    %1064 = vmatpush.xpose.msra.mxu0 0.0
    %1065 = vmatpush.xpose.msra.mxu0 0.0
    %1066 = vmatpush.xpose.msra.mxu0 0.0
    %1067 = vmatpush.xpose.msra.mxu0 0.0
    %1068 = vmatpush.xpose.msra.mxu0 0.0
    %1069 = vmatpush.xpose.msra.mxu0 0.0
    %1070 = vmatpush.xpose.msra.mxu0 0.0
    %1071 = vmatpush.xpose.msra.mxu0 0.0
    %1072 = vmatpush.xpose.msra.mxu0 0.0
    %1073 = vmatpush.xpose.msra.mxu0 0.0
    %1074 = vmatpush.xpose.msra.mxu0 0.0
    %1075 = vmatpush.xpose.msra.mxu0 0.0
    %1076 = vmatpush.xpose.msra.mxu0 0.0
    %1077 = vmatpush.xpose.msra.mxu0 0.0
    %1078 = vmatpush.xpose.msra.mxu0 %v1061
    %1079 = vmatmul.f32.gmra.mxu0 %v1058
    %v1080 = vpop.f32.mrf.mxu0
    %v1081 = vadd.f32 0.0, %v1080
    %1082 = vdwg.mxu0
    %v1083 = vmul.f32 %v1081, 0.25
    %v1084 = vadd.f32 %v1083, %v344
    %v1085 = vsel %vm347, %v1084, -inf
    %1086 = vmax.xlane.f32.xlu0 %v1085
    %v1087 = vpop.xlane.xlu0 %1086
    %v1088 = vsub.f32 %v1084, %v1087
    %v1089 = vmul.f32 %v1088, 1.442695
    %v1090 = vpow.pop %v1089
    %v1091 = vsel %vm347, %v1090, 0.0
    %1092 = vadd.xlane.f32.xlu0 %v1091
    %v1093 = vpop.xlane.xlu0 %1092
    %v1094 = vrcp.pop %v1093
    %v1095 = vmul.f32 %v1090, %v1094
    %v1097 = vsel %vm347, %v1095, 0
    %1099 = vmatpush.msra.mxu0 0.0
    %1100 = vmatpush.msra.mxu0 0.0
    %1101 = vmatpush.msra.mxu0 0.0
    %1102 = vmatpush.msra.mxu0 0.0
    %1103 = vmatpush.msra.mxu0 0.0
    %1104 = vmatpush.msra.mxu0 0.0
    %1105 = vmatpush.msra.mxu0 0.0
    %1106 = vmatpush.msra.mxu0 0.0
    %1107 = vmatpush.msra.mxu0 0.0
    %1108 = vmatpush.msra.mxu0 0.0
    %1109 = vmatpush.msra.mxu0 0.0
    %1110 = vmatpush.msra.mxu0 0.0
    %1111 = vmatpush.msra.mxu0 0.0
    %1112 = vmatpush.msra.mxu0 0.0
    %1113 = vmatpush.msra.mxu0 0.0
    %1114 = vmatpush.msra.mxu0 %v1052
    %1115 = vmatmul.f32.gmra.mxu0 %v1097
    %v1116 = vpop.f32.mrf.mxu0
    %v1117 = vadd.f32 0.0, %v1116
    %1118 = vdwg.mxu0
    %v1120 = vsel %vm315, %v989, 0
    %v1123 = vsel %vm315, %v1022, 0
    %1125 = vmatpush.xpose.msra.mxu0 0.0
    %1126 = vmatpush.xpose.msra.mxu0 0.0
    %1127 = vmatpush.xpose.msra.mxu0 0.0
    %1128 = vmatpush.xpose.msra.mxu0 0.0
    %1129 = vmatpush.xpose.msra.mxu0 0.0
    %1130 = vmatpush.xpose.msra.mxu0 0.0
    %1131 = vmatpush.xpose.msra.mxu0 0.0
    %1132 = vmatpush.xpose.msra.mxu0 0.0
    %1133 = vmatpush.xpose.msra.mxu0 0.0
    %1134 = vmatpush.xpose.msra.mxu0 0.0
    %1135 = vmatpush.xpose.msra.mxu0 0.0
    %1136 = vmatpush.xpose.msra.mxu0 0.0
    %1137 = vmatpush.xpose.msra.mxu0 0.0
    %1138 = vmatpush.xpose.msra.mxu0 0.0
    %1139 = vmatpush.xpose.msra.mxu0 0.0
    %1140 = vmatpush.xpose.msra.mxu0 %v1123
    %1141 = vmatmul.f32.gmra.mxu0 %v1120
    %v1142 = vpop.f32.mrf.mxu0
    %v1143 = vadd.f32 0.0, %v1142
    %1144 = vdwg.mxu0
    %v1145 = vmul.f32 %v1143, 0.25
    %v1146 = vadd.f32 %v1145, %v410
    %v1147 = vsel %vm347, %v1146, -inf
    %1148 = vmax.xlane.f32.xlu0 %v1147
    %v1149 = vpop.xlane.xlu0 %1148
    %v1150 = vsub.f32 %v1146, %v1149
    %v1151 = vmul.f32 %v1150, 1.442695
    %v1152 = vpow.pop %v1151
    %v1153 = vsel %vm347, %v1152, 0.0
    %1154 = vadd.xlane.f32.xlu0 %v1153
    %v1155 = vpop.xlane.xlu0 %1154
    %v1156 = vrcp.pop %v1155
    %v1157 = vmul.f32 %v1152, %v1156
    %v1159 = vsel %vm347, %v1157, 0
    %1161 = vmatpush.msra.mxu0 0.0
    %1162 = vmatpush.msra.mxu0 0.0
    %1163 = vmatpush.msra.mxu0 0.0
    %1164 = vmatpush.msra.mxu0 0.0
    %1165 = vmatpush.msra.mxu0 0.0
    %1166 = vmatpush.msra.mxu0 0.0
    %1167 = vmatpush.msra.mxu0 0.0
    %1168 = vmatpush.msra.mxu0 0.0
    %1169 = vmatpush.msra.mxu0 0.0
    %1170 = vmatpush.msra.mxu0 0.0
    %1171 = vmatpush.msra.mxu0 0.0
    %1172 = vmatpush.msra.mxu0 0.0
    %1173 = vmatpush.msra.mxu0 0.0
    %1174 = vmatpush.msra.mxu0 0.0
    %1175 = vmatpush.msra.mxu0 0.0
    %1176 = vmatpush.msra.mxu0 %v1055
    %1177 = vmatmul.f32.gmra.mxu0 %v1159
    %v1178 = vpop.f32.mrf.mxu0
    %v1179 = vadd.f32 0.0, %v1178
    %1180 = vdwg.mxu0
    %s1181 = scalar_lea.vmem %s12, 32
    %v1182 = vld [vmem:[%s1181] sm:$0xff]
    %v1183 = vld [vmem:[%s1181 + $0x8] sm:$0xff]
    %s1184 = scalar_lea.vmem %s6, 96
    %v1185 = vld [vmem:[%s1184] sm:$0xff]
    %v1186 = vld [vmem:[%s1184 + $0x8] sm:$0xff]
    %v1187 = vld [vmem:[%s1184 + $0x10] sm:$0xff]
    %v1188 = vld [vmem:[%s1184 + $0x18] sm:$0xff]
    %s1189 = scalar_lea.vmem %s7, 3
    %v1190 = vld [vmem:[%s1189] sm:$0x1]
    %v1192 = vperm.slane %v1190, 0
    %1194 = vmatpush.msra.mxu0 0.0
    %1195 = vmatpush.msra.mxu0 0.0
    %1196 = vmatpush.msra.mxu0 0.0
    %1197 = vmatpush.msra.mxu0 0.0
    %1198 = vmatpush.msra.mxu0 0.0
    %1199 = vmatpush.msra.mxu0 0.0
    %1200 = vmatpush.msra.mxu0 0.0
    %1201 = vmatpush.msra.mxu0 0.0
    %1202 = vmatpush.msra.mxu0 0.0
    %1203 = vmatpush.msra.mxu0 0.0
    %1204 = vmatpush.msra.mxu0 0.0
    %1205 = vmatpush.msra.mxu0 0.0
    %1206 = vmatpush.msra.mxu0 %v1188
    %1207 = vmatpush.msra.mxu0 %v1187
    %1208 = vmatpush.msra.mxu0 %v1186
    %1209 = vmatpush.msra.mxu0 %v1185
    %1210 = vmatmul.f32.gmra.mxu0 %v963
    %v1211 = vpop.f32.mrf.mxu0
    %v1212 = vadd.f32 %v1192, %v1211
    %1213 = vmatmul.f32.gmra.mxu0 %v966
    %v1214 = vpop.f32.mrf.mxu0
    %v1215 = vadd.f32 %v1192, %v1214
    %1216 = vdwg.mxu0
    %s1217 = scalar_lea.vmem %s8, 96
    %v1218 = vld [vmem:[%s1217] sm:$0xff]
    %v1219 = vld [vmem:[%s1217 + $0x8] sm:$0xff]
    %v1220 = vld [vmem:[%s1217 + $0x10] sm:$0xff]
    %v1221 = vld [vmem:[%s1217 + $0x18] sm:$0xff]
    %s1222 = scalar_lea.vmem %s9, 3
    %v1223 = vld [vmem:[%s1222] sm:$0x1]
    %v1225 = vperm.slane %v1223, 0
    %1227 = vmatpush.msra.mxu0 0.0
    %1228 = vmatpush.msra.mxu0 0.0
    %1229 = vmatpush.msra.mxu0 0.0
    %1230 = vmatpush.msra.mxu0 0.0
    %1231 = vmatpush.msra.mxu0 0.0
    %1232 = vmatpush.msra.mxu0 0.0
    %1233 = vmatpush.msra.mxu0 0.0
    %1234 = vmatpush.msra.mxu0 0.0
    %1235 = vmatpush.msra.mxu0 0.0
    %1236 = vmatpush.msra.mxu0 0.0
    %1237 = vmatpush.msra.mxu0 0.0
    %1238 = vmatpush.msra.mxu0 0.0
    %1239 = vmatpush.msra.mxu0 %v1221
    %1240 = vmatpush.msra.mxu0 %v1220
    %1241 = vmatpush.msra.mxu0 %v1219
    %1242 = vmatpush.msra.mxu0 %v1218
    %1243 = vmatmul.f32.gmra.mxu0 %v963
    %v1244 = vpop.f32.mrf.mxu0
    %v1245 = vadd.f32 %v1225, %v1244
    %1246 = vmatmul.f32.gmra.mxu0 %v966
    %v1247 = vpop.f32.mrf.mxu0
    %v1248 = vadd.f32 %v1225, %v1247
    %1249 = vdwg.mxu0
    %s1250 = scalar_lea.vmem %s10, 96
    %v1251 = vld [vmem:[%s1250] sm:$0xff]
    %v1252 = vld [vmem:[%s1250 + $0x8] sm:$0xff]
    %v1253 = vld [vmem:[%s1250 + $0x10] sm:$0xff]
    %v1254 = vld [vmem:[%s1250 + $0x18] sm:$0xff]
    %s1255 = scalar_lea.vmem %s11, 3
    %v1256 = vld [vmem:[%s1255] sm:$0x1]
    %v1258 = vperm.slane %v1256, 0
    %1260 = vmatpush.msra.mxu0 0.0
    %1261 = vmatpush.msra.mxu0 0.0
    %1262 = vmatpush.msra.mxu0 0.0
    %1263 = vmatpush.msra.mxu0 0.0
    %1264 = vmatpush.msra.mxu0 0.0
    %1265 = vmatpush.msra.mxu0 0.0
    %1266 = vmatpush.msra.mxu0 0.0
    %1267 = vmatpush.msra.mxu0 0.0
    %1268 = vmatpush.msra.mxu0 0.0
    %1269 = vmatpush.msra.mxu0 0.0
    %1270 = vmatpush.msra.mxu0 0.0
    %1271 = vmatpush.msra.mxu0 0.0
    %1272 = vmatpush.msra.mxu0 %v1254
    %1273 = vmatpush.msra.mxu0 %v1253
    %1274 = vmatpush.msra.mxu0 %v1252
    %1275 = vmatpush.msra.mxu0 %v1251
    %1276 = vmatmul.f32.gmra.mxu0 %v963
    %v1277 = vpop.f32.mrf.mxu0
    %v1278 = vadd.f32 %v1258, %v1277
    %1279 = vmatmul.f32.gmra.mxu0 %v966
    %v1280 = vpop.f32.mrf.mxu0
    %v1281 = vadd.f32 %v1258, %v1280
    %1282 = vdwg.mxu0
    %v1284 = vsel %vm315, %v1212, 0
    %v1287 = vsel %vm315, %v1245, 0
    %1289 = vmatpush.xpose.msra.mxu0 0.0
    %1290 = vmatpush.xpose.msra.mxu0 0.0
    %1291 = vmatpush.xpose.msra.mxu0 0.0
    %1292 = vmatpush.xpose.msra.mxu0 0.0
    %1293 = vmatpush.xpose.msra.mxu0 0.0
    %1294 = vmatpush.xpose.msra.mxu0 0.0
    %1295 = vmatpush.xpose.msra.mxu0 0.0
    %1296 = vmatpush.xpose.msra.mxu0 0.0
    %1297 = vmatpush.xpose.msra.mxu0 0.0
    %1298 = vmatpush.xpose.msra.mxu0 0.0
    %1299 = vmatpush.xpose.msra.mxu0 0.0
    %1300 = vmatpush.xpose.msra.mxu0 0.0
    %1301 = vmatpush.xpose.msra.mxu0 0.0
    %1302 = vmatpush.xpose.msra.mxu0 0.0
    %1303 = vmatpush.xpose.msra.mxu0 0.0
    %1304 = vmatpush.xpose.msra.mxu0 %v1287
    %1305 = vmatmul.f32.gmra.mxu0 %v1284
    %v1306 = vpop.f32.mrf.mxu0
    %v1307 = vadd.f32 0.0, %v1306
    %1308 = vdwg.mxu0
    %v1309 = vmul.f32 %v1307, 0.25
    %v1310 = vadd.f32 %v1309, %v344
    %v1311 = vsel %vm347, %v1310, -inf
    %1312 = vmax.xlane.f32.xlu0 %v1311
    %v1313 = vpop.xlane.xlu0 %1312
    %v1314 = vsub.f32 %v1310, %v1313
    %v1315 = vmul.f32 %v1314, 1.442695
    %v1316 = vpow.pop %v1315
    %v1317 = vsel %vm347, %v1316, 0.0
    %1318 = vadd.xlane.f32.xlu0 %v1317
    %v1319 = vpop.xlane.xlu0 %1318
    %v1320 = vrcp.pop %v1319
    %v1321 = vmul.f32 %v1316, %v1320
    %v1323 = vsel %vm347, %v1321, 0
    %1325 = vmatpush.msra.mxu0 0.0
    %1326 = vmatpush.msra.mxu0 0.0
    %1327 = vmatpush.msra.mxu0 0.0
    %1328 = vmatpush.msra.mxu0 0.0
    %1329 = vmatpush.msra.mxu0 0.0
    %1330 = vmatpush.msra.mxu0 0.0
    %1331 = vmatpush.msra.mxu0 0.0
    %1332 = vmatpush.msra.mxu0 0.0
    %1333 = vmatpush.msra.mxu0 0.0
    %1334 = vmatpush.msra.mxu0 0.0
    %1335 = vmatpush.msra.mxu0 0.0
    %1336 = vmatpush.msra.mxu0 0.0
    %1337 = vmatpush.msra.mxu0 0.0
    %1338 = vmatpush.msra.mxu0 0.0
    %1339 = vmatpush.msra.mxu0 0.0
    %1340 = vmatpush.msra.mxu0 %v1278
    %1341 = vmatmul.f32.gmra.mxu0 %v1323
    %v1342 = vpop.f32.mrf.mxu0
    %v1343 = vadd.f32 0.0, %v1342
    %1344 = vdwg.mxu0
    %v1346 = vsel %vm315, %v1215, 0
    %v1349 = vsel %vm315, %v1248, 0
    %1351 = vmatpush.xpose.msra.mxu0 0.0
    %1352 = vmatpush.xpose.msra.mxu0 0.0
    %1353 = vmatpush.xpose.msra.mxu0 0.0
    %1354 = vmatpush.xpose.msra.mxu0 0.0
    %1355 = vmatpush.xpose.msra.mxu0 0.0
    %1356 = vmatpush.xpose.msra.mxu0 0.0
    %1357 = vmatpush.xpose.msra.mxu0 0.0
    %1358 = vmatpush.xpose.msra.mxu0 0.0
    %1359 = vmatpush.xpose.msra.mxu0 0.0
    %1360 = vmatpush.xpose.msra.mxu0 0.0
    %1361 = vmatpush.xpose.msra.mxu0 0.0
    %1362 = vmatpush.xpose.msra.mxu0 0.0
    %1363 = vmatpush.xpose.msra.mxu0 0.0
    %1364 = vmatpush.xpose.msra.mxu0 0.0
    %1365 = vmatpush.xpose.msra.mxu0 0.0
    %1366 = vmatpush.xpose.msra.mxu0 %v1349
    %1367 = vmatmul.f32.gmra.mxu0 %v1346
    %v1368 = vpop.f32.mrf.mxu0
    %v1369 = vadd.f32 0.0, %v1368
    %1370 = vdwg.mxu0
    %v1371 = vmul.f32 %v1369, 0.25
    %v1372 = vadd.f32 %v1371, %v410
    %v1373 = vsel %vm347, %v1372, -inf
    %1374 = vmax.xlane.f32.xlu0 %v1373
    %v1375 = vpop.xlane.xlu0 %1374
    %v1376 = vsub.f32 %v1372, %v1375
    %v1377 = vmul.f32 %v1376, 1.442695
    %v1378 = vpow.pop %v1377
    %v1379 = vsel %vm347, %v1378, 0.0
    %1380 = vadd.xlane.f32.xlu0 %v1379
    %v1381 = vpop.xlane.xlu0 %1380
    %v1382 = vrcp.pop %v1381
    %v1383 = vmul.f32 %v1378, %v1382
    %v1385 = vsel %vm347, %v1383, 0
    %1387 = vmatpush.msra.mxu0 0.0
    %1388 = vmatpush.msra.mxu0 0.0
    %1389 = vmatpush.msra.mxu0 0.0
    %1390 = vmatpush.msra.mxu0 0.0
    %1391 = vmatpush.msra.mxu0 0.0
    %1392 = vmatpush.msra.mxu0 0.0
    %1393 = vmatpush.msra.mxu0 0.0
    %1394 = vmatpush.msra.mxu0 0.0
    %1395 = vmatpush.msra.mxu0 0.0
    %1396 = vmatpush.msra.mxu0 0.0
    %1397 = vmatpush.msra.mxu0 0.0
    %1398 = vmatpush.msra.mxu0 0.0
    %1399 = vmatpush.msra.mxu0 0.0
    %1400 = vmatpush.msra.mxu0 0.0
    %1401 = vmatpush.msra.mxu0 0.0
    %1402 = vmatpush.msra.mxu0 %v1281
    %1403 = vmatmul.f32.gmra.mxu0 %v1385
    %v1404 = vpop.f32.mrf.mxu0
    %v1405 = vadd.f32 0.0, %v1404
    %1406 = vdwg.mxu0
    %s1407 = scalar_lea.vmem %s12, 48
    %v1408 = vld [vmem:[%s1407] sm:$0xff]
    %v1409 = vld [vmem:[%s1407 + $0x8] sm:$0xff]
    %v1411 = vsel %vm315, %v1343, 0
    %v1414 = vsel %vm315, %v1405, 0
    %1416 = vmatpush.msra.mxu0 0.0
    %1417 = vmatpush.msra.mxu0 0.0
    %1418 = vmatpush.msra.mxu0 0.0
    %1419 = vmatpush.msra.mxu0 0.0
    %1420 = vmatpush.msra.mxu0 0.0
    %1421 = vmatpush.msra.mxu0 0.0
    %1422 = vmatpush.msra.mxu0 0.0
    %1423 = vmatpush.msra.mxu0 0.0
    %1424 = vmatpush.msra.mxu0 0.0
    %1425 = vmatpush.msra.mxu0 0.0
    %1426 = vmatpush.msra.mxu0 0.0
    %1427 = vmatpush.msra.mxu0 0.0
    %1428 = vmatpush.msra.mxu0 0.0
    %1429 = vmatpush.msra.mxu0 0.0
    %1430 = vmatpush.msra.mxu0 %v1409
    %1431 = vmatpush.msra.mxu0 %v1408
    %1432 = vmatmul.f32.gmra.mxu0 %v1411
    %v1433 = vpop.f32.mrf.mxu0
    %v1434 = vadd.f32 0.0, %v1433
    %1435 = vmatmul.f32.gmra.mxu0 %v1414
    %v1436 = vpop.f32.mrf.mxu0
    %v1437 = vadd.f32 0.0, %v1436
    %1438 = vdwg.mxu0
    %v1440 = vsel %vm315, %v1117, 0
    %v1443 = vsel %vm315, %v1179, 0
    %1445 = vmatpush.msra.mxu0 0.0
    %1446 = vmatpush.msra.mxu0 0.0
    %1447 = vmatpush.msra.mxu0 0.0
    %1448 = vmatpush.msra.mxu0 0.0
    %1449 = vmatpush.msra.mxu0 0.0
    %1450 = vmatpush.msra.mxu0 0.0
    %1451 = vmatpush.msra.mxu0 0.0
    %1452 = vmatpush.msra.mxu0 0.0
    %1453 = vmatpush.msra.mxu0 0.0
    %1454 = vmatpush.msra.mxu0 0.0
    %1455 = vmatpush.msra.mxu0 0.0
    %1456 = vmatpush.msra.mxu0 0.0
    %1457 = vmatpush.msra.mxu0 0.0
    %1458 = vmatpush.msra.mxu0 0.0
    %1459 = vmatpush.msra.mxu0 %v1183
    %1460 = vmatpush.msra.mxu0 %v1182
    %1461 = vmatmul.f32.gmra.mxu0 %v1440
    %v1462 = vpop.f32.mrf.mxu0
    %v1463 = vadd.f32 %v1434, %v1462
    %1464 = vmatmul.f32.gmra.mxu0 %v1443
    %v1465 = vpop.f32.mrf.mxu0
    %v1466 = vadd.f32 %v1437, %v1465
    %1467 = vdwg.mxu0
    %s1468 = scalar_lea.vmem %s13, 1
    %v1469 = vld [vmem:[%s1468] sm:$0x1]
    %v1471 = vperm.slane %v1469, 0
    %v1473 = vadd.f32 %v1463, %v1471
    %v1474 = vadd.f32 %v1466, %v1471
    %v1475 = vadd.f32 %v950, %v1473
    %v1476 = vadd.f32 %v951, %v1474
    %s1477 = scalar_lea.vmem %s14, 1
    %v1478 = vld [vmem:[%s1477] sm:$0x1]
    %s1479 = scalar_lea.vmem %s15, 1
    %v1480 = vld [vmem:[%s1479] sm:$0x1]
    %v1481 = vsel %vm151, %v1475, 0.0
    %1482 = vadd.xlane.f32.xlu0 %v1481
    %v1483 = vpop.xlane.xlu0 %1482
    %v1484 = vsel %vm151, %v1476, 0.0
    %1485 = vadd.xlane.f32.xlu0 %v1484
    %v1486 = vpop.xlane.xlu0 %1485
    %v1487 = vmul.f32 %v1483, %v164
    %v1488 = vmul.f32 %v1486, %v164
    %v1489 = vsub.f32 %v1475, %v1487
    %v1490 = vsub.f32 %v1476, %v1488
    %v1491 = vmul.f32 %v1489, %v1489
    %v1492 = vmul.f32 %v1490, %v1490
    %v1493 = vsel %vm151, %v1491, 0.0
    %1494 = vadd.xlane.f32.xlu0 %v1493
    %v1495 = vpop.xlane.xlu0 %1494
    %v1496 = vsel %vm151, %v1492, 0.0
    %1497 = vadd.xlane.f32.xlu0 %v1496
    %v1498 = vpop.xlane.xlu0 %1497
    %v1499 = vmul.f32 %v1495, %v164
    %v1500 = vmul.f32 %v1498, %v164
    %v1501 = vadd.f32 %v1499, 1e-12
    %v1502 = vadd.f32 %v1500, 1e-12
    %v1503 = vrsqrt.pop %v1501
    %v1504 = vmul.f32 %v1503, %v1501
    %v1505 = vmul.f32 %v1504, %v1503
    %v1506 = vmul.f32 0.5, %v1505
    %v1507 = vsub.f32 1.5, %v1506
    %v1508 = vmul.f32 %v1503, %v1507
    %vm1509 = vweird.f32 %v1501
    %vm1510 = vweird.f32 %v1503
    %vm1511 = vmor %vm1509, %vm1510
    %v1512 = vsel %vm1511, %v1503, %v1508
    %v1513 = vrsqrt.pop %v1502
    %v1514 = vmul.f32 %v1513, %v1502
    %v1515 = vmul.f32 %v1514, %v1513
    %v1516 = vmul.f32 0.5, %v1515
    %v1517 = vsub.f32 1.5, %v1516
    %v1518 = vmul.f32 %v1513, %v1517
    %vm1519 = vweird.f32 %v1502
    %vm1520 = vweird.f32 %v1513
    %vm1521 = vmor %vm1519, %vm1520
    %v1522 = vsel %vm1521, %v1513, %v1518
    %v1523 = vmul.f32 %v1489, %v1512
    %v1524 = vmul.f32 %v1490, %v1522
    %v1526 = vperm.slane %v1478, 0
    %v1528 = vmul.f32 %v1523, %v1526
    %v1529 = vmul.f32 %v1524, %v1526
    %v1531 = vperm.slane %v1480, 0
    %v1533 = vadd.f32 %v1528, %v1531
    %v1534 = vadd.f32 %v1529, %v1531
    %s1535 = scalar_lea.vmem %s16, 32
    %v1536 = vld [vmem:[%s1535] sm:$0xff]
    %v1537 = vld [vmem:[%s1535 + $0x8] sm:$0xff]
    %v1538 = vld [vmem:[%s1535 + $0x10] sm:$0xff]
    %v1539 = vld [vmem:[%s1535 + $0x18] sm:$0xff]
    %s1540 = scalar_lea.vmem %s17, 1
    %v1541 = vld [vmem:[%s1540] sm:$0x1]
    %v1543 = vperm.slane %v1541, 0
    %v1546 = vsel %vm151, %v1533, 0
    %v1549 = vsel %vm151, %v1534, 0
    %1551 = vmatpush.msra.mxu0 0.0
    %1552 = vmatpush.msra.mxu0 0.0
    %1553 = vmatpush.msra.mxu0 0.0
    %1554 = vmatpush.msra.mxu0 0.0
    %1555 = vmatpush.msra.mxu0 0.0
    %1556 = vmatpush.msra.mxu0 0.0
    %1557 = vmatpush.msra.mxu0 0.0
    %1558 = vmatpush.msra.mxu0 0.0
    %1559 = vmatpush.msra.mxu0 0.0
    %1560 = vmatpush.msra.mxu0 0.0
    %1561 = vmatpush.msra.mxu0 0.0
    %1562 = vmatpush.msra.mxu0 0.0
    %1563 = vmatpush.msra.mxu0 %v1539
    %1564 = vmatpush.msra.mxu0 %v1538
    %1565 = vmatpush.msra.mxu0 %v1537
    %1566 = vmatpush.msra.mxu0 %v1536
    %1567 = vmatmul.f32.gmra.mxu0 %v1546
    %v1568 = vpop.f32.mrf.mxu0
    %v1569 = vadd.f32 %v1543, %v1568
    %1570 = vmatmul.f32.gmra.mxu0 %v1549
    %v1571 = vpop.f32.mrf.mxu0
    %v1572 = vadd.f32 %v1543, %v1571
    %1573 = vdwg.mxu0
    %v1574 = vmul.f32 %v1569, 0.5
    %v1575 = vmul.f32 %v1572, 0.5
    %v1576 = vmul.f32 %v1569, 0.044715
    %v1577 = vmul.f32 %v1572, 0.044715
    %v1578 = vmul.f32 %v1576, %v1569
    %v1579 = vmul.f32 %v1577, %v1572
    %v1580 = vmul.f32 %v1578, %v1569
    %v1581 = vmul.f32 %v1579, %v1572
    %v1582 = vadd.f32 %v1569, %v1580
    %v1583 = vadd.f32 %v1572, %v1581
    %v1584 = vmul.f32 %v1582, 0.7978846
    %v1585 = vmul.f32 %v1583, 0.7978846
    %v1586 = vtanh.pop %v1584
    %v1587 = vtanh.pop %v1585
    %v1588 = vadd.f32 %v1586, 1.0
    %v1589 = vadd.f32 %v1587, 1.0
    %v1590 = vmul.f32 %v1574, %v1588
    %v1591 = vmul.f32 %v1575, %v1589
    %s1592 = scalar_lea.vmem %s18, 64
    %v1593 = vld [vmem:[%s1592] sm:$0xff]
    %v1594 = vld [vmem:[%s1592 + $0x8] sm:$0xff]
    %v1595 = vld [vmem:[%s1592 + $0x10] sm:$0xff]
    %v1596 = vld [vmem:[%s1592 + $0x18] sm:$0xff]
    %v1597 = vld [vmem:[%s1592 + $0x20] sm:$0xff]
    %v1598 = vld [vmem:[%s1592 + $0x28] sm:$0xff]
    %v1599 = vld [vmem:[%s1592 + $0x30] sm:$0xff]
    %v1600 = vld [vmem:[%s1592 + $0x38] sm:$0xff]
    %s1601 = scalar_lea.vmem %s19, 1
    %v1602 = vld [vmem:[%s1601] sm:$0x1]
    %v1604 = vperm.slane %v1602, 0
    %v1607 = vsel %vm864, %v1590, 0
    %v1610 = vsel %vm864, %v1591, 0
    %1612 = vmatpush.msra.mxu0 0.0
    %1613 = vmatpush.msra.mxu0 0.0
    %1614 = vmatpush.msra.mxu0 0.0
    %1615 = vmatpush.msra.mxu0 0.0
    %1616 = vmatpush.msra.mxu0 0.0
    %1617 = vmatpush.msra.mxu0 0.0
    %1618 = vmatpush.msra.mxu0 0.0
    %1619 = vmatpush.msra.mxu0 0.0
    %1620 = vmatpush.msra.mxu0 %v1600
    %1621 = vmatpush.msra.mxu0 %v1599
    %1622 = vmatpush.msra.mxu0 %v1598
    %1623 = vmatpush.msra.mxu0 %v1597
    %1624 = vmatpush.msra.mxu0 %v1596
    %1625 = vmatpush.msra.mxu0 %v1595
    %1626 = vmatpush.msra.mxu0 %v1594
    %1627 = vmatpush.msra.mxu0 %v1593
    %1628 = vmatmul.f32.gmra.mxu0 %v1607
    %v1629 = vpop.f32.mrf.mxu0
    %v1630 = vadd.f32 %v1604, %v1629
    %1631 = vmatmul.f32.gmra.mxu0 %v1610
    %v1632 = vpop.f32.mrf.mxu0
    %v1633 = vadd.f32 %v1604, %v1632
    %1634 = vdwg.mxu0
    %v1635 = vadd.f32 %v1533, %v1630
    %v1636 = vadd.f32 %v1534, %v1633
    %s1637 = scalar_lea.vmem %s20, 1
    %v1638 = vld [vmem:[%s1637] sm:$0x1]
    %s1639 = scalar_lea.vmem %s21, 1
    %v1640 = vld [vmem:[%s1639] sm:$0x1]
    %v1641 = vsel %vm151, %v1635, 0.0
    %1642 = vadd.xlane.f32.xlu0 %v1641
    %v1643 = vpop.xlane.xlu0 %1642
    %v1644 = vsel %vm151, %v1636, 0.0
    %1645 = vadd.xlane.f32.xlu0 %v1644
    %v1646 = vpop.xlane.xlu0 %1645
    %v1647 = vmul.f32 %v1643, %v164
    %v1648 = vmul.f32 %v1646, %v164
    %v1649 = vsub.f32 %v1635, %v1647
    %v1650 = vsub.f32 %v1636, %v1648
    %v1651 = vmul.f32 %v1649, %v1649
    %v1652 = vmul.f32 %v1650, %v1650
    %v1653 = vsel %vm151, %v1651, 0.0
    %1654 = vadd.xlane.f32.xlu0 %v1653
    %v1655 = vpop.xlane.xlu0 %1654
    %v1656 = vsel %vm151, %v1652, 0.0
    %1657 = vadd.xlane.f32.xlu0 %v1656
    %v1658 = vpop.xlane.xlu0 %1657
    %v1659 = vmul.f32 %v1655, %v164
    %v1660 = vmul.f32 %v1658, %v164
    %v1661 = vadd.f32 %v1659, 1e-12
    %v1662 = vadd.f32 %v1660, 1e-12
    %v1663 = vrsqrt.pop %v1661
    %v1664 = vmul.f32 %v1663, %v1661
    %v1665 = vmul.f32 %v1664, %v1663
    %v1666 = vmul.f32 0.5, %v1665
    %v1667 = vsub.f32 1.5, %v1666
    %v1668 = vmul.f32 %v1663, %v1667
    %vm1669 = vweird.f32 %v1661
    %vm1670 = vweird.f32 %v1663
    %vm1671 = vmor %vm1669, %vm1670
    %v1672 = vsel %vm1671, %v1663, %v1668
    %v1673 = vrsqrt.pop %v1662
    %v1674 = vmul.f32 %v1673, %v1662
    %v1675 = vmul.f32 %v1674, %v1673
    %v1676 = vmul.f32 0.5, %v1675
    %v1677 = vsub.f32 1.5, %v1676
    %v1678 = vmul.f32 %v1673, %v1677
    %vm1679 = vweird.f32 %v1662
    %vm1680 = vweird.f32 %v1673
    %vm1681 = vmor %vm1679, %vm1680
    %v1682 = vsel %vm1681, %v1673, %v1678
    %v1683 = vmul.f32 %v1649, %v1672
    %v1684 = vmul.f32 %v1650, %v1682
    %v1686 = vperm.slane %v1638, 0
    %v1688 = vmul.f32 %v1683, %v1686
    %v1689 = vmul.f32 %v1684, %v1686
    %v1691 = vperm.slane %v1640, 0
    %v1693 = vadd.f32 %v1688, %v1691
    %v1694 = vadd.f32 %v1689, %v1691
    %v1696 = vrot.slane %v1694, 7
    %vm1698 = vcmask 1040384
    %v1699 = vsel %vm1698, %v1693, %v1696
    %vm1700 = vcmask 254976
    %1701 = vst.msk [vmem:[#allocation5] sm:$0x3] %vm1700, %v1699
    // Predicated region
    $region86: #{text_encoder_forward.1} parent=1 // pred_check
      _
    $region87: #{text_encoder_forward.1} parent=1 // pred_check_branch
      %1703 = sbr.rel (0) target = $region89
    $region88: #{text_encoder_forward.1} parent=1 // pred_region
      %1705 = vsyncadd [#allocation6], 0
      %s1707 = sshll.u32 [#allocation5], 4
      %s1708 = int_to_ptr.vmem [resolvable:$true] %s1707
      %s1709 = sshll.u32 %s22, 4
      %s1710 = int_to_ptr.hbm [resolvable:$true] %s1709
      %1712 = dma.vmem_to_hbm [thread:$0]  %s1708, 32, %s1710, [#allocation6]
    $region89: #{text_encoder_forward.1} parent=1 // pred_fallthru
      _
    // Predicated region
    $region90: #{text_encoder_forward.1} parent=1 // pred_check
      _
    $region91: #{text_encoder_forward.1} parent=1 // pred_check_branch
      %1714 = sbr.rel (0) target = $region93
    $region92: #{text_encoder_forward.1} parent=1 // pred_region
      %1716 = dma.done [#allocation6], 32
    $region93: #{text_encoder_forward.1} parent=1 // pred_fallthru
      _
    %1717 = vsyncpa [#allocation6], 1

</llo_original>
